<compile_context>
chip_gen: v6e
topology: v6e:2x2x1
jax: 0.10.0
libtpu: 0.0.40
codegen_flags: <defaults>
</compile_context>

<pallas_src>
import jax
import jax.numpy as jnp
from jax.experimental import pallas as pl
from jax.experimental.pallas import tpu as pltpu

ROBERTA_HIDDEN = 768           # RoBERTa hidden size / pooler_output width
HIDDEN_DIM = 800               # module default hidden_dim
HIDDEN_DIM_PAD = 896           # 7 * 128 (lane-aligned)
GAME_STATE_DIM = 16            # game_state_dim (free parameter of the module)
GS_H1, GS_H2 = 64, 32          # game_state_encoder widths (from __init__)
FUSE_IN = ROBERTA_HIDDEN + GS_H2   # 768 + 32 = 800
FUSE_H2 = HIDDEN_DIM // 2          # 400
FUSE_H2_PAD = 512                  # 4 * 128 (lane-aligned)
TM_MAX = 512                       # batch-tile cap (amortize per-step overhead)


def _round_up(x, m):
    return (x + m - 1) // m * m


def _choose_tm(batch):
    """Pick the batch tile.

    - multiple of 16 (bf16 sublane packing for the streamed cls block),
    - capped at TM_MAX,
    - fitted so padded_b stays close to batch (no 2x waste at awkward sizes),
    - >= 2 grid steps whenever batch > 16 (keeps both v7x TensorCores busy).
    """
    if batch <= 16:
        return 16
    n_tiles = max(2, pl.cdiv(batch, TM_MAX))
    tm = _round_up(pl.cdiv(batch, n_tiles), 16)
    return min(tm, TM_MAX)


# ----------------------------------------------------------------------------
# Pallas kernel: pooler + game-state MLP + fusion MLP + classifier + sigmoid
# ----------------------------------------------------------------------------
def _deception_kernel(
    cls_ref,            # (TM, 768)  bf16  pre-pooler CLS hidden state
    gs_ref,             # (TM, 16)   f32   game state features
    wp_ref, bp_ref,     # (768, 768) bf16, (1, 768) f32   RoBERTa pooler dense
    wg1_ref, bg1_ref,   # (16, 64)   bf16, (1, 64)  f32
    wg2_ref, bg2_ref,   # (64, 32)   bf16, (1, 32)  f32
    wf1t_ref,           # (768, 896) bf16  fusion layer-1 weight, text slice
    wf1g_ref,           # (32, 896)  bf16  fusion layer-1 weight, game slice
    bf1_ref,            # (1, 896)   f32
    wf2_ref, bf2_ref,   # (896, 512) bf16, (1, 512) f32
    wc_ref,             # (1, 512)   bf16  classifier weight as a row vector
    bc_ref,             # (1, 1)     f32   classifier bias (SMEM scalar)
    out_ref,            # (TM, 1)    f32
):
    f32 = jnp.float32
    bf16 = jnp.bfloat16

    # --- RoBERTa pooler: tanh(cls @ Wp + bp) -> text_embeds, kept in bf16
    #     (materializing the (TM,768) intermediate in bf16 halves spill traffic)
    text = jnp.tanh(
        jnp.dot(cls_ref[...], wp_ref[...], preferred_element_type=f32)
        + bp_ref[...]
    ).astype(bf16)

    # --- game_state_encoder: Linear -> ReLU -> Linear -> ReLU -> (TM, 32)
    g = gs_ref[...].astype(bf16)
    g = jnp.maximum(
        jnp.dot(g, wg1_ref[...], preferred_element_type=f32) + bg1_ref[...], 0.0
    )
    g = jnp.maximum(
        jnp.dot(g.astype(bf16), wg2_ref[...], preferred_element_type=f32)
        + bg2_ref[...],
        0.0,
    ).astype(bf16)

    # --- fusion layer 1 on concat([text, game], axis=1):
    #     concat @ Wf1 == text @ Wf1[:768] + game @ Wf1[768:]
    h = (
        jnp.dot(text, wf1t_ref[...], preferred_element_type=f32)
        + jnp.dot(g, wf1g_ref[...], preferred_element_type=f32)
        + bf1_ref[...]
    )
    h = jnp.maximum(h, 0.0).astype(bf16)   # ReLU (Dropout = identity), bf16

    # --- fusion layer 2
    h2 = jnp.maximum(
        jnp.dot(h, wf2_ref[...], preferred_element_type=f32) + bf2_ref[...],
        0.0,
    )

    # --- classifier (single output column): VPU multiply + lane reduction
    #     (avoids a full MXU push/drain for N=1; padded columns are zero)
    wc_row = wc_ref[...].astype(f32)                       # (1, 512)
    logits = jnp.sum(h2 * wc_row, axis=-1, keepdims=True) + bc_ref[0, 0]

    # --- sigmoid via EUP reciprocal; min-clamp guards the approx path.
    probs = pl.reciprocal(1.0 + jnp.exp(-logits), approx=True)
    out_ref[...] = jnp.minimum(probs, 1.0)


# ----------------------------------------------------------------------------
# Wrapper: fitted batch grid, resident (single-buffered) weights, cost estimate
# ----------------------------------------------------------------------------
def deception_forward(cls_hidden, game_state, params):
    batch = cls_hidden.shape[0]
    tm = _choose_tm(batch)
    padded_b = _round_up(batch, tm)

    # Stream the only recurring per-step HBM input (cls) in bf16.
    cls_bf16 = cls_hidden.astype(jnp.bfloat16)
    gs_f32 = game_state.astype(jnp.float32)
    if padded_b != batch:
        pad = padded_b - batch
        cls_bf16 = jnp.pad(cls_bf16, ((0, pad), (0, 0)))
        gs_f32 = jnp.pad(gs_f32, ((0, pad), (0, 0)))
    grid = (padded_b // tm,)

    weights = (
        params["wp"], params["bp"],
        params["wg1"], params["bg1"],
        params["wg2"], params["bg2"],
        params["wf1_text"], params["wf1_game"], params["bf1"],
        params["wf2"], params["bf2"],
        params["wc"],
    )
    operands = (cls_bf16, gs_f32) + weights + (params["bc"],)

    def batched(ncols):
        return pl.BlockSpec((tm, ncols), lambda i: (i, 0))

    def resident(shape):
        # Full-array block, constant block index -> fetched once, stays in
        # VMEM across grid steps. Single-buffered (no point double-buffering
        # a block whose index never changes; saves ~3.5 MB VMEM on v7x).
        return pl.BlockSpec(shape, lambda i: (0, 0),
                            pipeline_mode=pl.Buffered(1))

    in_specs = (
        [batched(ROBERTA_HIDDEN), batched(GAME_STATE_DIM)]
        + [resident(w.shape) for w in weights]
        + [pl.BlockSpec((1, 1), lambda i: (0, 0),
                        memory_space=pltpu.MemorySpace.SMEM)]
    )
    out_specs = pl.BlockSpec((tm, 1), lambda i: (i, 0))

    # Advisory cost estimate: mostly weight DMA at small batch.
    matmul_flops = 2 * padded_b * (
        ROBERTA_HIDDEN * ROBERTA_HIDDEN
        + GAME_STATE_DIM * GS_H1
        + GS_H1 * GS_H2
        + ROBERTA_HIDDEN * HIDDEN_DIM_PAD
        + GS_H2 * HIDDEN_DIM_PAD
        + HIDDEN_DIM_PAD * FUSE_H2_PAD
        + FUSE_H2_PAD
    )
    weight_bytes = sum(int(w.size) * w.dtype.itemsize for w in weights) + 4
    act_bytes = padded_b * (ROBERTA_HIDDEN * 2 + GAME_STATE_DIM * 4 + 4)
    cost = pl.CostEstimate(
        flops=matmul_flops,
        transcendentals=padded_b * (ROBERTA_HIDDEN + 1),
        bytes_accessed=weight_bytes + act_bytes,
    )

    out = pl.pallas_call(
        _deception_kernel,
        out_shape=jax.ShapeDtypeStruct((padded_b, 1), jnp.float32),
        grid=grid,
        in_specs=in_specs,
        out_specs=out_specs,
        compiler_params=pltpu.CompilerParams(
            dimension_semantics=("parallel",),
        ),
        cost_estimate=cost,
    )(*operands)
    return out[:batch]


# ----------------------------------------------------------------------------
# Parameter init (deterministic): bf16 weights, f32 biases, lane-padded dims.
# ----------------------------------------------------------------------------
def init_params(key, vocab_size=1000):
    ks = jax.random.split(key, 13)
    bf16 = jnp.bfloat16

    def w(k, shape, scale=0.02):
        return (scale * jax.random.normal(k, shape)).astype(jnp.float32)

    def pad2(a, rows, cols):
        return jnp.pad(a, ((0, rows - a.shape[0]), (0, cols - a.shape[1])))

    # Fusion / classifier weights are created at their *natural* PyTorch sizes
    # and only then split / zero-padded, so porting real checkpoints is a
    # drop-in replacement of these arrays.
    wf1_full = w(ks[7], (FUSE_IN, HIDDEN_DIM))        # (800, 800)
    bf1_full = w(ks[8], (1, HIDDEN_DIM))              # (1, 800)
    wf2_full = w(ks[9], (HIDDEN_DIM, FUSE_H2))        # (800, 400)
    bf2_full = w(ks[10], (1, FUSE_H2))                # (1, 400)
    wc_full = w(ks[11], (FUSE_H2, 1))                 # (400, 1)

    return {
        # RoBERTa stub
        "embed": w(ks[0], (vocab_size, ROBERTA_HIDDEN)),
        "wp": w(ks[1], (ROBERTA_HIDDEN, ROBERTA_HIDDEN)).astype(bf16),
        "bp": w(ks[2], (1, ROBERTA_HIDDEN)),
        # game_state_encoder
        "wg1": w(ks[3], (GAME_STATE_DIM, GS_H1)).astype(bf16),
        "bg1": w(ks[4], (1, GS_H1)),
        "wg2": w(ks[5], (GS_H1, GS_H2)).astype(bf16),
        "bg2": w(ks[6], (1, GS_H2)),
        # fusion layer 1: split the (800, 800) weight at row 768 and zero-pad
        # the 800-wide output to 896 lanes (exact under ReLU).
        "wf1_text": pad2(wf1_full[:ROBERTA_HIDDEN], ROBERTA_HIDDEN,
                         HIDDEN_DIM_PAD).astype(bf16),
        "wf1_game": pad2(wf1_full[ROBERTA_HIDDEN:], GS_H2,
                         HIDDEN_DIM_PAD).astype(bf16),
        "bf1": pad2(bf1_full, 1, HIDDEN_DIM_PAD),
        # fusion layer 2: pad K 800->896 and N 400->512 with zeros.
        "wf2": pad2(wf2_full, HIDDEN_DIM_PAD, FUSE_H2_PAD).astype(bf16),
        "bf2": pad2(bf2_full, 1, FUSE_H2_PAD),
        # classifier: stored as a padded row vector for the VPU reduction.
        "wc": pad2(wc_full.T, 1, FUSE_H2_PAD).astype(bf16),
        "bc": w(ks[12], (1, 1)),
    }


def roberta_stub_cls(params, input_ids, attention_mask):
    """Embedding lookup + masked mean pool -> synthetic pre-pooler CLS state."""
    emb = jnp.take(params["embed"], input_ids, axis=0)          # (B, S, 768)
    mask = attention_mask.astype(jnp.float32)[..., None]        # (B, S, 1)
    summed = jnp.sum(emb * mask, axis=1)
    denom = jnp.maximum(jnp.sum(mask, axis=1), 1.0)
    return summed / denom                                       # (B, 768)


# ----------------------------------------------------------------------------
if __name__ == "__main__":
    key = jax.random.PRNGKey(0)
    k_params, k_ids, k_gs = jax.random.split(key, 3)

    batch, seq = 2, 8
    params = init_params(k_params)

    input_ids = jax.random.randint(k_ids, (batch, seq), 0, 1000, dtype=jnp.int32)
    attention_mask = jnp.ones((batch, seq), dtype=jnp.int32)
    game_state = jax.random.normal(k_gs, (batch, GAME_STATE_DIM),
                                   dtype=jnp.float32)

    cls_hidden = roberta_stub_cls(params, input_ids, attention_mask)
    probs = deception_forward(cls_hidden, game_state, params)
    probs = jax.block_until_ready(probs)

    assert probs.shape == (batch, 1)
    assert bool(jnp.all((probs >= 0.0) & (probs <= 1.0)))
    print("KERNEL_OK")
</pallas_src>

<mosaic_0001>
module attributes {stable_mosaic.version = 11 : i64} {
  func.func @_deception_kernel(%arg0: i32, %arg1: memref<16x768xbf16, #tpu.memory_space<vmem>>, %arg2: memref<16x16xf32, #tpu.memory_space<vmem>>, %arg3: memref<768x768xbf16, #tpu.memory_space<vmem>>, %arg4: memref<1x768xf32, #tpu.memory_space<vmem>>, %arg5: memref<16x64xbf16, #tpu.memory_space<vmem>>, %arg6: memref<1x64xf32, #tpu.memory_space<vmem>>, %arg7: memref<64x32xbf16, #tpu.memory_space<vmem>>, %arg8: memref<1x32xf32, #tpu.memory_space<vmem>>, %arg9: memref<768x896xbf16, #tpu.memory_space<vmem>>, %arg10: memref<32x896xbf16, #tpu.memory_space<vmem>>, %arg11: memref<1x896xf32, #tpu.memory_space<vmem>>, %arg12: memref<896x512xbf16, #tpu.memory_space<vmem>>, %arg13: memref<1x512xf32, #tpu.memory_space<vmem>>, %arg14: memref<1x512xbf16, #tpu.memory_space<vmem>>, %arg15: memref<1x1xf32, #tpu.memory_space<smem>>, %arg16: memref<16x1xf32, #tpu.memory_space<vmem>>) attributes {dimension_semantics = [#tpu.dimension_semantics<parallel>], iteration_bounds = array<i64: 1>, scalar_prefetch = 0 : i64, scratch_operands = 0 : i64, tpu.core_type = #tpu.core_type<tc>, window_params = [{transform_indices = @transform_0, window_bounds = array<i64: 16, 768>}, {transform_indices = @transform_1, window_bounds = array<i64: 16, 16>}, {pipeline_mode = #tpu.pipeline_mode<synchronous>, transform_indices = @transform_2, window_bounds = array<i64: 768, 768>}, {pipeline_mode = #tpu.pipeline_mode<synchronous>, transform_indices = @transform_3, window_bounds = array<i64: 1, 768>}, {pipeline_mode = #tpu.pipeline_mode<synchronous>, transform_indices = @transform_4, window_bounds = array<i64: 16, 64>}, {pipeline_mode = #tpu.pipeline_mode<synchronous>, transform_indices = @transform_5, window_bounds = array<i64: 1, 64>}, {pipeline_mode = #tpu.pipeline_mode<synchronous>, transform_indices = @transform_6, window_bounds = array<i64: 64, 32>}, {pipeline_mode = #tpu.pipeline_mode<synchronous>, transform_indices = @transform_7, window_bounds = array<i64: 1, 32>}, {pipeline_mode = #tpu.pipeline_mode<synchronous>, transform_indices = @transform_8, window_bounds = array<i64: 768, 896>}, {pipeline_mode = #tpu.pipeline_mode<synchronous>, transform_indices = @transform_9, window_bounds = array<i64: 32, 896>}, {pipeline_mode = #tpu.pipeline_mode<synchronous>, transform_indices = @transform_10, window_bounds = array<i64: 1, 896>}, {pipeline_mode = #tpu.pipeline_mode<synchronous>, transform_indices = @transform_11, window_bounds = array<i64: 896, 512>}, {pipeline_mode = #tpu.pipeline_mode<synchronous>, transform_indices = @transform_12, window_bounds = array<i64: 1, 512>}, {pipeline_mode = #tpu.pipeline_mode<synchronous>, transform_indices = @transform_13, window_bounds = array<i64: 1, 512>}, {transform_indices = @transform_14, window_bounds = array<i64: 1, 1>}, {transform_indices = @transform_15, window_bounds = array<i64: 16, 1>}]} {
    %c0 = arith.constant 0 : index
    %c0_0 = arith.constant 0 : index
    %0 = vector.load %arg1[%c0, %c0_0] : memref<16x768xbf16, #tpu.memory_space<vmem>>, vector<16x768xbf16>
    %c0_1 = arith.constant 0 : index
    %c0_2 = arith.constant 0 : index
    %1 = vector.load %arg3[%c0_1, %c0_2] : memref<768x768xbf16, #tpu.memory_space<vmem>>, vector<768x768xbf16>
    %cst = arith.constant dense<0.000000e+00> : vector<16x768xf32>
    %2 = tpu.matmul %0, %1, %cst {dimension_numbers = #tpu.dot_dimension_numbers<[1], [0], [0], [1], [0, 0, 1, 1], [], []>} : vector<16x768xbf16>, vector<768x768xbf16>, vector<16x768xf32> -> vector<16x768xf32>
    %c0_3 = arith.constant 0 : index
    %c0_4 = arith.constant 0 : index
    %3 = vector.load %arg4[%c0_3, %c0_4] : memref<1x768xf32, #tpu.memory_space<vmem>>, vector<1x768xf32>
    %4 = vector.broadcast %3 : vector<1x768xf32> to vector<16x768xf32>
    %5 = arith.addf %2, %4 : vector<16x768xf32>
    %6 = math.tanh %5 : vector<16x768xf32>
    %7 = arith.truncf %6 : vector<16x768xf32> to vector<16x768xbf16>
    %c0_5 = arith.constant 0 : index
    %c0_6 = arith.constant 0 : index
    %8 = vector.load %arg2[%c0_5, %c0_6] : memref<16x16xf32, #tpu.memory_space<vmem>>, vector<16x16xf32>
    %9 = arith.truncf %8 : vector<16x16xf32> to vector<16x16xbf16>
    %c0_7 = arith.constant 0 : index
    %c0_8 = arith.constant 0 : index
    %10 = vector.load %arg5[%c0_7, %c0_8] : memref<16x64xbf16, #tpu.memory_space<vmem>>, vector<16x64xbf16>
    %cst_9 = arith.constant dense<0.000000e+00> : vector<16x64xf32>
    %11 = tpu.matmul %9, %10, %cst_9 {dimension_numbers = #tpu.dot_dimension_numbers<[1], [0], [0], [1], [0, 0, 1, 1], [], []>} : vector<16x16xbf16>, vector<16x64xbf16>, vector<16x64xf32> -> vector<16x64xf32>
    %c0_10 = arith.constant 0 : index
    %c0_11 = arith.constant 0 : index
    %12 = vector.load %arg6[%c0_10, %c0_11] : memref<1x64xf32, #tpu.memory_space<vmem>>, vector<1x64xf32>
    %13 = vector.broadcast %12 : vector<1x64xf32> to vector<16x64xf32>
    %14 = arith.addf %11, %13 : vector<16x64xf32>
    %cst_12 = arith.constant 0.000000e+00 : f32
    %15 = vector.broadcast %cst_12 : f32 to vector<16x64xf32>
    %16 = arith.maximumf %14, %15 : vector<16x64xf32>
    %17 = arith.truncf %16 : vector<16x64xf32> to vector<16x64xbf16>
    %c0_13 = arith.constant 0 : index
    %c0_14 = arith.constant 0 : index
    %18 = vector.load %arg7[%c0_13, %c0_14] : memref<64x32xbf16, #tpu.memory_space<vmem>>, vector<64x32xbf16>
    %cst_15 = arith.constant dense<0.000000e+00> : vector<16x32xf32>
    %19 = tpu.matmul %17, %18, %cst_15 {dimension_numbers = #tpu.dot_dimension_numbers<[1], [0], [0], [1], [0, 0, 1, 1], [], []>} : vector<16x64xbf16>, vector<64x32xbf16>, vector<16x32xf32> -> vector<16x32xf32>
    %c0_16 = arith.constant 0 : index
    %c0_17 = arith.constant 0 : index
    %20 = vector.load %arg8[%c0_16, %c0_17] : memref<1x32xf32, #tpu.memory_space<vmem>>, vector<1x32xf32>
    %21 = vector.broadcast %20 : vector<1x32xf32> to vector<16x32xf32>
    %22 = arith.addf %19, %21 : vector<16x32xf32>
    %cst_18 = arith.constant 0.000000e+00 : f32
    %23 = vector.broadcast %cst_18 : f32 to vector<16x32xf32>
    %24 = arith.maximumf %22, %23 : vector<16x32xf32>
    %25 = arith.truncf %24 : vector<16x32xf32> to vector<16x32xbf16>
    %c0_19 = arith.constant 0 : index
    %c0_20 = arith.constant 0 : index
    %26 = vector.load %arg9[%c0_19, %c0_20] : memref<768x896xbf16, #tpu.memory_space<vmem>>, vector<768x896xbf16>
    %cst_21 = arith.constant dense<0.000000e+00> : vector<16x896xf32>
    %27 = tpu.matmul %7, %26, %cst_21 {dimension_numbers = #tpu.dot_dimension_numbers<[1], [0], [0], [1], [0, 0, 1, 1], [], []>} : vector<16x768xbf16>, vector<768x896xbf16>, vector<16x896xf32> -> vector<16x896xf32>
    %c0_22 = arith.constant 0 : index
    %c0_23 = arith.constant 0 : index
    %28 = vector.load %arg10[%c0_22, %c0_23] : memref<32x896xbf16, #tpu.memory_space<vmem>>, vector<32x896xbf16>
    %cst_24 = arith.constant dense<0.000000e+00> : vector<16x896xf32>
    %29 = tpu.matmul %25, %28, %cst_24 {dimension_numbers = #tpu.dot_dimension_numbers<[1], [0], [0], [1], [0, 0, 1, 1], [], []>} : vector<16x32xbf16>, vector<32x896xbf16>, vector<16x896xf32> -> vector<16x896xf32>
    %30 = arith.addf %27, %29 : vector<16x896xf32>
    %c0_25 = arith.constant 0 : index
    %c0_26 = arith.constant 0 : index
    %31 = vector.load %arg11[%c0_25, %c0_26] : memref<1x896xf32, #tpu.memory_space<vmem>>, vector<1x896xf32>
    %32 = vector.broadcast %31 : vector<1x896xf32> to vector<16x896xf32>
    %33 = arith.addf %30, %32 : vector<16x896xf32>
    %cst_27 = arith.constant 0.000000e+00 : f32
    %34 = vector.broadcast %cst_27 : f32 to vector<16x896xf32>
    %35 = arith.maximumf %33, %34 : vector<16x896xf32>
    %36 = arith.truncf %35 : vector<16x896xf32> to vector<16x896xbf16>
    %c0_28 = arith.constant 0 : index
    %c0_29 = arith.constant 0 : index
    %37 = vector.load %arg12[%c0_28, %c0_29] : memref<896x512xbf16, #tpu.memory_space<vmem>>, vector<896x512xbf16>
    %cst_30 = arith.constant dense<0.000000e+00> : vector<16x512xf32>
    %38 = tpu.matmul %36, %37, %cst_30 {dimension_numbers = #tpu.dot_dimension_numbers<[1], [0], [0], [1], [0, 0, 1, 1], [], []>} : vector<16x896xbf16>, vector<896x512xbf16>, vector<16x512xf32> -> vector<16x512xf32>
    %c0_31 = arith.constant 0 : index
    %c0_32 = arith.constant 0 : index
    %39 = vector.load %arg13[%c0_31, %c0_32] : memref<1x512xf32, #tpu.memory_space<vmem>>, vector<1x512xf32>
    %40 = vector.broadcast %39 : vector<1x512xf32> to vector<16x512xf32>
    %41 = arith.addf %38, %40 : vector<16x512xf32>
    %cst_33 = arith.constant 0.000000e+00 : f32
    %42 = vector.broadcast %cst_33 : f32 to vector<16x512xf32>
    %43 = arith.maximumf %41, %42 : vector<16x512xf32>
    %c0_34 = arith.constant 0 : index
    %c0_35 = arith.constant 0 : index
    %44 = vector.load %arg14[%c0_34, %c0_35] : memref<1x512xbf16, #tpu.memory_space<vmem>>, vector<1x512xbf16>
    %45 = arith.extf %44 : vector<1x512xbf16> to vector<1x512xf32>
    %46 = vector.broadcast %45 : vector<1x512xf32> to vector<16x512xf32>
    %47 = arith.mulf %43, %46 : vector<16x512xf32>
    %cst_36 = arith.constant dense<0.000000e+00> : vector<16xf32>
    %48 = vector.multi_reduction <add>, %47, %cst_36 [1] : vector<16x512xf32> to vector<16xf32>
    %49 = vector.shape_cast %48 : vector<16xf32> to vector<16x1xf32>
    %c0_37 = arith.constant 0 : index
    %c0_38 = arith.constant 0 : index
    %50 = memref.load %arg15[%c0_37, %c0_38] : memref<1x1xf32, #tpu.memory_space<smem>>
    %51 = vector.broadcast %50 : f32 to vector<16x1xf32>
    %52 = arith.addf %49, %51 : vector<16x1xf32>
    %cst_39 = arith.constant 0.000000e+00 : f32
    %53 = vector.broadcast %cst_39 : f32 to vector<16x1xf32>
    %54 = arith.subf %53, %52 : vector<16x1xf32>
    %55 = math.exp %54 : vector<16x1xf32>
    %cst_40 = arith.constant 1.000000e+00 : f32
    %56 = vector.broadcast %cst_40 : f32 to vector<16x1xf32>
    %57 = arith.addf %56, %55 : vector<16x1xf32>
    %58 = tpu.reciprocal %57 {approx = true} : vector<16x1xf32> -> vector<16x1xf32>
    %cst_41 = arith.constant 1.000000e+00 : f32
    %59 = vector.broadcast %cst_41 : f32 to vector<16x1xf32>
    %60 = arith.minimumf %58, %59 : vector<16x1xf32>
    %c0_42 = arith.constant 0 : index
    %c0_43 = arith.constant 0 : index
    %61 = vector.load %arg16[%c0_42, %c0_43] : memref<16x1xf32, #tpu.memory_space<vmem>>, vector<16x1xf32>
    tpu.vector_store %arg16[%c0_42, %c0_43], %60 {strides = array<i32>} : memref<16x1xf32, #tpu.memory_space<vmem>>, vector<16x1xf32>,
    return
  }
  func.func @transform_0(%arg0: i32) -> (i32, i32) {
    %c0_i32 = arith.constant 0 : i32
    %c0_i32_0 = arith.constant 0 : i32
    return %arg0, %c0_i32 : i32, i32
  }
  func.func @transform_1(%arg0: i32) -> (i32, i32) {
    %c0_i32 = arith.constant 0 : i32
    %c0_i32_0 = arith.constant 0 : i32
    return %arg0, %c0_i32 : i32, i32
  }
  func.func @transform_2(%arg0: i32) -> (i32, i32) {
    %c0_i32 = arith.constant 0 : i32
    %c0_i32_0 = arith.constant 0 : i32
    %c0_i32_1 = arith.constant 0 : i32
    return %c0_i32, %c0_i32_0 : i32, i32
  }
  func.func @transform_3(%arg0: i32) -> (i32, i32) {
    %c0_i32 = arith.constant 0 : i32
    %c0_i32_0 = arith.constant 0 : i32
    %c0_i32_1 = arith.constant 0 : i32
    return %c0_i32, %c0_i32_0 : i32, i32
  }
  func.func @transform_4(%arg0: i32) -> (i32, i32) {
    %c0_i32 = arith.constant 0 : i32
    %c0_i32_0 = arith.constant 0 : i32
    %c0_i32_1 = arith.constant 0 : i32
    return %c0_i32, %c0_i32_0 : i32, i32
  }
  func.func @transform_5(%arg0: i32) -> (i32, i32) {
    %c0_i32 = arith.constant 0 : i32
    %c0_i32_0 = arith.constant 0 : i32
    %c0_i32_1 = arith.constant 0 : i32
    return %c0_i32, %c0_i32_0 : i32, i32
  }
  func.func @transform_6(%arg0: i32) -> (i32, i32) {
    %c0_i32 = arith.constant 0 : i32
    %c0_i32_0 = arith.constant 0 : i32
    %c0_i32_1 = arith.constant 0 : i32
    return %c0_i32, %c0_i32_0 : i32, i32
  }
  func.func @transform_7(%arg0: i32) -> (i32, i32) {
    %c0_i32 = arith.constant 0 : i32
    %c0_i32_0 = arith.constant 0 : i32
    %c0_i32_1 = arith.constant 0 : i32
    return %c0_i32, %c0_i32_0 : i32, i32
  }
  func.func @transform_8(%arg0: i32) -> (i32, i32) {
    %c0_i32 = arith.constant 0 : i32
    %c0_i32_0 = arith.constant 0 : i32
    %c0_i32_1 = arith.constant 0 : i32
    return %c0_i32, %c0_i32_0 : i32, i32
  }
  func.func @transform_9(%arg0: i32) -> (i32, i32) {
    %c0_i32 = arith.constant 0 : i32
    %c0_i32_0 = arith.constant 0 : i32
    %c0_i32_1 = arith.constant 0 : i32
    return %c0_i32, %c0_i32_0 : i32, i32
  }
  func.func @transform_10(%arg0: i32) -> (i32, i32) {
    %c0_i32 = arith.constant 0 : i32
    %c0_i32_0 = arith.constant 0 : i32
    %c0_i32_1 = arith.constant 0 : i32
    return %c0_i32, %c0_i32_0 : i32, i32
  }
  func.func @transform_11(%arg0: i32) -> (i32, i32) {
    %c0_i32 = arith.constant 0 : i32
    %c0_i32_0 = arith.constant 0 : i32
    %c0_i32_1 = arith.constant 0 : i32
    return %c0_i32, %c0_i32_0 : i32, i32
  }
  func.func @transform_12(%arg0: i32) -> (i32, i32) {
    %c0_i32 = arith.constant 0 : i32
    %c0_i32_0 = arith.constant 0 : i32
    %c0_i32_1 = arith.constant 0 : i32
    return %c0_i32, %c0_i32_0 : i32, i32
  }
  func.func @transform_13(%arg0: i32) -> (i32, i32) {
    %c0_i32 = arith.constant 0 : i32
    %c0_i32_0 = arith.constant 0 : i32
    %c0_i32_1 = arith.constant 0 : i32
    return %c0_i32, %c0_i32_0 : i32, i32
  }
  func.func @transform_14(%arg0: i32) -> (i32, i32) {
    %c0_i32 = arith.constant 0 : i32
    %c0_i32_0 = arith.constant 0 : i32
    %c0_i32_1 = arith.constant 0 : i32
    return %c0_i32, %c0_i32_0 : i32, i32
  }
  func.func @transform_15(%arg0: i32) -> (i32, i32) {
    %c0_i32 = arith.constant 0 : i32
    %c0_i32_0 = arith.constant 0 : i32
    return %arg0, %c0_i32 : i32, i32
  }
}

</mosaic_0001>

<llo_original>
// kernel: tpu_custom_call.1
$region0: #{tpu_custom_call.1}
  #allocation0 [shape = 'u32[]', space=smem, size = 0x4, offset = 0x4, fixed_abs, tag = 'smem constant byte address 0x4 - core index']
  #allocation1 [shape = 'u32[144,128]{1,0:T(1,128)}', space=vmem, size = 0x12000, scoped, tag = 'internal scratch']
  #allocation2 [shape = 'f32[1,1]{1,0:T(1,128)S(6)}', space=smem, size = 0x200, scoped, tag = 'scoped memory for tpu_custom_call.1']
  %s0 = inlined_call_operand.hbm [shape: bf16[16,768], index: 0, kind: input, shape index: {}]
  %s1 = inlined_call_operand.hbm [shape: f32[16,16], index: 1, kind: input, shape index: {}]
  %s2 = inlined_call_operand.hbm [shape: bf16[768,768], index: 2, kind: input, shape index: {}]
  %s3 = inlined_call_operand.hbm [shape: f32[1,768], index: 3, kind: input, shape index: {}]
  %s4 = inlined_call_operand.hbm [shape: bf16[16,64], index: 4, kind: input, shape index: {}]
  %s5 = inlined_call_operand.hbm [shape: f32[1,64], index: 5, kind: input, shape index: {}]
  %s6 = inlined_call_operand.vmem [shape: bf16[64,32], index: 6, kind: input, shape index: {}]
  %s7 = inlined_call_operand.hbm [shape: f32[1,32], index: 7, kind: input, shape index: {}]
  %s8 = inlined_call_operand.hbm [shape: bf16[768,896], index: 8, kind: input, shape index: {}]
  %s9 = inlined_call_operand.hbm [shape: bf16[32,896], index: 9, kind: input, shape index: {}]
  %s10 = inlined_call_operand.hbm [shape: f32[1,896], index: 10, kind: input, shape index: {}]
  %s11 = inlined_call_operand.hbm [shape: bf16[896,512], index: 11, kind: input, shape index: {}]
  %s12 = inlined_call_operand.hbm [shape: f32[1,512], index: 12, kind: input, shape index: {}]
  %s13 = inlined_call_operand.hbm [shape: bf16[1,512], index: 13, kind: input, shape index: {}]
  %s14 = inlined_call_operand.<no memory space> [shape: f32[1,1], index: 14, kind: input, shape index: {}]
  %s15 = inlined_call_operand.vmem [shape: f32[16,1], index: 15, kind: output, shape index: {}]
  %s16 = sld [smem:[#allocation0]]
  $region122: #{tpu_custom_call.1} parent=0
    _
  %s18 = ssub.s32 1, %s16
  %s19 = scalar_select 0, %s18, %s16
  %20 = sst [smem:[#allocation2]] %s14
  $region1: #{tpu_custom_call.1} parent=0
    #allocation3 [shape = 'u8[24576]{0}', space=vmem, size = 0x6000, scoped, tag = 'input window, operand 0, single buffered']
    #allocation4 [shape = 's32[1]{0}', space=sflag, size = 0x4, scoped, tag = 'scoped memory for tpu_custom_call.1']
    #allocation5 [shape = 'u8[8192]{0}', space=vmem, size = 0x2000, scoped, tag = 'input window, operand 1, single buffered']
    #allocation6 [shape = 's32[1]{0}', space=sflag, size = 0x4, scoped, tag = 'scoped memory for tpu_custom_call.1']
    #allocation7 [shape = 'u8[1179648]{0}', space=vmem, size = 0x120000, scoped, tag = 'input window, operand 2, single buffered']
    #allocation8 [shape = 'u8[3072]{0}', space=vmem, size = 0xc00, scoped, tag = 'input window, operand 3, single buffered']
    #allocation9 [shape = 's32[1]{0}', space=sflag, size = 0x4, scoped, tag = 'scoped memory for tpu_custom_call.1']
    #allocation10 [shape = 'u8[4096]{0}', space=vmem, size = 0x1000, scoped, tag = 'input window, operand 4, single buffered']
    #allocation11 [shape = 'u8[512]{0}', space=vmem, size = 0x400, scoped, tag = 'input window, operand 5, single buffered']
    #allocation12 [shape = 's32[1]{0}', space=sflag, size = 0x4, scoped, tag = 'scoped memory for tpu_custom_call.1']
    #allocation13 [shape = 'u8[512]{0}', space=vmem, size = 0x400, scoped, tag = 'input window, operand 7, single buffered']
    #allocation14 [shape = 'u8[1376256]{0}', space=vmem, size = 0x150000, scoped, tag = 'input window, operand 8, single buffered']
    #allocation15 [shape = 's32[1]{0}', space=sflag, size = 0x4, scoped, tag = 'scoped memory for tpu_custom_call.1']
    #allocation16 [shape = 'u8[57344]{0}', space=vmem, size = 0xe000, scoped, tag = 'input window, operand 9, single buffered']
    #allocation17 [shape = 'u8[3584]{0}', space=vmem, size = 0x1000, scoped, tag = 'input window, operand 10, single buffered']
    #allocation18 [shape = 's32[1]{0}', space=sflag, size = 0x4, scoped, tag = 'scoped memory for tpu_custom_call.1']
    #allocation19 [shape = 'u8[917504]{0}', space=vmem, size = 0xe0000, scoped, tag = 'input window, operand 11, single buffered']
    #allocation20 [shape = 'u8[2048]{0}', space=vmem, size = 0x800, scoped, tag = 'input window, operand 12, single buffered']
    #allocation21 [shape = 's32[1]{0}', space=sflag, size = 0x4, scoped, tag = 'scoped memory for tpu_custom_call.1']
    #allocation22 [shape = 'u8[2048]{0}', space=vmem, size = 0x800, scoped, tag = 'input window, operand 13, single buffered']
    %21 = vsyncpa [#allocation4], 0
    %22 = vsyncpa [#allocation6], 0
    %23 = vsyncpa [#allocation9], 0
    %24 = vsyncpa [#allocation12], 0
    %25 = vsyncpa [#allocation15], 0
    %26 = vsyncpa [#allocation18], 0
    %27 = vsyncpa [#allocation21], 0
    // Predicated region
    $region2: #{tpu_custom_call.1} parent=1 // pred_check
      _
    $region3: #{tpu_custom_call.1} parent=1 // pred_check_branch
      %29 = sbr.rel (0) target = $region5
    $region4: #{tpu_custom_call.1} parent=1 // pred_region
      %s31 = ssub.s32 768, 768
      %32 = vsyncadd [#allocation4], %s31
      %s33 = sshll.u32 [#allocation3], 4
      %s34 = int_to_ptr.vmem [resolvable:$true] %s33
      %39 = dma.hbm_to_vmem [thread:$0]  %s0, 768, %s34, [#allocation4], 384, 384, 24
    $region5: #{tpu_custom_call.1} parent=1 // pred_fallthru
      _
    // Predicated region
    $region6: #{tpu_custom_call.1} parent=1 // pred_check
      _
    $region7: #{tpu_custom_call.1} parent=1 // pred_check_branch
      %41 = sbr.rel (0) target = $region9
    $region8: #{tpu_custom_call.1} parent=1 // pred_region
      %s43 = ssub.s32 256, 256
      %44 = vsyncadd [#allocation6], %s43
      %s45 = sshll.u32 [#allocation5], 4
      %s46 = int_to_ptr.vmem [resolvable:$true] %s45
      %51 = dma.hbm_to_vmem [thread:$0]  %s1, 256, %s46, [#allocation6], 128, 128, 8
    $region9: #{tpu_custom_call.1} parent=1 // pred_fallthru
      _
    // Predicated region
    $region10: #{tpu_custom_call.1} parent=1 // pred_check
      _
    $region11: #{tpu_custom_call.1} parent=1 // pred_check_branch
      %53 = sbr.rel (0) target = $region13
    $region12: #{tpu_custom_call.1} parent=1 // pred_region
      %s55 = ssub.s32 36864, 36864
      %56 = vsyncadd [#allocation6], %s55
      %s57 = sshll.u32 [#allocation7], 4
      %s58 = int_to_ptr.vmem [resolvable:$true] %s57
      %63 = dma.hbm_to_vmem [thread:$0]  %s2, 36864, %s58, [#allocation6], 384, 384, 24
    $region13: #{tpu_custom_call.1} parent=1 // pred_fallthru
      _
    // Predicated region
    $region14: #{tpu_custom_call.1} parent=1 // pred_check
      _
    $region15: #{tpu_custom_call.1} parent=1 // pred_check_branch
      %65 = sbr.rel (0) target = $region17
    $region16: #{tpu_custom_call.1} parent=1 // pred_region
      %s67 = ssub.s32 96, 96
      %68 = vsyncadd [#allocation9], %s67
      %s70 = sshll.u32 [#allocation8], 4
      %s71 = int_to_ptr.vmem [resolvable:$true] %s70
      %73 = dma.hbm_to_vmem [thread:$0]  %s3, 96, %s71, [#allocation9]
    $region17: #{tpu_custom_call.1} parent=1 // pred_fallthru
      _
    // Predicated region
    $region18: #{tpu_custom_call.1} parent=1 // pred_check
      _
    $region19: #{tpu_custom_call.1} parent=1 // pred_check_branch
      %75 = sbr.rel (0) target = $region21
    $region20: #{tpu_custom_call.1} parent=1 // pred_region
      %s77 = ssub.s32 128, 128
      %78 = vsyncadd [#allocation9], %s77
      %s79 = sshll.u32 [#allocation10], 4
      %s80 = int_to_ptr.vmem [resolvable:$true] %s79
      %85 = dma.hbm_to_vmem [thread:$0]  %s4, 128, %s80, [#allocation9], 64, 64, 4
    $region21: #{tpu_custom_call.1} parent=1 // pred_fallthru
      _
    // Predicated region
    $region22: #{tpu_custom_call.1} parent=1 // pred_check
      _
    $region23: #{tpu_custom_call.1} parent=1 // pred_check_branch
      %87 = sbr.rel (0) target = $region25
    $region24: #{tpu_custom_call.1} parent=1 // pred_region
      %s89 = ssub.s32 16, 16
      %90 = vsyncadd [#allocation12], %s89
      %s92 = sshll.u32 [#allocation11], 4
      %s93 = int_to_ptr.vmem [resolvable:$true] %s92
      %95 = dma.hbm_to_vmem [thread:$0]  %s5, 16, %s93, [#allocation12]
    $region25: #{tpu_custom_call.1} parent=1 // pred_fallthru
      _
    // Predicated region
    $region26: #{tpu_custom_call.1} parent=1 // pred_check
      _
    $region27: #{tpu_custom_call.1} parent=1 // pred_check_branch
      %97 = sbr.rel (0) target = $region29
    $region28: #{tpu_custom_call.1} parent=1 // pred_region
      _
    $region29: #{tpu_custom_call.1} parent=1 // pred_fallthru
      _
    // Predicated region
    $region30: #{tpu_custom_call.1} parent=1 // pred_check
      _
    $region31: #{tpu_custom_call.1} parent=1 // pred_check_branch
      %99 = sbr.rel (0) target = $region33
    $region32: #{tpu_custom_call.1} parent=1 // pred_region
      %s101 = ssub.s32 16, 16
      %102 = vsyncadd [#allocation12], %s101
      %s104 = sshll.u32 [#allocation13], 4
      %s105 = int_to_ptr.vmem [resolvable:$true] %s104
      %107 = dma.hbm_to_vmem [thread:$0]  %s7, 16, %s105, [#allocation12]
    $region33: #{tpu_custom_call.1} parent=1 // pred_fallthru
      _
    // Predicated region
    $region34: #{tpu_custom_call.1} parent=1 // pred_check
      _
    $region35: #{tpu_custom_call.1} parent=1 // pred_check_branch
      %109 = sbr.rel (0) target = $region37
    $region36: #{tpu_custom_call.1} parent=1 // pred_region
      %s111 = ssub.s32 43008, 43008
      %112 = vsyncadd [#allocation15], %s111
      %s113 = sshll.u32 [#allocation14], 4
      %s114 = int_to_ptr.vmem [resolvable:$true] %s113
      %119 = dma.hbm_to_vmem [thread:$0]  %s8, 43008, %s114, [#allocation15], 448, 448, 28
    $region37: #{tpu_custom_call.1} parent=1 // pred_fallthru
      _
    // Predicated region
    $region38: #{tpu_custom_call.1} parent=1 // pred_check
      _
    $region39: #{tpu_custom_call.1} parent=1 // pred_check_branch
      %121 = sbr.rel (0) target = $region41
    $region40: #{tpu_custom_call.1} parent=1 // pred_region
      %s123 = ssub.s32 1792, 1792
      %124 = vsyncadd [#allocation15], %s123
      %s125 = sshll.u32 [#allocation16], 4
      %s126 = int_to_ptr.vmem [resolvable:$true] %s125
      %131 = dma.hbm_to_vmem [thread:$0]  %s9, 1792, %s126, [#allocation15], 448, 448, 28
    $region41: #{tpu_custom_call.1} parent=1 // pred_fallthru
      _
    // Predicated region
    $region42: #{tpu_custom_call.1} parent=1 // pred_check
      _
    $region43: #{tpu_custom_call.1} parent=1 // pred_check_branch
      %133 = sbr.rel (0) target = $region45
    $region44: #{tpu_custom_call.1} parent=1 // pred_region
      %s135 = ssub.s32 112, 112
      %136 = vsyncadd [#allocation18], %s135
      %s138 = sshll.u32 [#allocation17], 4
      %s139 = int_to_ptr.vmem [resolvable:$true] %s138
      %141 = dma.hbm_to_vmem [thread:$0]  %s10, 112, %s139, [#allocation18]
    $region45: #{tpu_custom_call.1} parent=1 // pred_fallthru
      _
    // Predicated region
    $region46: #{tpu_custom_call.1} parent=1 // pred_check
      _
    $region47: #{tpu_custom_call.1} parent=1 // pred_check_branch
      %143 = sbr.rel (0) target = $region49
    $region48: #{tpu_custom_call.1} parent=1 // pred_region
      %s145 = ssub.s32 28672, 28672
      %146 = vsyncadd [#allocation18], %s145
      %s147 = sshll.u32 [#allocation19], 4
      %s148 = int_to_ptr.vmem [resolvable:$true] %s147
      %153 = dma.hbm_to_vmem [thread:$0]  %s11, 28672, %s148, [#allocation18], 256, 256, 16
    $region49: #{tpu_custom_call.1} parent=1 // pred_fallthru
      _
    // Predicated region
    $region50: #{tpu_custom_call.1} parent=1 // pred_check
      _
    $region51: #{tpu_custom_call.1} parent=1 // pred_check_branch
      %155 = sbr.rel (0) target = $region53
    $region52: #{tpu_custom_call.1} parent=1 // pred_region
      %s157 = ssub.s32 64, 64
      %158 = vsyncadd [#allocation21], %s157
      %s160 = sshll.u32 [#allocation20], 4
      %s161 = int_to_ptr.vmem [resolvable:$true] %s160
      %163 = dma.hbm_to_vmem [thread:$0]  %s12, 64, %s161, [#allocation21]
    $region53: #{tpu_custom_call.1} parent=1 // pred_fallthru
      _
    // Predicated region
    $region54: #{tpu_custom_call.1} parent=1 // pred_check
      _
    $region55: #{tpu_custom_call.1} parent=1 // pred_check_branch
      %165 = sbr.rel (0) target = $region57
    $region56: #{tpu_custom_call.1} parent=1 // pred_region
      %s167 = ssub.s32 64, 64
      %168 = vsyncadd [#allocation21], %s167
      %s170 = sshll.u32 [#allocation22], 4
      %s171 = int_to_ptr.vmem [resolvable:$true] %s170
      %173 = dma.hbm_to_vmem [thread:$0]  %s13, 64, %s171, [#allocation21]
    $region57: #{tpu_custom_call.1} parent=1 // pred_fallthru
      _
    // Predicated region
    $region58: #{tpu_custom_call.1} parent=1 // pred_check
      _
    $region59: #{tpu_custom_call.1} parent=1 // pred_check_branch
      %175 = sbr.rel (0) target = $region61
    $region60: #{tpu_custom_call.1} parent=1 // pred_region
      _
    $region61: #{tpu_custom_call.1} parent=1 // pred_fallthru
      _
    // Predicated region
    $region62: #{tpu_custom_call.1} parent=1 // pred_check
      _
    $region63: #{tpu_custom_call.1} parent=1 // pred_check_branch
      %177 = sbr.rel (0) target = $region65
    $region64: #{tpu_custom_call.1} parent=1 // pred_region
      %178 = dma.done [#allocation4], 768
    $region65: #{tpu_custom_call.1} parent=1 // pred_fallthru
      _
    // Predicated region
    $region66: #{tpu_custom_call.1} parent=1 // pred_check
      _
    $region67: #{tpu_custom_call.1} parent=1 // pred_check_branch
      %180 = sbr.rel (0) target = $region69
    $region68: #{tpu_custom_call.1} parent=1 // pred_region
      %181 = dma.done [#allocation6], 256
    $region69: #{tpu_custom_call.1} parent=1 // pred_fallthru
      _
    // Predicated region
    $region70: #{tpu_custom_call.1} parent=1 // pred_check
      _
    $region71: #{tpu_custom_call.1} parent=1 // pred_check_branch
      %183 = sbr.rel (0) target = $region73
    $region72: #{tpu_custom_call.1} parent=1 // pred_region
      %184 = dma.done [#allocation6], 36864
    $region73: #{tpu_custom_call.1} parent=1 // pred_fallthru
      _
    // Predicated region
    $region74: #{tpu_custom_call.1} parent=1 // pred_check
      _
    $region75: #{tpu_custom_call.1} parent=1 // pred_check_branch
      %186 = sbr.rel (0) target = $region77
    $region76: #{tpu_custom_call.1} parent=1 // pred_region
      %187 = dma.done [#allocation9], 96
    $region77: #{tpu_custom_call.1} parent=1 // pred_fallthru
      _
    // Predicated region
    $region78: #{tpu_custom_call.1} parent=1 // pred_check
      _
    $region79: #{tpu_custom_call.1} parent=1 // pred_check_branch
      %189 = sbr.rel (0) target = $region81
    $region80: #{tpu_custom_call.1} parent=1 // pred_region
      %190 = dma.done [#allocation9], 128
    $region81: #{tpu_custom_call.1} parent=1 // pred_fallthru
      _
    // Predicated region
    $region82: #{tpu_custom_call.1} parent=1 // pred_check
      _
    $region83: #{tpu_custom_call.1} parent=1 // pred_check_branch
      %192 = sbr.rel (0) target = $region85
    $region84: #{tpu_custom_call.1} parent=1 // pred_region
      %193 = dma.done [#allocation12], 16
    $region85: #{tpu_custom_call.1} parent=1 // pred_fallthru
      _
    // Predicated region
    $region86: #{tpu_custom_call.1} parent=1 // pred_check
      _
    $region87: #{tpu_custom_call.1} parent=1 // pred_check_branch
      %195 = sbr.rel (0) target = $region89
    $region88: #{tpu_custom_call.1} parent=1 // pred_region
      %196 = dma.done [#allocation12], 16
    $region89: #{tpu_custom_call.1} parent=1 // pred_fallthru
      _
    // Predicated region
    $region90: #{tpu_custom_call.1} parent=1 // pred_check
      _
    $region91: #{tpu_custom_call.1} parent=1 // pred_check_branch
      %198 = sbr.rel (0) target = $region93
    $region92: #{tpu_custom_call.1} parent=1 // pred_region
      %199 = dma.done [#allocation15], 43008
    $region93: #{tpu_custom_call.1} parent=1 // pred_fallthru
      _
    // Predicated region
    $region94: #{tpu_custom_call.1} parent=1 // pred_check
      _
    $region95: #{tpu_custom_call.1} parent=1 // pred_check_branch
      %201 = sbr.rel (0) target = $region97
    $region96: #{tpu_custom_call.1} parent=1 // pred_region
      %202 = dma.done [#allocation15], 1792
    $region97: #{tpu_custom_call.1} parent=1 // pred_fallthru
      _
    // Predicated region
    $region98: #{tpu_custom_call.1} parent=1 // pred_check
      _
    $region99: #{tpu_custom_call.1} parent=1 // pred_check_branch
      %204 = sbr.rel (0) target = $region101
    $region100: #{tpu_custom_call.1} parent=1 // pred_region
      %205 = dma.done [#allocation18], 112
    $region101: #{tpu_custom_call.1} parent=1 // pred_fallthru
      _
    // Predicated region
    $region102: #{tpu_custom_call.1} parent=1 // pred_check
      _
    $region103: #{tpu_custom_call.1} parent=1 // pred_check_branch
      %207 = sbr.rel (0) target = $region105
    $region104: #{tpu_custom_call.1} parent=1 // pred_region
      %208 = dma.done [#allocation18], 28672
    $region105: #{tpu_custom_call.1} parent=1 // pred_fallthru
      _
    // Predicated region
    $region106: #{tpu_custom_call.1} parent=1 // pred_check
      _
    $region107: #{tpu_custom_call.1} parent=1 // pred_check_branch
      %210 = sbr.rel (0) target = $region109
    $region108: #{tpu_custom_call.1} parent=1 // pred_region
      %211 = dma.done [#allocation21], 64
    $region109: #{tpu_custom_call.1} parent=1 // pred_fallthru
      _
    // Predicated region
    $region110: #{tpu_custom_call.1} parent=1 // pred_check
      _
    $region111: #{tpu_custom_call.1} parent=1 // pred_check_branch
      %213 = sbr.rel (0) target = $region113
    $region112: #{tpu_custom_call.1} parent=1 // pred_region
      %214 = dma.done [#allocation21], 64
    $region113: #{tpu_custom_call.1} parent=1 // pred_fallthru
      _
    %v216 = vld [vmem:[#allocation3] sm:$0xff]
    %v217 = vld [vmem:[#allocation3 + $0x8] sm:$0xff]
    %v218 = vld [vmem:[#allocation3 + $0x10] sm:$0xff]
    %v219 = vld [vmem:[#allocation3 + $0x18] sm:$0xff]
    %v220 = vld [vmem:[#allocation3 + $0x20] sm:$0xff]
    %v221 = vld [vmem:[#allocation3 + $0x28] sm:$0xff]
    %v222 = vld [vmem:[#allocation7] sm:$0xff]
    %v223 = vld [vmem:[#allocation7 + $0x8] sm:$0xff]
    %v224 = vld [vmem:[#allocation7 + $0x10] sm:$0xff]
    %v225 = vld [vmem:[#allocation7 + $0x18] sm:$0xff]
    %v226 = vld [vmem:[#allocation7 + $0x20] sm:$0xff]
    %v227 = vld [vmem:[#allocation7 + $0x28] sm:$0xff]
    %v228 = vld [vmem:[#allocation7 + $0x30] sm:$0xff]
    %v229 = vld [vmem:[#allocation7 + $0x38] sm:$0xff]
    %v230 = vld [vmem:[#allocation7 + $0x40] sm:$0xff]
    %v231 = vld [vmem:[#allocation7 + $0x48] sm:$0xff]
    %v232 = vld [vmem:[#allocation7 + $0x50] sm:$0xff]
    %v233 = vld [vmem:[#allocation7 + $0x58] sm:$0xff]
    %v234 = vld [vmem:[#allocation7 + $0x60] sm:$0xff]
    %v235 = vld [vmem:[#allocation7 + $0x68] sm:$0xff]
    %v236 = vld [vmem:[#allocation7 + $0x70] sm:$0xff]
    %v237 = vld [vmem:[#allocation7 + $0x78] sm:$0xff]
    %v238 = vld [vmem:[#allocation7 + $0x80] sm:$0xff]
    %v239 = vld [vmem:[#allocation7 + $0x88] sm:$0xff]
    %v240 = vld [vmem:[#allocation7 + $0x90] sm:$0xff]
    %v241 = vld [vmem:[#allocation7 + $0x98] sm:$0xff]
    %v242 = vld [vmem:[#allocation7 + $0xa0] sm:$0xff]
    %v243 = vld [vmem:[#allocation7 + $0xa8] sm:$0xff]
    %v244 = vld [vmem:[#allocation7 + $0xb0] sm:$0xff]
    %v245 = vld [vmem:[#allocation7 + $0xb8] sm:$0xff]
    %v246 = vld [vmem:[#allocation7 + $0xc0] sm:$0xff]
    %v247 = vld [vmem:[#allocation7 + $0xc8] sm:$0xff]
    %v248 = vld [vmem:[#allocation7 + $0xd0] sm:$0xff]
    %v249 = vld [vmem:[#allocation7 + $0xd8] sm:$0xff]
    %v250 = vld [vmem:[#allocation7 + $0xe0] sm:$0xff]
    %v251 = vld [vmem:[#allocation7 + $0xe8] sm:$0xff]
    %v252 = vld [vmem:[#allocation7 + $0xf0] sm:$0xff]
    %v253 = vld [vmem:[#allocation7 + $0xf8] sm:$0xff]
    %v254 = vld [vmem:[#allocation7 + $0x100] sm:$0xff]
    %v255 = vld [vmem:[#allocation7 + $0x108] sm:$0xff]
    %v256 = vld [vmem:[#allocation7 + $0x110] sm:$0xff]
    %v257 = vld [vmem:[#allocation7 + $0x118] sm:$0xff]
    %v258 = vld [vmem:[#allocation7 + $0x120] sm:$0xff]
    %v259 = vld [vmem:[#allocation7 + $0x128] sm:$0xff]
    %v260 = vld [vmem:[#allocation7 + $0x130] sm:$0xff]
    %v261 = vld [vmem:[#allocation7 + $0x138] sm:$0xff]
    %v262 = vld [vmem:[#allocation7 + $0x140] sm:$0xff]
    %v263 = vld [vmem:[#allocation7 + $0x148] sm:$0xff]
    %v264 = vld [vmem:[#allocation7 + $0x150] sm:$0xff]
    %v265 = vld [vmem:[#allocation7 + $0x158] sm:$0xff]
    %v266 = vld [vmem:[#allocation7 + $0x160] sm:$0xff]
    %v267 = vld [vmem:[#allocation7 + $0x168] sm:$0xff]
    %v268 = vld [vmem:[#allocation7 + $0x170] sm:$0xff]
    %v269 = vld [vmem:[#allocation7 + $0x178] sm:$0xff]
    %v270 = vld [vmem:[#allocation7 + $0x180] sm:$0xff]
    %v271 = vld [vmem:[#allocation7 + $0x188] sm:$0xff]
    %v272 = vld [vmem:[#allocation7 + $0x190] sm:$0xff]
    %v273 = vld [vmem:[#allocation7 + $0x198] sm:$0xff]
    %v274 = vld [vmem:[#allocation7 + $0x1a0] sm:$0xff]
    %v275 = vld [vmem:[#allocation7 + $0x1a8] sm:$0xff]
    %v276 = vld [vmem:[#allocation7 + $0x1b0] sm:$0xff]
    %v277 = vld [vmem:[#allocation7 + $0x1b8] sm:$0xff]
    %v278 = vld [vmem:[#allocation7 + $0x1c0] sm:$0xff]
    %v279 = vld [vmem:[#allocation7 + $0x1c8] sm:$0xff]
    %v280 = vld [vmem:[#allocation7 + $0x1d0] sm:$0xff]
    %v281 = vld [vmem:[#allocation7 + $0x1d8] sm:$0xff]
    %v282 = vld [vmem:[#allocation7 + $0x1e0] sm:$0xff]
    %v283 = vld [vmem:[#allocation7 + $0x1e8] sm:$0xff]
    %v284 = vld [vmem:[#allocation7 + $0x1f0] sm:$0xff]
    %v285 = vld [vmem:[#allocation7 + $0x1f8] sm:$0xff]
    %v286 = vld [vmem:[#allocation7 + $0x200] sm:$0xff]
    %v287 = vld [vmem:[#allocation7 + $0x208] sm:$0xff]
    %v288 = vld [vmem:[#allocation7 + $0x210] sm:$0xff]
    %v289 = vld [vmem:[#allocation7 + $0x218] sm:$0xff]
    %v290 = vld [vmem:[#allocation7 + $0x220] sm:$0xff]
    %v291 = vld [vmem:[#allocation7 + $0x228] sm:$0xff]
    %v292 = vld [vmem:[#allocation7 + $0x230] sm:$0xff]
    %v293 = vld [vmem:[#allocation7 + $0x238] sm:$0xff]
    %v294 = vld [vmem:[#allocation7 + $0x240] sm:$0xff]
    %v295 = vld [vmem:[#allocation7 + $0x248] sm:$0xff]
    %v296 = vld [vmem:[#allocation7 + $0x250] sm:$0xff]
    %v297 = vld [vmem:[#allocation7 + $0x258] sm:$0xff]
    %v298 = vld [vmem:[#allocation7 + $0x260] sm:$0xff]
    %v299 = vld [vmem:[#allocation7 + $0x268] sm:$0xff]
    %v300 = vld [vmem:[#allocation7 + $0x270] sm:$0xff]
    %v301 = vld [vmem:[#allocation7 + $0x278] sm:$0xff]
    %v302 = vld [vmem:[#allocation7 + $0x280] sm:$0xff]
    %v303 = vld [vmem:[#allocation7 + $0x288] sm:$0xff]
    %v304 = vld [vmem:[#allocation7 + $0x290] sm:$0xff]
    %v305 = vld [vmem:[#allocation7 + $0x298] sm:$0xff]
    %v306 = vld [vmem:[#allocation7 + $0x2a0] sm:$0xff]
    %v307 = vld [vmem:[#allocation7 + $0x2a8] sm:$0xff]
    %v308 = vld [vmem:[#allocation7 + $0x2b0] sm:$0xff]
    %v309 = vld [vmem:[#allocation7 + $0x2b8] sm:$0xff]
    %v310 = vld [vmem:[#allocation7 + $0x2c0] sm:$0xff]
    %v311 = vld [vmem:[#allocation7 + $0x2c8] sm:$0xff]
    %v312 = vld [vmem:[#allocation7 + $0x2d0] sm:$0xff]
    %v313 = vld [vmem:[#allocation7 + $0x2d8] sm:$0xff]
    %v314 = vld [vmem:[#allocation7 + $0x2e0] sm:$0xff]
    %v315 = vld [vmem:[#allocation7 + $0x2e8] sm:$0xff]
    %v316 = vld [vmem:[#allocation7 + $0x2f0] sm:$0xff]
    %v317 = vld [vmem:[#allocation7 + $0x2f8] sm:$0xff]
    %v318 = vld [vmem:[#allocation7 + $0x300] sm:$0xff]
    %v319 = vld [vmem:[#allocation7 + $0x308] sm:$0xff]
    %v320 = vld [vmem:[#allocation7 + $0x310] sm:$0xff]
    %v321 = vld [vmem:[#allocation7 + $0x318] sm:$0xff]
    %v322 = vld [vmem:[#allocation7 + $0x320] sm:$0xff]
    %v323 = vld [vmem:[#allocation7 + $0x328] sm:$0xff]
    %v324 = vld [vmem:[#allocation7 + $0x330] sm:$0xff]
    %v325 = vld [vmem:[#allocation7 + $0x338] sm:$0xff]
    %v326 = vld [vmem:[#allocation7 + $0x340] sm:$0xff]
    %v327 = vld [vmem:[#allocation7 + $0x348] sm:$0xff]
    %v328 = vld [vmem:[#allocation7 + $0x350] sm:$0xff]
    %v329 = vld [vmem:[#allocation7 + $0x358] sm:$0xff]
    %v330 = vld [vmem:[#allocation7 + $0x360] sm:$0xff]
    %v331 = vld [vmem:[#allocation7 + $0x368] sm:$0xff]
    %v332 = vld [vmem:[#allocation7 + $0x370] sm:$0xff]
    %v333 = vld [vmem:[#allocation7 + $0x378] sm:$0xff]
    %v334 = vld [vmem:[#allocation7 + $0x380] sm:$0xff]
    %v335 = vld [vmem:[#allocation7 + $0x388] sm:$0xff]
    %v336 = vld [vmem:[#allocation7 + $0x390] sm:$0xff]
    %v337 = vld [vmem:[#allocation7 + $0x398] sm:$0xff]
    %v338 = vld [vmem:[#allocation7 + $0x3a0] sm:$0xff]
    %v339 = vld [vmem:[#allocation7 + $0x3a8] sm:$0xff]
    %v340 = vld [vmem:[#allocation7 + $0x3b0] sm:$0xff]
    %v341 = vld [vmem:[#allocation7 + $0x3b8] sm:$0xff]
    %v342 = vld [vmem:[#allocation7 + $0x3c0] sm:$0xff]
    %v343 = vld [vmem:[#allocation7 + $0x3c8] sm:$0xff]
    %v344 = vld [vmem:[#allocation7 + $0x3d0] sm:$0xff]
    %v345 = vld [vmem:[#allocation7 + $0x3d8] sm:$0xff]
    %v346 = vld [vmem:[#allocation7 + $0x3e0] sm:$0xff]
    %v347 = vld [vmem:[#allocation7 + $0x3e8] sm:$0xff]
    %v348 = vld [vmem:[#allocation7 + $0x3f0] sm:$0xff]
    %v349 = vld [vmem:[#allocation7 + $0x3f8] sm:$0xff]
    %v350 = vld [vmem:[#allocation7 + $0x400] sm:$0xff]
    %v351 = vld [vmem:[#allocation7 + $0x408] sm:$0xff]
    %v352 = vld [vmem:[#allocation7 + $0x410] sm:$0xff]
    %v353 = vld [vmem:[#allocation7 + $0x418] sm:$0xff]
    %v354 = vld [vmem:[#allocation7 + $0x420] sm:$0xff]
    %v355 = vld [vmem:[#allocation7 + $0x428] sm:$0xff]
    %v356 = vld [vmem:[#allocation7 + $0x430] sm:$0xff]
    %v357 = vld [vmem:[#allocation7 + $0x438] sm:$0xff]
    %v358 = vld [vmem:[#allocation7 + $0x440] sm:$0xff]
    %v359 = vld [vmem:[#allocation7 + $0x448] sm:$0xff]
    %v360 = vld [vmem:[#allocation7 + $0x450] sm:$0xff]
    %v361 = vld [vmem:[#allocation7 + $0x458] sm:$0xff]
    %v362 = vld [vmem:[#allocation7 + $0x460] sm:$0xff]
    %v363 = vld [vmem:[#allocation7 + $0x468] sm:$0xff]
    %v364 = vld [vmem:[#allocation7 + $0x470] sm:$0xff]
    %v365 = vld [vmem:[#allocation7 + $0x478] sm:$0xff]
    %v366 = vld [vmem:[#allocation7 + $0x480] sm:$0xff]
    %v367 = vld [vmem:[#allocation7 + $0x488] sm:$0xff]
    %v368 = vld [vmem:[#allocation7 + $0x490] sm:$0xff]
    %v369 = vld [vmem:[#allocation7 + $0x498] sm:$0xff]
    %v370 = vld [vmem:[#allocation7 + $0x4a0] sm:$0xff]
    %v371 = vld [vmem:[#allocation7 + $0x4a8] sm:$0xff]
    %v372 = vld [vmem:[#allocation7 + $0x4b0] sm:$0xff]
    %v373 = vld [vmem:[#allocation7 + $0x4b8] sm:$0xff]
    %v374 = vld [vmem:[#allocation7 + $0x4c0] sm:$0xff]
    %v375 = vld [vmem:[#allocation7 + $0x4c8] sm:$0xff]
    %v376 = vld [vmem:[#allocation7 + $0x4d0] sm:$0xff]
    %v377 = vld [vmem:[#allocation7 + $0x4d8] sm:$0xff]
    %v378 = vld [vmem:[#allocation7 + $0x4e0] sm:$0xff]
    %v379 = vld [vmem:[#allocation7 + $0x4e8] sm:$0xff]
    %v380 = vld [vmem:[#allocation7 + $0x4f0] sm:$0xff]
    %v381 = vld [vmem:[#allocation7 + $0x4f8] sm:$0xff]
    %v382 = vld [vmem:[#allocation7 + $0x500] sm:$0xff]
    %v383 = vld [vmem:[#allocation7 + $0x508] sm:$0xff]
    %v384 = vld [vmem:[#allocation7 + $0x510] sm:$0xff]
    %v385 = vld [vmem:[#allocation7 + $0x518] sm:$0xff]
    %v386 = vld [vmem:[#allocation7 + $0x520] sm:$0xff]
    %v387 = vld [vmem:[#allocation7 + $0x528] sm:$0xff]
    %v388 = vld [vmem:[#allocation7 + $0x530] sm:$0xff]
    %v389 = vld [vmem:[#allocation7 + $0x538] sm:$0xff]
    %v390 = vld [vmem:[#allocation7 + $0x540] sm:$0xff]
    %v391 = vld [vmem:[#allocation7 + $0x548] sm:$0xff]
    %v392 = vld [vmem:[#allocation7 + $0x550] sm:$0xff]
    %v393 = vld [vmem:[#allocation7 + $0x558] sm:$0xff]
    %v394 = vld [vmem:[#allocation7 + $0x560] sm:$0xff]
    %v395 = vld [vmem:[#allocation7 + $0x568] sm:$0xff]
    %v396 = vld [vmem:[#allocation7 + $0x570] sm:$0xff]
    %v397 = vld [vmem:[#allocation7 + $0x578] sm:$0xff]
    %v398 = vld [vmem:[#allocation7 + $0x580] sm:$0xff]
    %v399 = vld [vmem:[#allocation7 + $0x588] sm:$0xff]
    %v400 = vld [vmem:[#allocation7 + $0x590] sm:$0xff]
    %v401 = vld [vmem:[#allocation7 + $0x598] sm:$0xff]
    %v402 = vld [vmem:[#allocation7 + $0x5a0] sm:$0xff]
    %v403 = vld [vmem:[#allocation7 + $0x5a8] sm:$0xff]
    %v404 = vld [vmem:[#allocation7 + $0x5b0] sm:$0xff]
    %v405 = vld [vmem:[#allocation7 + $0x5b8] sm:$0xff]
    %v406 = vld [vmem:[#allocation7 + $0x5c0] sm:$0xff]
    %v407 = vld [vmem:[#allocation7 + $0x5c8] sm:$0xff]
    %v408 = vld [vmem:[#allocation7 + $0x5d0] sm:$0xff]
    %v409 = vld [vmem:[#allocation7 + $0x5d8] sm:$0xff]
    %v410 = vld [vmem:[#allocation7 + $0x5e0] sm:$0xff]
    %v411 = vld [vmem:[#allocation7 + $0x5e8] sm:$0xff]
    %v412 = vld [vmem:[#allocation7 + $0x5f0] sm:$0xff]
    %v413 = vld [vmem:[#allocation7 + $0x5f8] sm:$0xff]
    %v414 = vld [vmem:[#allocation7 + $0x600] sm:$0xff]
    %v415 = vld [vmem:[#allocation7 + $0x608] sm:$0xff]
    %v416 = vld [vmem:[#allocation7 + $0x610] sm:$0xff]
    %v417 = vld [vmem:[#allocation7 + $0x618] sm:$0xff]
    %v418 = vld [vmem:[#allocation7 + $0x620] sm:$0xff]
    %v419 = vld [vmem:[#allocation7 + $0x628] sm:$0xff]
    %v420 = vld [vmem:[#allocation7 + $0x630] sm:$0xff]
    %v421 = vld [vmem:[#allocation7 + $0x638] sm:$0xff]
    %v422 = vld [vmem:[#allocation7 + $0x640] sm:$0xff]
    %v423 = vld [vmem:[#allocation7 + $0x648] sm:$0xff]
    %v424 = vld [vmem:[#allocation7 + $0x650] sm:$0xff]
    %v425 = vld [vmem:[#allocation7 + $0x658] sm:$0xff]
    %v426 = vld [vmem:[#allocation7 + $0x660] sm:$0xff]
    %v427 = vld [vmem:[#allocation7 + $0x668] sm:$0xff]
    %v428 = vld [vmem:[#allocation7 + $0x670] sm:$0xff]
    %v429 = vld [vmem:[#allocation7 + $0x678] sm:$0xff]
    %v430 = vld [vmem:[#allocation7 + $0x680] sm:$0xff]
    %v431 = vld [vmem:[#allocation7 + $0x688] sm:$0xff]
    %v432 = vld [vmem:[#allocation7 + $0x690] sm:$0xff]
    %v433 = vld [vmem:[#allocation7 + $0x698] sm:$0xff]
    %v434 = vld [vmem:[#allocation7 + $0x6a0] sm:$0xff]
    %v435 = vld [vmem:[#allocation7 + $0x6a8] sm:$0xff]
    %v436 = vld [vmem:[#allocation7 + $0x6b0] sm:$0xff]
    %v437 = vld [vmem:[#allocation7 + $0x6b8] sm:$0xff]
    %v438 = vld [vmem:[#allocation7 + $0x6c0] sm:$0xff]
    %v439 = vld [vmem:[#allocation7 + $0x6c8] sm:$0xff]
    %v440 = vld [vmem:[#allocation7 + $0x6d0] sm:$0xff]
    %v441 = vld [vmem:[#allocation7 + $0x6d8] sm:$0xff]
    %v442 = vld [vmem:[#allocation7 + $0x6e0] sm:$0xff]
    %v443 = vld [vmem:[#allocation7 + $0x6e8] sm:$0xff]
    %v444 = vld [vmem:[#allocation7 + $0x6f0] sm:$0xff]
    %v445 = vld [vmem:[#allocation7 + $0x6f8] sm:$0xff]
    %v446 = vld [vmem:[#allocation7 + $0x700] sm:$0xff]
    %v447 = vld [vmem:[#allocation7 + $0x708] sm:$0xff]
    %v448 = vld [vmem:[#allocation7 + $0x710] sm:$0xff]
    %v449 = vld [vmem:[#allocation7 + $0x718] sm:$0xff]
    %v450 = vld [vmem:[#allocation7 + $0x720] sm:$0xff]
    %v451 = vld [vmem:[#allocation7 + $0x728] sm:$0xff]
    %v452 = vld [vmem:[#allocation7 + $0x730] sm:$0xff]
    %v453 = vld [vmem:[#allocation7 + $0x738] sm:$0xff]
    %v454 = vld [vmem:[#allocation7 + $0x740] sm:$0xff]
    %v455 = vld [vmem:[#allocation7 + $0x748] sm:$0xff]
    %v456 = vld [vmem:[#allocation7 + $0x750] sm:$0xff]
    %v457 = vld [vmem:[#allocation7 + $0x758] sm:$0xff]
    %v458 = vld [vmem:[#allocation7 + $0x760] sm:$0xff]
    %v459 = vld [vmem:[#allocation7 + $0x768] sm:$0xff]
    %v460 = vld [vmem:[#allocation7 + $0x770] sm:$0xff]
    %v461 = vld [vmem:[#allocation7 + $0x778] sm:$0xff]
    %v462 = vld [vmem:[#allocation7 + $0x780] sm:$0xff]
    %v463 = vld [vmem:[#allocation7 + $0x788] sm:$0xff]
    %v464 = vld [vmem:[#allocation7 + $0x790] sm:$0xff]
    %v465 = vld [vmem:[#allocation7 + $0x798] sm:$0xff]
    %v466 = vld [vmem:[#allocation7 + $0x7a0] sm:$0xff]
    %v467 = vld [vmem:[#allocation7 + $0x7a8] sm:$0xff]
    %v468 = vld [vmem:[#allocation7 + $0x7b0] sm:$0xff]
    %v469 = vld [vmem:[#allocation7 + $0x7b8] sm:$0xff]
    %v470 = vld [vmem:[#allocation7 + $0x7c0] sm:$0xff]
    %v471 = vld [vmem:[#allocation7 + $0x7c8] sm:$0xff]
    %v472 = vld [vmem:[#allocation7 + $0x7d0] sm:$0xff]
    %v473 = vld [vmem:[#allocation7 + $0x7d8] sm:$0xff]
    %v474 = vld [vmem:[#allocation7 + $0x7e0] sm:$0xff]
    %v475 = vld [vmem:[#allocation7 + $0x7e8] sm:$0xff]
    %v476 = vld [vmem:[#allocation7 + $0x7f0] sm:$0xff]
    %v477 = vld [vmem:[#allocation7 + $0x7f8] sm:$0xff]
    %v478 = vld [vmem:[#allocation7 + $0x800] sm:$0xff]
    %v479 = vld [vmem:[#allocation7 + $0x808] sm:$0xff]
    %v480 = vld [vmem:[#allocation7 + $0x810] sm:$0xff]
    %v481 = vld [vmem:[#allocation7 + $0x818] sm:$0xff]
    %v482 = vld [vmem:[#allocation7 + $0x820] sm:$0xff]
    %v483 = vld [vmem:[#allocation7 + $0x828] sm:$0xff]
    %v484 = vld [vmem:[#allocation7 + $0x830] sm:$0xff]
    %v485 = vld [vmem:[#allocation7 + $0x838] sm:$0xff]
    %v486 = vld [vmem:[#allocation7 + $0x840] sm:$0xff]
    %v487 = vld [vmem:[#allocation7 + $0x848] sm:$0xff]
    %v488 = vld [vmem:[#allocation7 + $0x850] sm:$0xff]
    %v489 = vld [vmem:[#allocation7 + $0x858] sm:$0xff]
    %v490 = vld [vmem:[#allocation7 + $0x860] sm:$0xff]
    %v491 = vld [vmem:[#allocation7 + $0x868] sm:$0xff]
    %v492 = vld [vmem:[#allocation7 + $0x870] sm:$0xff]
    %v493 = vld [vmem:[#allocation7 + $0x878] sm:$0xff]
    %v494 = vld [vmem:[#allocation7 + $0x880] sm:$0xff]
    %v495 = vld [vmem:[#allocation7 + $0x888] sm:$0xff]
    %v496 = vld [vmem:[#allocation7 + $0x890] sm:$0xff]
    %v497 = vld [vmem:[#allocation7 + $0x898] sm:$0xff]
    %v498 = vld [vmem:[#allocation7 + $0x8a0] sm:$0xff]
    %v499 = vld [vmem:[#allocation7 + $0x8a8] sm:$0xff]
    %v500 = vld [vmem:[#allocation7 + $0x8b0] sm:$0xff]
    %v501 = vld [vmem:[#allocation7 + $0x8b8] sm:$0xff]
    %v502 = vld [vmem:[#allocation7 + $0x8c0] sm:$0xff]
    %v503 = vld [vmem:[#allocation7 + $0x8c8] sm:$0xff]
    %v504 = vld [vmem:[#allocation7 + $0x8d0] sm:$0xff]
    %v505 = vld [vmem:[#allocation7 + $0x8d8] sm:$0xff]
    %v506 = vld [vmem:[#allocation7 + $0x8e0] sm:$0xff]
    %v507 = vld [vmem:[#allocation7 + $0x8e8] sm:$0xff]
    %v508 = vld [vmem:[#allocation7 + $0x8f0] sm:$0xff]
    %v509 = vld [vmem:[#allocation7 + $0x8f8] sm:$0xff]
    %v510 = vld [vmem:[#allocation8] sm:$0x3f]
    %v512 = vlaneseq
    %v513 = vshrl.u32 %v512, 7
    %v514 = vsub.s32 0, %v513
    %v515 = vrot.slane %v510, %v514
    %v516 = vlaneseq
    %v517 = vshrl.u32 %v516, 7
    %v518 = vsub.s32 1, %v517
    %v519 = vrot.slane %v510, %v518
    %v520 = vlaneseq
    %v521 = vshrl.u32 %v520, 7
    %v522 = vsub.s32 2, %v521
    %v523 = vrot.slane %v510, %v522
    %v524 = vlaneseq
    %v525 = vshrl.u32 %v524, 7
    %v526 = vsub.s32 3, %v525
    %v527 = vrot.slane %v510, %v526
    %v528 = vlaneseq
    %v529 = vshrl.u32 %v528, 7
    %v530 = vsub.s32 4, %v529
    %v531 = vrot.slane %v510, %v530
    %v532 = vlaneseq
    %v533 = vshrl.u32 %v532, 7
    %v534 = vsub.s32 5, %v533
    %v535 = vrot.slane %v510, %v534
    %v548 = vunpack.c.l.b16 %v216
    %v549 = vunpack.c.h.b16 %v216
    %v550 = vunpack.c.l.b16 %v217
    %v551 = vunpack.c.h.b16 %v217
    %v552 = vunpack.c.l.b16 %v218
    %v553 = vunpack.c.h.b16 %v218
    %v554 = vunpack.c.l.b16 %v219
    %v555 = vunpack.c.h.b16 %v219
    %v556 = vunpack.c.l.b16 %v220
    %v557 = vunpack.c.h.b16 %v220
    %v558 = vunpack.c.l.b16 %v221
    %v559 = vunpack.c.h.b16 %v221
    %v560 = vpack.c.b16 %v554, %v548
    %v561 = vpack.c.b16 %v555, %v549
    %v562 = vpack.c.b16 %v556, %v550
    %v563 = vpack.c.b16 %v557, %v551
    %v564 = vpack.c.b16 %v558, %v552
    %v565 = vpack.c.b16 %v559, %v553
    %v860 = vunpack.c.l.b16 %v222
    %v861 = vunpack.c.h.b16 %v222
    %v862 = vunpack.c.l.b16 %v223
    %v863 = vunpack.c.h.b16 %v223
    %v864 = vunpack.c.l.b16 %v224
    %v865 = vunpack.c.h.b16 %v224
    %v866 = vunpack.c.l.b16 %v225
    %v867 = vunpack.c.h.b16 %v225
    %v868 = vunpack.c.l.b16 %v226
    %v869 = vunpack.c.h.b16 %v226
    %v870 = vunpack.c.l.b16 %v227
    %v871 = vunpack.c.h.b16 %v227
    %v872 = vunpack.c.l.b16 %v228
    %v873 = vunpack.c.h.b16 %v228
    %v874 = vunpack.c.l.b16 %v229
    %v875 = vunpack.c.h.b16 %v229
    %v876 = vunpack.c.l.b16 %v230
    %v877 = vunpack.c.h.b16 %v230
    %v878 = vunpack.c.l.b16 %v231
    %v879 = vunpack.c.h.b16 %v231
    %v880 = vunpack.c.l.b16 %v232
    %v881 = vunpack.c.h.b16 %v232
    %v882 = vunpack.c.l.b16 %v233
    %v883 = vunpack.c.h.b16 %v233
    %v884 = vunpack.c.l.b16 %v234
    %v885 = vunpack.c.h.b16 %v234
    %v886 = vunpack.c.l.b16 %v235
    %v887 = vunpack.c.h.b16 %v235
    %v888 = vunpack.c.l.b16 %v236
    %v889 = vunpack.c.h.b16 %v236
    %v890 = vunpack.c.l.b16 %v237
    %v891 = vunpack.c.h.b16 %v237
    %v892 = vunpack.c.l.b16 %v238
    %v893 = vunpack.c.h.b16 %v238
    %v894 = vunpack.c.l.b16 %v239
    %v895 = vunpack.c.h.b16 %v239
    %v896 = vunpack.c.l.b16 %v240
    %v897 = vunpack.c.h.b16 %v240
    %v898 = vunpack.c.l.b16 %v241
    %v899 = vunpack.c.h.b16 %v241
    %v900 = vunpack.c.l.b16 %v242
    %v901 = vunpack.c.h.b16 %v242
    %v902 = vunpack.c.l.b16 %v243
    %v903 = vunpack.c.h.b16 %v243
    %v904 = vunpack.c.l.b16 %v244
    %v905 = vunpack.c.h.b16 %v244
    %v906 = vunpack.c.l.b16 %v245
    %v907 = vunpack.c.h.b16 %v245
    %v908 = vunpack.c.l.b16 %v246
    %v909 = vunpack.c.h.b16 %v246
    %v910 = vunpack.c.l.b16 %v247
    %v911 = vunpack.c.h.b16 %v247
    %v912 = vunpack.c.l.b16 %v248
    %v913 = vunpack.c.h.b16 %v248
    %v914 = vunpack.c.l.b16 %v249
    %v915 = vunpack.c.h.b16 %v249
    %v916 = vunpack.c.l.b16 %v250
    %v917 = vunpack.c.h.b16 %v250
    %v918 = vunpack.c.l.b16 %v251
    %v919 = vunpack.c.h.b16 %v251
    %v920 = vunpack.c.l.b16 %v252
    %v921 = vunpack.c.h.b16 %v252
    %v922 = vunpack.c.l.b16 %v253
    %v923 = vunpack.c.h.b16 %v253
    %v924 = vunpack.c.l.b16 %v254
    %v925 = vunpack.c.h.b16 %v254
    %v926 = vunpack.c.l.b16 %v255
    %v927 = vunpack.c.h.b16 %v255
    %v928 = vunpack.c.l.b16 %v256
    %v929 = vunpack.c.h.b16 %v256
    %v930 = vunpack.c.l.b16 %v257
    %v931 = vunpack.c.h.b16 %v257
    %v932 = vunpack.c.l.b16 %v258
    %v933 = vunpack.c.h.b16 %v258
    %v934 = vunpack.c.l.b16 %v259
    %v935 = vunpack.c.h.b16 %v259
    %v936 = vunpack.c.l.b16 %v260
    %v937 = vunpack.c.h.b16 %v260
    %v938 = vunpack.c.l.b16 %v261
    %v939 = vunpack.c.h.b16 %v261
    %v940 = vunpack.c.l.b16 %v262
    %v941 = vunpack.c.h.b16 %v262
    %v942 = vunpack.c.l.b16 %v263
    %v943 = vunpack.c.h.b16 %v263
    %v944 = vunpack.c.l.b16 %v264
    %v945 = vunpack.c.h.b16 %v264
    %v946 = vunpack.c.l.b16 %v265
    %v947 = vunpack.c.h.b16 %v265
    %v948 = vunpack.c.l.b16 %v266
    %v949 = vunpack.c.h.b16 %v266
    %v950 = vunpack.c.l.b16 %v267
    %v951 = vunpack.c.h.b16 %v267
    %v952 = vunpack.c.l.b16 %v268
    %v953 = vunpack.c.h.b16 %v268
    %v954 = vunpack.c.l.b16 %v269
    %v955 = vunpack.c.h.b16 %v269
    %v956 = vunpack.c.l.b16 %v270
    %v957 = vunpack.c.h.b16 %v270
    %v958 = vunpack.c.l.b16 %v271
    %v959 = vunpack.c.h.b16 %v271
    %v960 = vunpack.c.l.b16 %v272
    %v961 = vunpack.c.h.b16 %v272
    %v962 = vunpack.c.l.b16 %v273
    %v963 = vunpack.c.h.b16 %v273
    %v964 = vunpack.c.l.b16 %v274
    %v965 = vunpack.c.h.b16 %v274
    %v966 = vunpack.c.l.b16 %v275
    %v967 = vunpack.c.h.b16 %v275
    %v968 = vunpack.c.l.b16 %v276
    %v969 = vunpack.c.h.b16 %v276
    %v970 = vunpack.c.l.b16 %v277
    %v971 = vunpack.c.h.b16 %v277
    %v972 = vunpack.c.l.b16 %v278
    %v973 = vunpack.c.h.b16 %v278
    %v974 = vunpack.c.l.b16 %v279
    %v975 = vunpack.c.h.b16 %v279
    %v976 = vunpack.c.l.b16 %v280
    %v977 = vunpack.c.h.b16 %v280
    %v978 = vunpack.c.l.b16 %v281
    %v979 = vunpack.c.h.b16 %v281
    %v980 = vunpack.c.l.b16 %v282
    %v981 = vunpack.c.h.b16 %v282
    %v982 = vunpack.c.l.b16 %v283
    %v983 = vunpack.c.h.b16 %v283
    %v984 = vunpack.c.l.b16 %v284
    %v985 = vunpack.c.h.b16 %v284
    %v986 = vunpack.c.l.b16 %v285
    %v987 = vunpack.c.h.b16 %v285
    %v988 = vunpack.c.l.b16 %v286
    %v989 = vunpack.c.h.b16 %v286
    %v990 = vunpack.c.l.b16 %v287
    %v991 = vunpack.c.h.b16 %v287
    %v992 = vunpack.c.l.b16 %v288
    %v993 = vunpack.c.h.b16 %v288
    %v994 = vunpack.c.l.b16 %v289
    %v995 = vunpack.c.h.b16 %v289
    %v996 = vunpack.c.l.b16 %v290
    %v997 = vunpack.c.h.b16 %v290
    %v998 = vunpack.c.l.b16 %v291
    %v999 = vunpack.c.h.b16 %v291
    %v1000 = vunpack.c.l.b16 %v292
    %v1001 = vunpack.c.h.b16 %v292
    %v1002 = vunpack.c.l.b16 %v293
    %v1003 = vunpack.c.h.b16 %v293
    %v1004 = vunpack.c.l.b16 %v294
    %v1005 = vunpack.c.h.b16 %v294
    %v1006 = vunpack.c.l.b16 %v295
    %v1007 = vunpack.c.h.b16 %v295
    %v1008 = vunpack.c.l.b16 %v296
    %v1009 = vunpack.c.h.b16 %v296
    %v1010 = vunpack.c.l.b16 %v297
    %v1011 = vunpack.c.h.b16 %v297
    %v1012 = vunpack.c.l.b16 %v298
    %v1013 = vunpack.c.h.b16 %v298
    %v1014 = vunpack.c.l.b16 %v299
    %v1015 = vunpack.c.h.b16 %v299
    %v1016 = vunpack.c.l.b16 %v300
    %v1017 = vunpack.c.h.b16 %v300
    %v1018 = vunpack.c.l.b16 %v301
    %v1019 = vunpack.c.h.b16 %v301
    %v1020 = vunpack.c.l.b16 %v302
    %v1021 = vunpack.c.h.b16 %v302
    %v1022 = vunpack.c.l.b16 %v303
    %v1023 = vunpack.c.h.b16 %v303
    %v1024 = vunpack.c.l.b16 %v304
    %v1025 = vunpack.c.h.b16 %v304
    %v1026 = vunpack.c.l.b16 %v305
    %v1027 = vunpack.c.h.b16 %v305
    %v1028 = vunpack.c.l.b16 %v306
    %v1029 = vunpack.c.h.b16 %v306
    %v1030 = vunpack.c.l.b16 %v307
    %v1031 = vunpack.c.h.b16 %v307
    %v1032 = vunpack.c.l.b16 %v308
    %v1033 = vunpack.c.h.b16 %v308
    %v1034 = vunpack.c.l.b16 %v309
    %v1035 = vunpack.c.h.b16 %v309
    %v1036 = vunpack.c.l.b16 %v310
    %v1037 = vunpack.c.h.b16 %v310
    %v1038 = vunpack.c.l.b16 %v311
    %v1039 = vunpack.c.h.b16 %v311
    %v1040 = vunpack.c.l.b16 %v312
    %v1041 = vunpack.c.h.b16 %v312
    %v1042 = vunpack.c.l.b16 %v313
    %v1043 = vunpack.c.h.b16 %v313
    %v1044 = vunpack.c.l.b16 %v314
    %v1045 = vunpack.c.h.b16 %v314
    %v1046 = vunpack.c.l.b16 %v315
    %v1047 = vunpack.c.h.b16 %v315
    %v1048 = vunpack.c.l.b16 %v316
    %v1049 = vunpack.c.h.b16 %v316
    %v1050 = vunpack.c.l.b16 %v317
    %v1051 = vunpack.c.h.b16 %v317
    %v1052 = vunpack.c.l.b16 %v318
    %v1053 = vunpack.c.h.b16 %v318
    %v1054 = vunpack.c.l.b16 %v319
    %v1055 = vunpack.c.h.b16 %v319
    %v1056 = vunpack.c.l.b16 %v320
    %v1057 = vunpack.c.h.b16 %v320
    %v1058 = vunpack.c.l.b16 %v321
    %v1059 = vunpack.c.h.b16 %v321
    %v1060 = vunpack.c.l.b16 %v322
    %v1061 = vunpack.c.h.b16 %v322
    %v1062 = vunpack.c.l.b16 %v323
    %v1063 = vunpack.c.h.b16 %v323
    %v1064 = vunpack.c.l.b16 %v324
    %v1065 = vunpack.c.h.b16 %v324
    %v1066 = vunpack.c.l.b16 %v325
    %v1067 = vunpack.c.h.b16 %v325
    %v1068 = vunpack.c.l.b16 %v326
    %v1069 = vunpack.c.h.b16 %v326
    %v1070 = vunpack.c.l.b16 %v327
    %v1071 = vunpack.c.h.b16 %v327
    %v1072 = vunpack.c.l.b16 %v328
    %v1073 = vunpack.c.h.b16 %v328
    %v1074 = vunpack.c.l.b16 %v329
    %v1075 = vunpack.c.h.b16 %v329
    %v1076 = vunpack.c.l.b16 %v330
    %v1077 = vunpack.c.h.b16 %v330
    %v1078 = vunpack.c.l.b16 %v331
    %v1079 = vunpack.c.h.b16 %v331
    %v1080 = vunpack.c.l.b16 %v332
    %v1081 = vunpack.c.h.b16 %v332
    %v1082 = vunpack.c.l.b16 %v333
    %v1083 = vunpack.c.h.b16 %v333
    %v1084 = vunpack.c.l.b16 %v334
    %v1085 = vunpack.c.h.b16 %v334
    %v1086 = vunpack.c.l.b16 %v335
    %v1087 = vunpack.c.h.b16 %v335
    %v1088 = vunpack.c.l.b16 %v336
    %v1089 = vunpack.c.h.b16 %v336
    %v1090 = vunpack.c.l.b16 %v337
    %v1091 = vunpack.c.h.b16 %v337
    %v1092 = vunpack.c.l.b16 %v338
    %v1093 = vunpack.c.h.b16 %v338
    %v1094 = vunpack.c.l.b16 %v339
    %v1095 = vunpack.c.h.b16 %v339
    %v1096 = vunpack.c.l.b16 %v340
    %v1097 = vunpack.c.h.b16 %v340
    %v1098 = vunpack.c.l.b16 %v341
    %v1099 = vunpack.c.h.b16 %v341
    %v1100 = vunpack.c.l.b16 %v342
    %v1101 = vunpack.c.h.b16 %v342
    %v1102 = vunpack.c.l.b16 %v343
    %v1103 = vunpack.c.h.b16 %v343
    %v1104 = vunpack.c.l.b16 %v344
    %v1105 = vunpack.c.h.b16 %v344
    %v1106 = vunpack.c.l.b16 %v345
    %v1107 = vunpack.c.h.b16 %v345
    %v1108 = vunpack.c.l.b16 %v346
    %v1109 = vunpack.c.h.b16 %v346
    %v1110 = vunpack.c.l.b16 %v347
    %v1111 = vunpack.c.h.b16 %v347
    %v1112 = vunpack.c.l.b16 %v348
    %v1113 = vunpack.c.h.b16 %v348
    %v1114 = vunpack.c.l.b16 %v349
    %v1115 = vunpack.c.h.b16 %v349
    %v1116 = vunpack.c.l.b16 %v350
    %v1117 = vunpack.c.h.b16 %v350
    %v1118 = vunpack.c.l.b16 %v351
    %v1119 = vunpack.c.h.b16 %v351
    %v1120 = vunpack.c.l.b16 %v352
    %v1121 = vunpack.c.h.b16 %v352
    %v1122 = vunpack.c.l.b16 %v353
    %v1123 = vunpack.c.h.b16 %v353
    %v1124 = vunpack.c.l.b16 %v354
    %v1125 = vunpack.c.h.b16 %v354
    %v1126 = vunpack.c.l.b16 %v355
    %v1127 = vunpack.c.h.b16 %v355
    %v1128 = vunpack.c.l.b16 %v356
    %v1129 = vunpack.c.h.b16 %v356
    %v1130 = vunpack.c.l.b16 %v357
    %v1131 = vunpack.c.h.b16 %v357
    %v1132 = vunpack.c.l.b16 %v358
    %v1133 = vunpack.c.h.b16 %v358
    %v1134 = vunpack.c.l.b16 %v359
    %v1135 = vunpack.c.h.b16 %v359
    %v1136 = vunpack.c.l.b16 %v360
    %v1137 = vunpack.c.h.b16 %v360
    %v1138 = vunpack.c.l.b16 %v361
    %v1139 = vunpack.c.h.b16 %v361
    %v1140 = vunpack.c.l.b16 %v362
    %v1141 = vunpack.c.h.b16 %v362
    %v1142 = vunpack.c.l.b16 %v363
    %v1143 = vunpack.c.h.b16 %v363
    %v1144 = vunpack.c.l.b16 %v364
    %v1145 = vunpack.c.h.b16 %v364
    %v1146 = vunpack.c.l.b16 %v365
    %v1147 = vunpack.c.h.b16 %v365
    %v1148 = vunpack.c.l.b16 %v366
    %v1149 = vunpack.c.h.b16 %v366
    %v1150 = vunpack.c.l.b16 %v367
    %v1151 = vunpack.c.h.b16 %v367
    %v1152 = vunpack.c.l.b16 %v368
    %v1153 = vunpack.c.h.b16 %v368
    %v1154 = vunpack.c.l.b16 %v369
    %v1155 = vunpack.c.h.b16 %v369
    %v1156 = vunpack.c.l.b16 %v370
    %v1157 = vunpack.c.h.b16 %v370
    %v1158 = vunpack.c.l.b16 %v371
    %v1159 = vunpack.c.h.b16 %v371
    %v1160 = vunpack.c.l.b16 %v372
    %v1161 = vunpack.c.h.b16 %v372
    %v1162 = vunpack.c.l.b16 %v373
    %v1163 = vunpack.c.h.b16 %v373
    %v1164 = vunpack.c.l.b16 %v374
    %v1165 = vunpack.c.h.b16 %v374
    %v1166 = vunpack.c.l.b16 %v375
    %v1167 = vunpack.c.h.b16 %v375
    %v1168 = vunpack.c.l.b16 %v376
    %v1169 = vunpack.c.h.b16 %v376
    %v1170 = vunpack.c.l.b16 %v377
    %v1171 = vunpack.c.h.b16 %v377
    %v1172 = vunpack.c.l.b16 %v378
    %v1173 = vunpack.c.h.b16 %v378
    %v1174 = vunpack.c.l.b16 %v379
    %v1175 = vunpack.c.h.b16 %v379
    %v1176 = vunpack.c.l.b16 %v380
    %v1177 = vunpack.c.h.b16 %v380
    %v1178 = vunpack.c.l.b16 %v381
    %v1179 = vunpack.c.h.b16 %v381
    %v1180 = vunpack.c.l.b16 %v382
    %v1181 = vunpack.c.h.b16 %v382
    %v1182 = vunpack.c.l.b16 %v383
    %v1183 = vunpack.c.h.b16 %v383
    %v1184 = vunpack.c.l.b16 %v384
    %v1185 = vunpack.c.h.b16 %v384
    %v1186 = vunpack.c.l.b16 %v385
    %v1187 = vunpack.c.h.b16 %v385
    %v1188 = vunpack.c.l.b16 %v386
    %v1189 = vunpack.c.h.b16 %v386
    %v1190 = vunpack.c.l.b16 %v387
    %v1191 = vunpack.c.h.b16 %v387
    %v1192 = vunpack.c.l.b16 %v388
    %v1193 = vunpack.c.h.b16 %v388
    %v1194 = vunpack.c.l.b16 %v389
    %v1195 = vunpack.c.h.b16 %v389
    %v1196 = vunpack.c.l.b16 %v390
    %v1197 = vunpack.c.h.b16 %v390
    %v1198 = vunpack.c.l.b16 %v391
    %v1199 = vunpack.c.h.b16 %v391
    %v1200 = vunpack.c.l.b16 %v392
    %v1201 = vunpack.c.h.b16 %v392
    %v1202 = vunpack.c.l.b16 %v393
    %v1203 = vunpack.c.h.b16 %v393
    %v1204 = vunpack.c.l.b16 %v394
    %v1205 = vunpack.c.h.b16 %v394
    %v1206 = vunpack.c.l.b16 %v395
    %v1207 = vunpack.c.h.b16 %v395
    %v1208 = vunpack.c.l.b16 %v396
    %v1209 = vunpack.c.h.b16 %v396
    %v1210 = vunpack.c.l.b16 %v397
    %v1211 = vunpack.c.h.b16 %v397
    %v1212 = vunpack.c.l.b16 %v398
    %v1213 = vunpack.c.h.b16 %v398
    %v1214 = vunpack.c.l.b16 %v399
    %v1215 = vunpack.c.h.b16 %v399
    %v1216 = vunpack.c.l.b16 %v400
    %v1217 = vunpack.c.h.b16 %v400
    %v1218 = vunpack.c.l.b16 %v401
    %v1219 = vunpack.c.h.b16 %v401
    %v1220 = vunpack.c.l.b16 %v402
    %v1221 = vunpack.c.h.b16 %v402
    %v1222 = vunpack.c.l.b16 %v403
    %v1223 = vunpack.c.h.b16 %v403
    %v1224 = vunpack.c.l.b16 %v404
    %v1225 = vunpack.c.h.b16 %v404
    %v1226 = vunpack.c.l.b16 %v405
    %v1227 = vunpack.c.h.b16 %v405
    %v1228 = vunpack.c.l.b16 %v406
    %v1229 = vunpack.c.h.b16 %v406
    %v1230 = vunpack.c.l.b16 %v407
    %v1231 = vunpack.c.h.b16 %v407
    %v1232 = vunpack.c.l.b16 %v408
    %v1233 = vunpack.c.h.b16 %v408
    %v1234 = vunpack.c.l.b16 %v409
    %v1235 = vunpack.c.h.b16 %v409
    %v1236 = vunpack.c.l.b16 %v410
    %v1237 = vunpack.c.h.b16 %v410
    %v1238 = vunpack.c.l.b16 %v411
    %v1239 = vunpack.c.h.b16 %v411
    %v1240 = vunpack.c.l.b16 %v412
    %v1241 = vunpack.c.h.b16 %v412
    %v1242 = vunpack.c.l.b16 %v413
    %v1243 = vunpack.c.h.b16 %v413
    %v1244 = vunpack.c.l.b16 %v414
    %v1245 = vunpack.c.h.b16 %v414
    %v1246 = vunpack.c.l.b16 %v415
    %v1247 = vunpack.c.h.b16 %v415
    %v1248 = vunpack.c.l.b16 %v416
    %v1249 = vunpack.c.h.b16 %v416
    %v1250 = vunpack.c.l.b16 %v417
    %v1251 = vunpack.c.h.b16 %v417
    %v1252 = vunpack.c.l.b16 %v418
    %v1253 = vunpack.c.h.b16 %v418
    %v1254 = vunpack.c.l.b16 %v419
    %v1255 = vunpack.c.h.b16 %v419
    %v1256 = vunpack.c.l.b16 %v420
    %v1257 = vunpack.c.h.b16 %v420
    %v1258 = vunpack.c.l.b16 %v421
    %v1259 = vunpack.c.h.b16 %v421
    %v1260 = vunpack.c.l.b16 %v422
    %v1261 = vunpack.c.h.b16 %v422
    %v1262 = vunpack.c.l.b16 %v423
    %v1263 = vunpack.c.h.b16 %v423
    %v1264 = vunpack.c.l.b16 %v424
    %v1265 = vunpack.c.h.b16 %v424
    %v1266 = vunpack.c.l.b16 %v425
    %v1267 = vunpack.c.h.b16 %v425
    %v1268 = vunpack.c.l.b16 %v426
    %v1269 = vunpack.c.h.b16 %v426
    %v1270 = vunpack.c.l.b16 %v427
    %v1271 = vunpack.c.h.b16 %v427
    %v1272 = vunpack.c.l.b16 %v428
    %v1273 = vunpack.c.h.b16 %v428
    %v1274 = vunpack.c.l.b16 %v429
    %v1275 = vunpack.c.h.b16 %v429
    %v1276 = vunpack.c.l.b16 %v430
    %v1277 = vunpack.c.h.b16 %v430
    %v1278 = vunpack.c.l.b16 %v431
    %v1279 = vunpack.c.h.b16 %v431
    %v1280 = vunpack.c.l.b16 %v432
    %v1281 = vunpack.c.h.b16 %v432
    %v1282 = vunpack.c.l.b16 %v433
    %v1283 = vunpack.c.h.b16 %v433
    %v1284 = vunpack.c.l.b16 %v434
    %v1285 = vunpack.c.h.b16 %v434
    %v1286 = vunpack.c.l.b16 %v435
    %v1287 = vunpack.c.h.b16 %v435
    %v1288 = vunpack.c.l.b16 %v436
    %v1289 = vunpack.c.h.b16 %v436
    %v1290 = vunpack.c.l.b16 %v437
    %v1291 = vunpack.c.h.b16 %v437
    %v1292 = vunpack.c.l.b16 %v438
    %v1293 = vunpack.c.h.b16 %v438
    %v1294 = vunpack.c.l.b16 %v439
    %v1295 = vunpack.c.h.b16 %v439
    %v1296 = vunpack.c.l.b16 %v440
    %v1297 = vunpack.c.h.b16 %v440
    %v1298 = vunpack.c.l.b16 %v441
    %v1299 = vunpack.c.h.b16 %v441
    %v1300 = vunpack.c.l.b16 %v442
    %v1301 = vunpack.c.h.b16 %v442
    %v1302 = vunpack.c.l.b16 %v443
    %v1303 = vunpack.c.h.b16 %v443
    %v1304 = vunpack.c.l.b16 %v444
    %v1305 = vunpack.c.h.b16 %v444
    %v1306 = vunpack.c.l.b16 %v445
    %v1307 = vunpack.c.h.b16 %v445
    %v1308 = vunpack.c.l.b16 %v446
    %v1309 = vunpack.c.h.b16 %v446
    %v1310 = vunpack.c.l.b16 %v447
    %v1311 = vunpack.c.h.b16 %v447
    %v1312 = vunpack.c.l.b16 %v448
    %v1313 = vunpack.c.h.b16 %v448
    %v1314 = vunpack.c.l.b16 %v449
    %v1315 = vunpack.c.h.b16 %v449
    %v1316 = vunpack.c.l.b16 %v450
    %v1317 = vunpack.c.h.b16 %v450
    %v1318 = vunpack.c.l.b16 %v451
    %v1319 = vunpack.c.h.b16 %v451
    %v1320 = vunpack.c.l.b16 %v452
    %v1321 = vunpack.c.h.b16 %v452
    %v1322 = vunpack.c.l.b16 %v453
    %v1323 = vunpack.c.h.b16 %v453
    %v1324 = vunpack.c.l.b16 %v454
    %v1325 = vunpack.c.h.b16 %v454
    %v1326 = vunpack.c.l.b16 %v455
    %v1327 = vunpack.c.h.b16 %v455
    %v1328 = vunpack.c.l.b16 %v456
    %v1329 = vunpack.c.h.b16 %v456
    %v1330 = vunpack.c.l.b16 %v457
    %v1331 = vunpack.c.h.b16 %v457
    %v1332 = vunpack.c.l.b16 %v458
    %v1333 = vunpack.c.h.b16 %v458
    %v1334 = vunpack.c.l.b16 %v459
    %v1335 = vunpack.c.h.b16 %v459
    %v1336 = vunpack.c.l.b16 %v460
    %v1337 = vunpack.c.h.b16 %v460
    %v1338 = vunpack.c.l.b16 %v461
    %v1339 = vunpack.c.h.b16 %v461
    %v1340 = vunpack.c.l.b16 %v462
    %v1341 = vunpack.c.h.b16 %v462
    %v1342 = vunpack.c.l.b16 %v463
    %v1343 = vunpack.c.h.b16 %v463
    %v1344 = vunpack.c.l.b16 %v464
    %v1345 = vunpack.c.h.b16 %v464
    %v1346 = vunpack.c.l.b16 %v465
    %v1347 = vunpack.c.h.b16 %v465
    %v1348 = vunpack.c.l.b16 %v466
    %v1349 = vunpack.c.h.b16 %v466
    %v1350 = vunpack.c.l.b16 %v467
    %v1351 = vunpack.c.h.b16 %v467
    %v1352 = vunpack.c.l.b16 %v468
    %v1353 = vunpack.c.h.b16 %v468
    %v1354 = vunpack.c.l.b16 %v469
    %v1355 = vunpack.c.h.b16 %v469
    %v1356 = vunpack.c.l.b16 %v470
    %v1357 = vunpack.c.h.b16 %v470
    %v1358 = vunpack.c.l.b16 %v471
    %v1359 = vunpack.c.h.b16 %v471
    %v1360 = vunpack.c.l.b16 %v472
    %v1361 = vunpack.c.h.b16 %v472
    %v1362 = vunpack.c.l.b16 %v473
    %v1363 = vunpack.c.h.b16 %v473
    %v1364 = vunpack.c.l.b16 %v474
    %v1365 = vunpack.c.h.b16 %v474
    %v1366 = vunpack.c.l.b16 %v475
    %v1367 = vunpack.c.h.b16 %v475
    %v1368 = vunpack.c.l.b16 %v476
    %v1369 = vunpack.c.h.b16 %v476
    %v1370 = vunpack.c.l.b16 %v477
    %v1371 = vunpack.c.h.b16 %v477
    %v1372 = vunpack.c.l.b16 %v478
    %v1373 = vunpack.c.h.b16 %v478
    %v1374 = vunpack.c.l.b16 %v479
    %v1375 = vunpack.c.h.b16 %v479
    %v1376 = vunpack.c.l.b16 %v480
    %v1377 = vunpack.c.h.b16 %v480
    %v1378 = vunpack.c.l.b16 %v481
    %v1379 = vunpack.c.h.b16 %v481
    %v1380 = vunpack.c.l.b16 %v482
    %v1381 = vunpack.c.h.b16 %v482
    %v1382 = vunpack.c.l.b16 %v483
    %v1383 = vunpack.c.h.b16 %v483
    %v1384 = vunpack.c.l.b16 %v484
    %v1385 = vunpack.c.h.b16 %v484
    %v1386 = vunpack.c.l.b16 %v485
    %v1387 = vunpack.c.h.b16 %v485
    %v1388 = vunpack.c.l.b16 %v486
    %v1389 = vunpack.c.h.b16 %v486
    %v1390 = vunpack.c.l.b16 %v487
    %v1391 = vunpack.c.h.b16 %v487
    %v1392 = vunpack.c.l.b16 %v488
    %v1393 = vunpack.c.h.b16 %v488
    %v1394 = vunpack.c.l.b16 %v489
    %v1395 = vunpack.c.h.b16 %v489
    %v1396 = vunpack.c.l.b16 %v490
    %v1397 = vunpack.c.h.b16 %v490
    %v1398 = vunpack.c.l.b16 %v491
    %v1399 = vunpack.c.h.b16 %v491
    %v1400 = vunpack.c.l.b16 %v492
    %v1401 = vunpack.c.h.b16 %v492
    %v1402 = vunpack.c.l.b16 %v493
    %v1403 = vunpack.c.h.b16 %v493
    %v1404 = vunpack.c.l.b16 %v494
    %v1405 = vunpack.c.h.b16 %v494
    %v1406 = vunpack.c.l.b16 %v495
    %v1407 = vunpack.c.h.b16 %v495
    %v1408 = vunpack.c.l.b16 %v496
    %v1409 = vunpack.c.h.b16 %v496
    %v1410 = vunpack.c.l.b16 %v497
    %v1411 = vunpack.c.h.b16 %v497
    %v1412 = vunpack.c.l.b16 %v498
    %v1413 = vunpack.c.h.b16 %v498
    %v1414 = vunpack.c.l.b16 %v499
    %v1415 = vunpack.c.h.b16 %v499
    %v1416 = vunpack.c.l.b16 %v500
    %v1417 = vunpack.c.h.b16 %v500
    %v1418 = vunpack.c.l.b16 %v501
    %v1419 = vunpack.c.h.b16 %v501
    %v1420 = vunpack.c.l.b16 %v502
    %v1421 = vunpack.c.h.b16 %v502
    %v1422 = vunpack.c.l.b16 %v503
    %v1423 = vunpack.c.h.b16 %v503
    %v1424 = vunpack.c.l.b16 %v504
    %v1425 = vunpack.c.h.b16 %v504
    %v1426 = vunpack.c.l.b16 %v505
    %v1427 = vunpack.c.h.b16 %v505
    %v1428 = vunpack.c.l.b16 %v506
    %v1429 = vunpack.c.h.b16 %v506
    %v1430 = vunpack.c.l.b16 %v507
    %v1431 = vunpack.c.h.b16 %v507
    %v1432 = vunpack.c.l.b16 %v508
    %v1433 = vunpack.c.h.b16 %v508
    %v1434 = vunpack.c.l.b16 %v509
    %v1435 = vunpack.c.h.b16 %v509
    %v1436 = vpack.c.b16 %v866, %v860
    %v1437 = vpack.c.b16 %v867, %v861
    %v1438 = vpack.c.b16 %v868, %v862
    %v1439 = vpack.c.b16 %v869, %v863
    %v1440 = vpack.c.b16 %v870, %v864
    %v1441 = vpack.c.b16 %v871, %v865
    %v1442 = vpack.c.b16 %v878, %v872
    %v1443 = vpack.c.b16 %v879, %v873
    %v1444 = vpack.c.b16 %v880, %v874
    %v1445 = vpack.c.b16 %v881, %v875
    %v1446 = vpack.c.b16 %v882, %v876
    %v1447 = vpack.c.b16 %v883, %v877
    %v1448 = vpack.c.b16 %v890, %v884
    %v1449 = vpack.c.b16 %v891, %v885
    %v1450 = vpack.c.b16 %v892, %v886
    %v1451 = vpack.c.b16 %v893, %v887
    %v1452 = vpack.c.b16 %v894, %v888
    %v1453 = vpack.c.b16 %v895, %v889
    %v1454 = vpack.c.b16 %v902, %v896
    %v1455 = vpack.c.b16 %v903, %v897
    %v1456 = vpack.c.b16 %v904, %v898
    %v1457 = vpack.c.b16 %v905, %v899
    %v1458 = vpack.c.b16 %v906, %v900
    %v1459 = vpack.c.b16 %v907, %v901
    %v1460 = vpack.c.b16 %v914, %v908
    %v1461 = vpack.c.b16 %v915, %v909
    %v1462 = vpack.c.b16 %v916, %v910
    %v1463 = vpack.c.b16 %v917, %v911
    %v1464 = vpack.c.b16 %v918, %v912
    %v1465 = vpack.c.b16 %v919, %v913
    %v1466 = vpack.c.b16 %v926, %v920
    %v1467 = vpack.c.b16 %v927, %v921
    %v1468 = vpack.c.b16 %v928, %v922
    %v1469 = vpack.c.b16 %v929, %v923
    %v1470 = vpack.c.b16 %v930, %v924
    %v1471 = vpack.c.b16 %v931, %v925
    %v1472 = vpack.c.b16 %v938, %v932
    %v1473 = vpack.c.b16 %v939, %v933
    %v1474 = vpack.c.b16 %v940, %v934
    %v1475 = vpack.c.b16 %v941, %v935
    %v1476 = vpack.c.b16 %v942, %v936
    %v1477 = vpack.c.b16 %v943, %v937
    %v1478 = vpack.c.b16 %v950, %v944
    %v1479 = vpack.c.b16 %v951, %v945
    %v1480 = vpack.c.b16 %v952, %v946
    %v1481 = vpack.c.b16 %v953, %v947
    %v1482 = vpack.c.b16 %v954, %v948
    %v1483 = vpack.c.b16 %v955, %v949
    %v1484 = vpack.c.b16 %v962, %v956
    %v1485 = vpack.c.b16 %v963, %v957
    %v1486 = vpack.c.b16 %v964, %v958
    %v1487 = vpack.c.b16 %v965, %v959
    %v1488 = vpack.c.b16 %v966, %v960
    %v1489 = vpack.c.b16 %v967, %v961
    %v1490 = vpack.c.b16 %v974, %v968
    %v1491 = vpack.c.b16 %v975, %v969
    %v1492 = vpack.c.b16 %v976, %v970
    %v1493 = vpack.c.b16 %v977, %v971
    %v1494 = vpack.c.b16 %v978, %v972
    %v1495 = vpack.c.b16 %v979, %v973
    %v1496 = vpack.c.b16 %v986, %v980
    %v1497 = vpack.c.b16 %v987, %v981
    %v1498 = vpack.c.b16 %v988, %v982
    %v1499 = vpack.c.b16 %v989, %v983
    %v1500 = vpack.c.b16 %v990, %v984
    %v1501 = vpack.c.b16 %v991, %v985
    %v1502 = vpack.c.b16 %v998, %v992
    %v1503 = vpack.c.b16 %v999, %v993
    %v1504 = vpack.c.b16 %v1000, %v994
    %v1505 = vpack.c.b16 %v1001, %v995
    %v1506 = vpack.c.b16 %v1002, %v996
    %v1507 = vpack.c.b16 %v1003, %v997
    %v1508 = vpack.c.b16 %v1010, %v1004
    %v1509 = vpack.c.b16 %v1011, %v1005
    %v1510 = vpack.c.b16 %v1012, %v1006
    %v1511 = vpack.c.b16 %v1013, %v1007
    %v1512 = vpack.c.b16 %v1014, %v1008
    %v1513 = vpack.c.b16 %v1015, %v1009
    %v1514 = vpack.c.b16 %v1022, %v1016
    %v1515 = vpack.c.b16 %v1023, %v1017
    %v1516 = vpack.c.b16 %v1024, %v1018
    %v1517 = vpack.c.b16 %v1025, %v1019
    %v1518 = vpack.c.b16 %v1026, %v1020
    %v1519 = vpack.c.b16 %v1027, %v1021
    %v1520 = vpack.c.b16 %v1034, %v1028
    %v1521 = vpack.c.b16 %v1035, %v1029
    %v1522 = vpack.c.b16 %v1036, %v1030
    %v1523 = vpack.c.b16 %v1037, %v1031
    %v1524 = vpack.c.b16 %v1038, %v1032
    %v1525 = vpack.c.b16 %v1039, %v1033
    %v1526 = vpack.c.b16 %v1046, %v1040
    %v1527 = vpack.c.b16 %v1047, %v1041
    %v1528 = vpack.c.b16 %v1048, %v1042
    %v1529 = vpack.c.b16 %v1049, %v1043
    %v1530 = vpack.c.b16 %v1050, %v1044
    %v1531 = vpack.c.b16 %v1051, %v1045
    %v1532 = vpack.c.b16 %v1058, %v1052
    %v1533 = vpack.c.b16 %v1059, %v1053
    %v1534 = vpack.c.b16 %v1060, %v1054
    %v1535 = vpack.c.b16 %v1061, %v1055
    %v1536 = vpack.c.b16 %v1062, %v1056
    %v1537 = vpack.c.b16 %v1063, %v1057
    %v1538 = vpack.c.b16 %v1070, %v1064
    %v1539 = vpack.c.b16 %v1071, %v1065
    %v1540 = vpack.c.b16 %v1072, %v1066
    %v1541 = vpack.c.b16 %v1073, %v1067
    %v1542 = vpack.c.b16 %v1074, %v1068
    %v1543 = vpack.c.b16 %v1075, %v1069
    %v1544 = vpack.c.b16 %v1082, %v1076
    %v1545 = vpack.c.b16 %v1083, %v1077
    %v1546 = vpack.c.b16 %v1084, %v1078
    %v1547 = vpack.c.b16 %v1085, %v1079
    %v1548 = vpack.c.b16 %v1086, %v1080
    %v1549 = vpack.c.b16 %v1087, %v1081
    %v1550 = vpack.c.b16 %v1094, %v1088
    %v1551 = vpack.c.b16 %v1095, %v1089
    %v1552 = vpack.c.b16 %v1096, %v1090
    %v1553 = vpack.c.b16 %v1097, %v1091
    %v1554 = vpack.c.b16 %v1098, %v1092
    %v1555 = vpack.c.b16 %v1099, %v1093
    %v1556 = vpack.c.b16 %v1106, %v1100
    %v1557 = vpack.c.b16 %v1107, %v1101
    %v1558 = vpack.c.b16 %v1108, %v1102
    %v1559 = vpack.c.b16 %v1109, %v1103
    %v1560 = vpack.c.b16 %v1110, %v1104
    %v1561 = vpack.c.b16 %v1111, %v1105
    %v1562 = vpack.c.b16 %v1118, %v1112
    %v1563 = vpack.c.b16 %v1119, %v1113
    %v1564 = vpack.c.b16 %v1120, %v1114
    %v1565 = vpack.c.b16 %v1121, %v1115
    %v1566 = vpack.c.b16 %v1122, %v1116
    %v1567 = vpack.c.b16 %v1123, %v1117
    %v1568 = vpack.c.b16 %v1130, %v1124
    %v1569 = vpack.c.b16 %v1131, %v1125
    %v1570 = vpack.c.b16 %v1132, %v1126
    %v1571 = vpack.c.b16 %v1133, %v1127
    %v1572 = vpack.c.b16 %v1134, %v1128
    %v1573 = vpack.c.b16 %v1135, %v1129
    %v1574 = vpack.c.b16 %v1142, %v1136
    %v1575 = vpack.c.b16 %v1143, %v1137
    %v1576 = vpack.c.b16 %v1144, %v1138
    %v1577 = vpack.c.b16 %v1145, %v1139
    %v1578 = vpack.c.b16 %v1146, %v1140
    %v1579 = vpack.c.b16 %v1147, %v1141
    %v1580 = vpack.c.b16 %v1154, %v1148
    %v1581 = vpack.c.b16 %v1155, %v1149
    %v1582 = vpack.c.b16 %v1156, %v1150
    %v1583 = vpack.c.b16 %v1157, %v1151
    %v1584 = vpack.c.b16 %v1158, %v1152
    %v1585 = vpack.c.b16 %v1159, %v1153
    %v1586 = vpack.c.b16 %v1166, %v1160
    %v1587 = vpack.c.b16 %v1167, %v1161
    %v1588 = vpack.c.b16 %v1168, %v1162
    %v1589 = vpack.c.b16 %v1169, %v1163
    %v1590 = vpack.c.b16 %v1170, %v1164
    %v1591 = vpack.c.b16 %v1171, %v1165
    %v1592 = vpack.c.b16 %v1178, %v1172
    %v1593 = vpack.c.b16 %v1179, %v1173
    %v1594 = vpack.c.b16 %v1180, %v1174
    %v1595 = vpack.c.b16 %v1181, %v1175
    %v1596 = vpack.c.b16 %v1182, %v1176
    %v1597 = vpack.c.b16 %v1183, %v1177
    %v1598 = vpack.c.b16 %v1190, %v1184
    %v1599 = vpack.c.b16 %v1191, %v1185
    %v1600 = vpack.c.b16 %v1192, %v1186
    %v1601 = vpack.c.b16 %v1193, %v1187
    %v1602 = vpack.c.b16 %v1194, %v1188
    %v1603 = vpack.c.b16 %v1195, %v1189
    %v1604 = vpack.c.b16 %v1202, %v1196
    %v1605 = vpack.c.b16 %v1203, %v1197
    %v1606 = vpack.c.b16 %v1204, %v1198
    %v1607 = vpack.c.b16 %v1205, %v1199
    %v1608 = vpack.c.b16 %v1206, %v1200
    %v1609 = vpack.c.b16 %v1207, %v1201
    %v1610 = vpack.c.b16 %v1214, %v1208
    %v1611 = vpack.c.b16 %v1215, %v1209
    %v1612 = vpack.c.b16 %v1216, %v1210
    %v1613 = vpack.c.b16 %v1217, %v1211
    %v1614 = vpack.c.b16 %v1218, %v1212
    %v1615 = vpack.c.b16 %v1219, %v1213
    %v1616 = vpack.c.b16 %v1226, %v1220
    %v1617 = vpack.c.b16 %v1227, %v1221
    %v1618 = vpack.c.b16 %v1228, %v1222
    %v1619 = vpack.c.b16 %v1229, %v1223
    %v1620 = vpack.c.b16 %v1230, %v1224
    %v1621 = vpack.c.b16 %v1231, %v1225
    %v1622 = vpack.c.b16 %v1238, %v1232
    %v1623 = vpack.c.b16 %v1239, %v1233
    %v1624 = vpack.c.b16 %v1240, %v1234
    %v1625 = vpack.c.b16 %v1241, %v1235
    %v1626 = vpack.c.b16 %v1242, %v1236
    %v1627 = vpack.c.b16 %v1243, %v1237
    %v1628 = vpack.c.b16 %v1250, %v1244
    %v1629 = vpack.c.b16 %v1251, %v1245
    %v1630 = vpack.c.b16 %v1252, %v1246
    %v1631 = vpack.c.b16 %v1253, %v1247
    %v1632 = vpack.c.b16 %v1254, %v1248
    %v1633 = vpack.c.b16 %v1255, %v1249
    %v1634 = vpack.c.b16 %v1262, %v1256
    %v1635 = vpack.c.b16 %v1263, %v1257
    %v1636 = vpack.c.b16 %v1264, %v1258
    %v1637 = vpack.c.b16 %v1265, %v1259
    %v1638 = vpack.c.b16 %v1266, %v1260
    %v1639 = vpack.c.b16 %v1267, %v1261
    %v1640 = vpack.c.b16 %v1274, %v1268
    %v1641 = vpack.c.b16 %v1275, %v1269
    %v1642 = vpack.c.b16 %v1276, %v1270
    %v1643 = vpack.c.b16 %v1277, %v1271
    %v1644 = vpack.c.b16 %v1278, %v1272
    %v1645 = vpack.c.b16 %v1279, %v1273
    %v1646 = vpack.c.b16 %v1286, %v1280
    %v1647 = vpack.c.b16 %v1287, %v1281
    %v1648 = vpack.c.b16 %v1288, %v1282
    %v1649 = vpack.c.b16 %v1289, %v1283
    %v1650 = vpack.c.b16 %v1290, %v1284
    %v1651 = vpack.c.b16 %v1291, %v1285
    %v1652 = vpack.c.b16 %v1298, %v1292
    %v1653 = vpack.c.b16 %v1299, %v1293
    %v1654 = vpack.c.b16 %v1300, %v1294
    %v1655 = vpack.c.b16 %v1301, %v1295
    %v1656 = vpack.c.b16 %v1302, %v1296
    %v1657 = vpack.c.b16 %v1303, %v1297
    %v1658 = vpack.c.b16 %v1310, %v1304
    %v1659 = vpack.c.b16 %v1311, %v1305
    %v1660 = vpack.c.b16 %v1312, %v1306
    %v1661 = vpack.c.b16 %v1313, %v1307
    %v1662 = vpack.c.b16 %v1314, %v1308
    %v1663 = vpack.c.b16 %v1315, %v1309
    %v1664 = vpack.c.b16 %v1322, %v1316
    %v1665 = vpack.c.b16 %v1323, %v1317
    %v1666 = vpack.c.b16 %v1324, %v1318
    %v1667 = vpack.c.b16 %v1325, %v1319
    %v1668 = vpack.c.b16 %v1326, %v1320
    %v1669 = vpack.c.b16 %v1327, %v1321
    %v1670 = vpack.c.b16 %v1334, %v1328
    %v1671 = vpack.c.b16 %v1335, %v1329
    %v1672 = vpack.c.b16 %v1336, %v1330
    %v1673 = vpack.c.b16 %v1337, %v1331
    %v1674 = vpack.c.b16 %v1338, %v1332
    %v1675 = vpack.c.b16 %v1339, %v1333
    %v1676 = vpack.c.b16 %v1346, %v1340
    %v1677 = vpack.c.b16 %v1347, %v1341
    %v1678 = vpack.c.b16 %v1348, %v1342
    %v1679 = vpack.c.b16 %v1349, %v1343
    %v1680 = vpack.c.b16 %v1350, %v1344
    %v1681 = vpack.c.b16 %v1351, %v1345
    %v1682 = vpack.c.b16 %v1358, %v1352
    %v1683 = vpack.c.b16 %v1359, %v1353
    %v1684 = vpack.c.b16 %v1360, %v1354
    %v1685 = vpack.c.b16 %v1361, %v1355
    %v1686 = vpack.c.b16 %v1362, %v1356
    %v1687 = vpack.c.b16 %v1363, %v1357
    %v1688 = vpack.c.b16 %v1370, %v1364
    %v1689 = vpack.c.b16 %v1371, %v1365
    %v1690 = vpack.c.b16 %v1372, %v1366
    %v1691 = vpack.c.b16 %v1373, %v1367
    %v1692 = vpack.c.b16 %v1374, %v1368
    %v1693 = vpack.c.b16 %v1375, %v1369
    %v1694 = vpack.c.b16 %v1382, %v1376
    %v1695 = vpack.c.b16 %v1383, %v1377
    %v1696 = vpack.c.b16 %v1384, %v1378
    %v1697 = vpack.c.b16 %v1385, %v1379
    %v1698 = vpack.c.b16 %v1386, %v1380
    %v1699 = vpack.c.b16 %v1387, %v1381
    %v1700 = vpack.c.b16 %v1394, %v1388
    %v1701 = vpack.c.b16 %v1395, %v1389
    %v1702 = vpack.c.b16 %v1396, %v1390
    %v1703 = vpack.c.b16 %v1397, %v1391
    %v1704 = vpack.c.b16 %v1398, %v1392
    %v1705 = vpack.c.b16 %v1399, %v1393
    %v1706 = vpack.c.b16 %v1406, %v1400
    %v1707 = vpack.c.b16 %v1407, %v1401
    %v1708 = vpack.c.b16 %v1408, %v1402
    %v1709 = vpack.c.b16 %v1409, %v1403
    %v1710 = vpack.c.b16 %v1410, %v1404
    %v1711 = vpack.c.b16 %v1411, %v1405
    %v1712 = vpack.c.b16 %v1418, %v1412
    %v1713 = vpack.c.b16 %v1419, %v1413
    %v1714 = vpack.c.b16 %v1420, %v1414
    %v1715 = vpack.c.b16 %v1421, %v1415
    %v1716 = vpack.c.b16 %v1422, %v1416
    %v1717 = vpack.c.b16 %v1423, %v1417
    %v1718 = vpack.c.b16 %v1430, %v1424
    %v1719 = vpack.c.b16 %v1431, %v1425
    %v1720 = vpack.c.b16 %v1432, %v1426
    %v1721 = vpack.c.b16 %v1433, %v1427
    %v1722 = vpack.c.b16 %v1434, %v1428
    %v1723 = vpack.c.b16 %v1435, %v1429
    %2012 = vmatprep.subr.bf16.mxu0 %v1479
    %2013 = vmatpush1.bf16.msra.mxu0 %v1478
    %2014 = vmatprep.subr.bf16.mxu0 %v1473
    %2015 = vmatpush1.bf16.msra.mxu0 %v1472
    %2016 = vmatprep.subr.bf16.mxu0 %v1467
    %2017 = vmatpush1.bf16.msra.mxu0 %v1466
    %2018 = vmatprep.subr.bf16.mxu0 %v1461
    %2019 = vmatpush1.bf16.msra.mxu0 %v1460
    %2020 = vmatprep.subr.bf16.mxu0 %v1455
    %2021 = vmatpush1.bf16.msra.mxu0 %v1454
    %2022 = vmatprep.subr.bf16.mxu0 %v1449
    %2023 = vmatpush1.bf16.msra.mxu0 %v1448
    %2024 = vmatprep.subr.bf16.mxu0 %v1443
    %2025 = vmatpush1.bf16.msra.mxu0 %v1442
    %2026 = vmatprep.subr.bf16.mxu0 %v1437
    %2027 = vmatpush1.bf16.msra.mxu0 %v1436
    %2028 = vmatprep.subr.bf16.mxu0 %v1527
    %2029 = vmatpush2.bf16.msra.mxu0 %v1526
    %2030 = vmatprep.subr.bf16.mxu0 %v1521
    %2031 = vmatpush2.bf16.msra.mxu0 %v1520
    %2032 = vmatprep.subr.bf16.mxu0 %v1515
    %2033 = vmatpush2.bf16.msra.mxu0 %v1514
    %2034 = vmatprep.subr.bf16.mxu0 %v1509
    %2035 = vmatpush2.bf16.msra.mxu0 %v1508
    %2036 = vmatprep.subr.bf16.mxu0 %v1503
    %2037 = vmatpush2.bf16.msra.mxu0 %v1502
    %2038 = vmatprep.subr.bf16.mxu0 %v1497
    %2039 = vmatpush2.bf16.msra.mxu0 %v1496
    %2040 = vmatprep.subr.bf16.mxu0 %v1491
    %2041 = vmatpush2.bf16.msra.mxu0 %v1490
    %2042 = vmatprep.subr.bf16.mxu0 %v1485
    %2043 = vmatpush2.bf16.msra.mxu0 %v1484
    %2044 = vmatprep.mubr.bf16.mxu0 %v561
    %2045 = vmatmul.mubr.bf16.gmra.mxu0 %v560
    %v2046 = vpop.f32.mrf.mxu0
    %v2047 = vadd.f32 %v515, %v2046
    %v2048 = vpop.f32.mrf.mxu0
    %v2049 = vadd.f32 %v519, %v2048
    %v2050 = vpop.f32.mrf.mxu0
    %v2051 = vadd.f32 %v515, %v2050
    %v2052 = vpop.f32.mrf.mxu0
    %v2053 = vadd.f32 %v519, %v2052
    %2054 = vdwg.mxu0
    %2055 = vmatprep.subr.bf16.mxu0 %v1575
    %2056 = vmatpush1.bf16.msra.mxu0 %v1574
    %2057 = vmatprep.subr.bf16.mxu0 %v1569
    %2058 = vmatpush1.bf16.msra.mxu0 %v1568
    %2059 = vmatprep.subr.bf16.mxu0 %v1563
    %2060 = vmatpush1.bf16.msra.mxu0 %v1562
    %2061 = vmatprep.subr.bf16.mxu0 %v1557
    %2062 = vmatpush1.bf16.msra.mxu0 %v1556
    %2063 = vmatprep.subr.bf16.mxu0 %v1551
    %2064 = vmatpush1.bf16.msra.mxu0 %v1550
    %2065 = vmatprep.subr.bf16.mxu0 %v1545
    %2066 = vmatpush1.bf16.msra.mxu0 %v1544
    %2067 = vmatprep.subr.bf16.mxu0 %v1539
    %2068 = vmatpush1.bf16.msra.mxu0 %v1538
    %2069 = vmatprep.subr.bf16.mxu0 %v1533
    %2070 = vmatpush1.bf16.msra.mxu0 %v1532
    %2071 = vmatprep.subr.bf16.mxu0 %v1623
    %2072 = vmatpush2.bf16.msra.mxu0 %v1622
    %2073 = vmatprep.subr.bf16.mxu0 %v1617
    %2074 = vmatpush2.bf16.msra.mxu0 %v1616
    %2075 = vmatprep.subr.bf16.mxu0 %v1611
    %2076 = vmatpush2.bf16.msra.mxu0 %v1610
    %2077 = vmatprep.subr.bf16.mxu0 %v1605
    %2078 = vmatpush2.bf16.msra.mxu0 %v1604
    %2079 = vmatprep.subr.bf16.mxu0 %v1599
    %2080 = vmatpush2.bf16.msra.mxu0 %v1598
    %2081 = vmatprep.subr.bf16.mxu0 %v1593
    %2082 = vmatpush2.bf16.msra.mxu0 %v1592
    %2083 = vmatprep.subr.bf16.mxu0 %v1587
    %2084 = vmatpush2.bf16.msra.mxu0 %v1586
    %2085 = vmatprep.subr.bf16.mxu0 %v1581
    %2086 = vmatpush2.bf16.msra.mxu0 %v1580
    %2087 = vmatprep.mubr.bf16.mxu0 %v563
    %2088 = vmatmul.mubr.bf16.gmra.mxu0 %v562
    %v2089 = vpop.f32.mrf.mxu0
    %v2090 = vadd.f32 %v2047, %v2089
    %v2091 = vpop.f32.mrf.mxu0
    %v2092 = vadd.f32 %v2049, %v2091
    %v2093 = vpop.f32.mrf.mxu0
    %v2094 = vadd.f32 %v2051, %v2093
    %v2095 = vpop.f32.mrf.mxu0
    %v2096 = vadd.f32 %v2053, %v2095
    %2097 = vdwg.mxu0
    %2098 = vmatprep.subr.bf16.mxu0 %v1671
    %2099 = vmatpush1.bf16.msra.mxu0 %v1670
    %2100 = vmatprep.subr.bf16.mxu0 %v1665
    %2101 = vmatpush1.bf16.msra.mxu0 %v1664
    %2102 = vmatprep.subr.bf16.mxu0 %v1659
    %2103 = vmatpush1.bf16.msra.mxu0 %v1658
    %2104 = vmatprep.subr.bf16.mxu0 %v1653
    %2105 = vmatpush1.bf16.msra.mxu0 %v1652
    %2106 = vmatprep.subr.bf16.mxu0 %v1647
    %2107 = vmatpush1.bf16.msra.mxu0 %v1646
    %2108 = vmatprep.subr.bf16.mxu0 %v1641
    %2109 = vmatpush1.bf16.msra.mxu0 %v1640
    %2110 = vmatprep.subr.bf16.mxu0 %v1635
    %2111 = vmatpush1.bf16.msra.mxu0 %v1634
    %2112 = vmatprep.subr.bf16.mxu0 %v1629
    %2113 = vmatpush1.bf16.msra.mxu0 %v1628
    %2114 = vmatprep.subr.bf16.mxu0 %v1719
    %2115 = vmatpush2.bf16.msra.mxu0 %v1718
    %2116 = vmatprep.subr.bf16.mxu0 %v1713
    %2117 = vmatpush2.bf16.msra.mxu0 %v1712
    %2118 = vmatprep.subr.bf16.mxu0 %v1707
    %2119 = vmatpush2.bf16.msra.mxu0 %v1706
    %2120 = vmatprep.subr.bf16.mxu0 %v1701
    %2121 = vmatpush2.bf16.msra.mxu0 %v1700
    %2122 = vmatprep.subr.bf16.mxu0 %v1695
    %2123 = vmatpush2.bf16.msra.mxu0 %v1694
    %2124 = vmatprep.subr.bf16.mxu0 %v1689
    %2125 = vmatpush2.bf16.msra.mxu0 %v1688
    %2126 = vmatprep.subr.bf16.mxu0 %v1683
    %2127 = vmatpush2.bf16.msra.mxu0 %v1682
    %2128 = vmatprep.subr.bf16.mxu0 %v1677
    %2129 = vmatpush2.bf16.msra.mxu0 %v1676
    %2130 = vmatprep.mubr.bf16.mxu0 %v565
    %2131 = vmatmul.mubr.bf16.gmra.mxu0 %v564
    %v2132 = vpop.f32.mrf.mxu0
    %v2133 = vadd.f32 %v2090, %v2132
    %v2134 = vpop.f32.mrf.mxu0
    %v2135 = vadd.f32 %v2092, %v2134
    %v2136 = vpop.f32.mrf.mxu0
    %v2137 = vadd.f32 %v2094, %v2136
    %v2138 = vpop.f32.mrf.mxu0
    %v2139 = vadd.f32 %v2096, %v2138
    %2140 = vdwg.mxu0
    %2141 = vmatprep.subr.bf16.mxu0 %v1481
    %2142 = vmatpush1.bf16.msra.mxu0 %v1480
    %2143 = vmatprep.subr.bf16.mxu0 %v1475
    %2144 = vmatpush1.bf16.msra.mxu0 %v1474
    %2145 = vmatprep.subr.bf16.mxu0 %v1469
    %2146 = vmatpush1.bf16.msra.mxu0 %v1468
    %2147 = vmatprep.subr.bf16.mxu0 %v1463
    %2148 = vmatpush1.bf16.msra.mxu0 %v1462
    %2149 = vmatprep.subr.bf16.mxu0 %v1457
    %2150 = vmatpush1.bf16.msra.mxu0 %v1456
    %2151 = vmatprep.subr.bf16.mxu0 %v1451
    %2152 = vmatpush1.bf16.msra.mxu0 %v1450
    %2153 = vmatprep.subr.bf16.mxu0 %v1445
    %2154 = vmatpush1.bf16.msra.mxu0 %v1444
    %2155 = vmatprep.subr.bf16.mxu0 %v1439
    %2156 = vmatpush1.bf16.msra.mxu0 %v1438
    %2157 = vmatprep.subr.bf16.mxu0 %v1529
    %2158 = vmatpush2.bf16.msra.mxu0 %v1528
    %2159 = vmatprep.subr.bf16.mxu0 %v1523
    %2160 = vmatpush2.bf16.msra.mxu0 %v1522
    %2161 = vmatprep.subr.bf16.mxu0 %v1517
    %2162 = vmatpush2.bf16.msra.mxu0 %v1516
    %2163 = vmatprep.subr.bf16.mxu0 %v1511
    %2164 = vmatpush2.bf16.msra.mxu0 %v1510
    %2165 = vmatprep.subr.bf16.mxu0 %v1505
    %2166 = vmatpush2.bf16.msra.mxu0 %v1504
    %2167 = vmatprep.subr.bf16.mxu0 %v1499
    %2168 = vmatpush2.bf16.msra.mxu0 %v1498
    %2169 = vmatprep.subr.bf16.mxu0 %v1493
    %2170 = vmatpush2.bf16.msra.mxu0 %v1492
    %2171 = vmatprep.subr.bf16.mxu0 %v1487
    %2172 = vmatpush2.bf16.msra.mxu0 %v1486
    %2173 = vmatprep.mubr.bf16.mxu0 %v561
    %2174 = vmatmul.mubr.bf16.gmra.mxu0 %v560
    %v2175 = vpop.f32.mrf.mxu0
    %v2176 = vadd.f32 %v523, %v2175
    %v2177 = vpop.f32.mrf.mxu0
    %v2178 = vadd.f32 %v527, %v2177
    %v2179 = vpop.f32.mrf.mxu0
    %v2180 = vadd.f32 %v523, %v2179
    %v2181 = vpop.f32.mrf.mxu0
    %v2182 = vadd.f32 %v527, %v2181
    %2183 = vdwg.mxu0
    %2184 = vmatprep.subr.bf16.mxu0 %v1577
    %2185 = vmatpush1.bf16.msra.mxu0 %v1576
    %2186 = vmatprep.subr.bf16.mxu0 %v1571
    %2187 = vmatpush1.bf16.msra.mxu0 %v1570
    %2188 = vmatprep.subr.bf16.mxu0 %v1565
    %2189 = vmatpush1.bf16.msra.mxu0 %v1564
    %2190 = vmatprep.subr.bf16.mxu0 %v1559
    %2191 = vmatpush1.bf16.msra.mxu0 %v1558
    %2192 = vmatprep.subr.bf16.mxu0 %v1553
    %2193 = vmatpush1.bf16.msra.mxu0 %v1552
    %2194 = vmatprep.subr.bf16.mxu0 %v1547
    %2195 = vmatpush1.bf16.msra.mxu0 %v1546
    %2196 = vmatprep.subr.bf16.mxu0 %v1541
    %2197 = vmatpush1.bf16.msra.mxu0 %v1540
    %2198 = vmatprep.subr.bf16.mxu0 %v1535
    %2199 = vmatpush1.bf16.msra.mxu0 %v1534
    %2200 = vmatprep.subr.bf16.mxu0 %v1625
    %2201 = vmatpush2.bf16.msra.mxu0 %v1624
    %2202 = vmatprep.subr.bf16.mxu0 %v1619
    %2203 = vmatpush2.bf16.msra.mxu0 %v1618
    %2204 = vmatprep.subr.bf16.mxu0 %v1613
    %2205 = vmatpush2.bf16.msra.mxu0 %v1612
    %2206 = vmatprep.subr.bf16.mxu0 %v1607
    %2207 = vmatpush2.bf16.msra.mxu0 %v1606
    %2208 = vmatprep.subr.bf16.mxu0 %v1601
    %2209 = vmatpush2.bf16.msra.mxu0 %v1600
    %2210 = vmatprep.subr.bf16.mxu0 %v1595
    %2211 = vmatpush2.bf16.msra.mxu0 %v1594
    %2212 = vmatprep.subr.bf16.mxu0 %v1589
    %2213 = vmatpush2.bf16.msra.mxu0 %v1588
    %2214 = vmatprep.subr.bf16.mxu0 %v1583
    %2215 = vmatpush2.bf16.msra.mxu0 %v1582
    %2216 = vmatprep.mubr.bf16.mxu0 %v563
    %2217 = vmatmul.mubr.bf16.gmra.mxu0 %v562
    %v2218 = vpop.f32.mrf.mxu0
    %v2219 = vadd.f32 %v2176, %v2218
    %v2220 = vpop.f32.mrf.mxu0
    %v2221 = vadd.f32 %v2178, %v2220
    %v2222 = vpop.f32.mrf.mxu0
    %v2223 = vadd.f32 %v2180, %v2222
    %v2224 = vpop.f32.mrf.mxu0
    %v2225 = vadd.f32 %v2182, %v2224
    %2226 = vdwg.mxu0
    %2227 = vmatprep.subr.bf16.mxu0 %v1673
    %2228 = vmatpush1.bf16.msra.mxu0 %v1672
    %2229 = vmatprep.subr.bf16.mxu0 %v1667
    %2230 = vmatpush1.bf16.msra.mxu0 %v1666
    %2231 = vmatprep.subr.bf16.mxu0 %v1661
    %2232 = vmatpush1.bf16.msra.mxu0 %v1660
    %2233 = vmatprep.subr.bf16.mxu0 %v1655
    %2234 = vmatpush1.bf16.msra.mxu0 %v1654
    %2235 = vmatprep.subr.bf16.mxu0 %v1649
    %2236 = vmatpush1.bf16.msra.mxu0 %v1648
    %2237 = vmatprep.subr.bf16.mxu0 %v1643
    %2238 = vmatpush1.bf16.msra.mxu0 %v1642
    %2239 = vmatprep.subr.bf16.mxu0 %v1637
    %2240 = vmatpush1.bf16.msra.mxu0 %v1636
    %2241 = vmatprep.subr.bf16.mxu0 %v1631
    %2242 = vmatpush1.bf16.msra.mxu0 %v1630
    %2243 = vmatprep.subr.bf16.mxu0 %v1721
    %2244 = vmatpush2.bf16.msra.mxu0 %v1720
    %2245 = vmatprep.subr.bf16.mxu0 %v1715
    %2246 = vmatpush2.bf16.msra.mxu0 %v1714
    %2247 = vmatprep.subr.bf16.mxu0 %v1709
    %2248 = vmatpush2.bf16.msra.mxu0 %v1708
    %2249 = vmatprep.subr.bf16.mxu0 %v1703
    %2250 = vmatpush2.bf16.msra.mxu0 %v1702
    %2251 = vmatprep.subr.bf16.mxu0 %v1697
    %2252 = vmatpush2.bf16.msra.mxu0 %v1696
    %2253 = vmatprep.subr.bf16.mxu0 %v1691
    %2254 = vmatpush2.bf16.msra.mxu0 %v1690
    %2255 = vmatprep.subr.bf16.mxu0 %v1685
    %2256 = vmatpush2.bf16.msra.mxu0 %v1684
    %2257 = vmatprep.subr.bf16.mxu0 %v1679
    %2258 = vmatpush2.bf16.msra.mxu0 %v1678
    %2259 = vmatprep.mubr.bf16.mxu0 %v565
    %2260 = vmatmul.mubr.bf16.gmra.mxu0 %v564
    %v2261 = vpop.f32.mrf.mxu0
    %v2262 = vadd.f32 %v2219, %v2261
    %v2263 = vpop.f32.mrf.mxu0
    %v2264 = vadd.f32 %v2221, %v2263
    %v2265 = vpop.f32.mrf.mxu0
    %v2266 = vadd.f32 %v2223, %v2265
    %v2267 = vpop.f32.mrf.mxu0
    %v2268 = vadd.f32 %v2225, %v2267
    %2269 = vdwg.mxu0
    %2270 = vmatprep.subr.bf16.mxu0 %v1483
    %2271 = vmatpush1.bf16.msra.mxu0 %v1482
    %2272 = vmatprep.subr.bf16.mxu0 %v1477
    %2273 = vmatpush1.bf16.msra.mxu0 %v1476
    %2274 = vmatprep.subr.bf16.mxu0 %v1471
    %2275 = vmatpush1.bf16.msra.mxu0 %v1470
    %2276 = vmatprep.subr.bf16.mxu0 %v1465
    %2277 = vmatpush1.bf16.msra.mxu0 %v1464
    %2278 = vmatprep.subr.bf16.mxu0 %v1459
    %2279 = vmatpush1.bf16.msra.mxu0 %v1458
    %2280 = vmatprep.subr.bf16.mxu0 %v1453
    %2281 = vmatpush1.bf16.msra.mxu0 %v1452
    %2282 = vmatprep.subr.bf16.mxu0 %v1447
    %2283 = vmatpush1.bf16.msra.mxu0 %v1446
    %2284 = vmatprep.subr.bf16.mxu0 %v1441
    %2285 = vmatpush1.bf16.msra.mxu0 %v1440
    %2286 = vmatprep.subr.bf16.mxu0 %v1531
    %2287 = vmatpush2.bf16.msra.mxu0 %v1530
    %2288 = vmatprep.subr.bf16.mxu0 %v1525
    %2289 = vmatpush2.bf16.msra.mxu0 %v1524
    %2290 = vmatprep.subr.bf16.mxu0 %v1519
    %2291 = vmatpush2.bf16.msra.mxu0 %v1518
    %2292 = vmatprep.subr.bf16.mxu0 %v1513
    %2293 = vmatpush2.bf16.msra.mxu0 %v1512
    %2294 = vmatprep.subr.bf16.mxu0 %v1507
    %2295 = vmatpush2.bf16.msra.mxu0 %v1506
    %2296 = vmatprep.subr.bf16.mxu0 %v1501
    %2297 = vmatpush2.bf16.msra.mxu0 %v1500
    %2298 = vmatprep.subr.bf16.mxu0 %v1495
    %2299 = vmatpush2.bf16.msra.mxu0 %v1494
    %2300 = vmatprep.subr.bf16.mxu0 %v1489
    %2301 = vmatpush2.bf16.msra.mxu0 %v1488
    %2302 = vmatprep.mubr.bf16.mxu0 %v561
    %2303 = vmatmul.mubr.bf16.gmra.mxu0 %v560
    %v2304 = vpop.f32.mrf.mxu0
    %v2305 = vadd.f32 %v531, %v2304
    %v2306 = vpop.f32.mrf.mxu0
    %v2307 = vadd.f32 %v535, %v2306
    %v2308 = vpop.f32.mrf.mxu0
    %v2309 = vadd.f32 %v531, %v2308
    %v2310 = vpop.f32.mrf.mxu0
    %v2311 = vadd.f32 %v535, %v2310
    %2312 = vdwg.mxu0
    %2313 = vmatprep.subr.bf16.mxu0 %v1579
    %2314 = vmatpush1.bf16.msra.mxu0 %v1578
    %2315 = vmatprep.subr.bf16.mxu0 %v1573
    %2316 = vmatpush1.bf16.msra.mxu0 %v1572
    %2317 = vmatprep.subr.bf16.mxu0 %v1567
    %2318 = vmatpush1.bf16.msra.mxu0 %v1566
    %2319 = vmatprep.subr.bf16.mxu0 %v1561
    %2320 = vmatpush1.bf16.msra.mxu0 %v1560
    %2321 = vmatprep.subr.bf16.mxu0 %v1555
    %2322 = vmatpush1.bf16.msra.mxu0 %v1554
    %2323 = vmatprep.subr.bf16.mxu0 %v1549
    %2324 = vmatpush1.bf16.msra.mxu0 %v1548
    %2325 = vmatprep.subr.bf16.mxu0 %v1543
    %2326 = vmatpush1.bf16.msra.mxu0 %v1542
    %2327 = vmatprep.subr.bf16.mxu0 %v1537
    %2328 = vmatpush1.bf16.msra.mxu0 %v1536
    %2329 = vmatprep.subr.bf16.mxu0 %v1627
    %2330 = vmatpush2.bf16.msra.mxu0 %v1626
    %2331 = vmatprep.subr.bf16.mxu0 %v1621
    %2332 = vmatpush2.bf16.msra.mxu0 %v1620
    %2333 = vmatprep.subr.bf16.mxu0 %v1615
    %2334 = vmatpush2.bf16.msra.mxu0 %v1614
    %2335 = vmatprep.subr.bf16.mxu0 %v1609
    %2336 = vmatpush2.bf16.msra.mxu0 %v1608
    %2337 = vmatprep.subr.bf16.mxu0 %v1603
    %2338 = vmatpush2.bf16.msra.mxu0 %v1602
    %2339 = vmatprep.subr.bf16.mxu0 %v1597
    %2340 = vmatpush2.bf16.msra.mxu0 %v1596
    %2341 = vmatprep.subr.bf16.mxu0 %v1591
    %2342 = vmatpush2.bf16.msra.mxu0 %v1590
    %2343 = vmatprep.subr.bf16.mxu0 %v1585
    %2344 = vmatpush2.bf16.msra.mxu0 %v1584
    %2345 = vmatprep.mubr.bf16.mxu0 %v563
    %2346 = vmatmul.mubr.bf16.gmra.mxu0 %v562
    %v2347 = vpop.f32.mrf.mxu0
    %v2348 = vadd.f32 %v2305, %v2347
    %v2349 = vpop.f32.mrf.mxu0
    %v2350 = vadd.f32 %v2307, %v2349
    %v2351 = vpop.f32.mrf.mxu0
    %v2352 = vadd.f32 %v2309, %v2351
    %v2353 = vpop.f32.mrf.mxu0
    %v2354 = vadd.f32 %v2311, %v2353
    %2355 = vdwg.mxu0
    %2356 = vmatprep.subr.bf16.mxu0 %v1675
    %2357 = vmatpush1.bf16.msra.mxu0 %v1674
    %2358 = vmatprep.subr.bf16.mxu0 %v1669
    %2359 = vmatpush1.bf16.msra.mxu0 %v1668
    %2360 = vmatprep.subr.bf16.mxu0 %v1663
    %2361 = vmatpush1.bf16.msra.mxu0 %v1662
    %2362 = vmatprep.subr.bf16.mxu0 %v1657
    %2363 = vmatpush1.bf16.msra.mxu0 %v1656
    %2364 = vmatprep.subr.bf16.mxu0 %v1651
    %2365 = vmatpush1.bf16.msra.mxu0 %v1650
    %2366 = vmatprep.subr.bf16.mxu0 %v1645
    %2367 = vmatpush1.bf16.msra.mxu0 %v1644
    %2368 = vmatprep.subr.bf16.mxu0 %v1639
    %2369 = vmatpush1.bf16.msra.mxu0 %v1638
    %2370 = vmatprep.subr.bf16.mxu0 %v1633
    %2371 = vmatpush1.bf16.msra.mxu0 %v1632
    %2372 = vmatprep.subr.bf16.mxu0 %v1723
    %2373 = vmatpush2.bf16.msra.mxu0 %v1722
    %2374 = vmatprep.subr.bf16.mxu0 %v1717
    %2375 = vmatpush2.bf16.msra.mxu0 %v1716
    %2376 = vmatprep.subr.bf16.mxu0 %v1711
    %2377 = vmatpush2.bf16.msra.mxu0 %v1710
    %2378 = vmatprep.subr.bf16.mxu0 %v1705
    %2379 = vmatpush2.bf16.msra.mxu0 %v1704
    %2380 = vmatprep.subr.bf16.mxu0 %v1699
    %2381 = vmatpush2.bf16.msra.mxu0 %v1698
    %2382 = vmatprep.subr.bf16.mxu0 %v1693
    %2383 = vmatpush2.bf16.msra.mxu0 %v1692
    %2384 = vmatprep.subr.bf16.mxu0 %v1687
    %2385 = vmatpush2.bf16.msra.mxu0 %v1686
    %2386 = vmatprep.subr.bf16.mxu0 %v1681
    %2387 = vmatpush2.bf16.msra.mxu0 %v1680
    %2388 = vmatprep.mubr.bf16.mxu0 %v565
    %2389 = vmatmul.mubr.bf16.gmra.mxu0 %v564
    %v2390 = vpop.f32.mrf.mxu0
    %v2391 = vadd.f32 %v2348, %v2390
    %v2392 = vpop.f32.mrf.mxu0
    %v2393 = vadd.f32 %v2350, %v2392
    %v2394 = vpop.f32.mrf.mxu0
    %v2395 = vadd.f32 %v2352, %v2394
    %v2396 = vpop.f32.mrf.mxu0
    %v2397 = vadd.f32 %v2354, %v2396
    %2398 = vdwg.mxu0
    %v2399 = vtanh.pop %v2133
    %v2400 = vtanh.pop %v2135
    %v2401 = vtanh.pop %v2262
    %v2402 = vtanh.pop %v2264
    %v2403 = vtanh.pop %v2391
    %v2404 = vtanh.pop %v2393
    %v2405 = vtanh.pop %v2137
    %v2406 = vtanh.pop %v2139
    %v2407 = vtanh.pop %v2266
    %v2408 = vtanh.pop %v2268
    %v2409 = vtanh.pop %v2395
    %v2410 = vtanh.pop %v2397
    %v2411 = vpack.c.bf16 %v2405, %v2399
    %v2412 = vpack.c.bf16 %v2406, %v2400
    %v2413 = vpack.c.bf16 %v2407, %v2401
    %v2414 = vpack.c.bf16 %v2408, %v2402
    %v2415 = vpack.c.bf16 %v2409, %v2403
    %v2416 = vpack.c.bf16 %v2410, %v2404
    %v2417 = vld [vmem:[#allocation5] sm:$0xff]
    %v2418 = vld [vmem:[#allocation5 + $0x8] sm:$0xff]
    %v2419 = vpack.c.bf16 %v2418, %v2417
    %v2420 = vld [vmem:[#allocation10] sm:$0xf]
    %v2421 = vld [vmem:[#allocation10 + $0x4] sm:$0xf]
    %v2422 = vld [vmem:[#allocation11] sm:$0x1]
    %v2424 = vlaneseq
    %v2425 = vshrl.u32 %v2424, 7
    %v2426 = vsub.s32 0, %v2425
    %v2427 = vrot.slane %v2422, %v2426
    %v2431 = vunpack.c.l.b16 %v2420
    %v2432 = vunpack.c.l.b16 %v2421
    %v2433 = vpack.c.b16 %v2432, %v2431
    %vm2435 = vcmask 130048
    %v2437 = vsel %vm2435, %v2419, 0
    %2439 = vmatprep.subr.bf16.mxu0 0
    %2440 = vmatpush1.bf16.msra.mxu0 0
    %2441 = vmatprep.subr.bf16.mxu0 0
    %2442 = vmatpush1.bf16.msra.mxu0 0
    %2443 = vmatprep.subr.bf16.mxu0 0
    %2444 = vmatpush1.bf16.msra.mxu0 0
    %2445 = vmatprep.subr.bf16.mxu0 0
    %2446 = vmatpush1.bf16.msra.mxu0 0
    %2447 = vmatprep.subr.bf16.mxu0 0
    %2448 = vmatpush1.bf16.msra.mxu0 0
    %2449 = vmatprep.subr.bf16.mxu0 0
    %2450 = vmatpush1.bf16.msra.mxu0 0
    %2451 = vmatprep.subr.bf16.mxu0 0
    %2452 = vmatpush1.bf16.msra.mxu0 0
    %2453 = vmatprep.subr.bf16.mxu0 0
    %2454 = vmatpush1.bf16.msra.mxu0 %v2433
    %2455 = vmatprep.subr.bf16.mxu0 0
    %2456 = vmatpush2.bf16.msra.mxu0 0
    %2457 = vmatprep.subr.bf16.mxu0 0
    %2458 = vmatpush2.bf16.msra.mxu0 0
    %2459 = vmatprep.subr.bf16.mxu0 0
    %2460 = vmatpush2.bf16.msra.mxu0 0
    %2461 = vmatprep.subr.bf16.mxu0 0
    %2462 = vmatpush2.bf16.msra.mxu0 0
    %2463 = vmatprep.subr.bf16.mxu0 0
    %2464 = vmatpush2.bf16.msra.mxu0 0
    %2465 = vmatprep.subr.bf16.mxu0 0
    %2466 = vmatpush2.bf16.msra.mxu0 0
    %2467 = vmatprep.subr.bf16.mxu0 0
    %2468 = vmatpush2.bf16.msra.mxu0 0
    %2469 = vmatprep.subr.bf16.mxu0 0
    %2470 = vmatpush2.bf16.msra.mxu0 0
    %2471 = vmatprep.mubr.bf16.mxu0 0
    %2472 = vmatmul.mubr.bf16.gmra.mxu0 %v2437
    %v2473 = vpop.f32.mrf.mxu0
    %v2474 = vadd.f32 %v2427, %v2473
    %v2475 = vpop.f32.mrf.mxu0
    %v2476 = vpop.f32.mrf.mxu0
    %v2477 = vadd.f32 %v2427, %v2476
    %v2478 = vpop.f32.mrf.mxu0
    %2479 = vdwg.mxu0
    %v2480 = vmax.f32 %v2474, 0.0
    %v2481 = vmax.f32 %v2477, 0.0
    %v2482 = vpack.c.bf16 %v2481, %v2480
    %v2483 = vld [vmem:[%s6] sm:$0xf]
    %v2484 = vld [vmem:[%s6 + $0x4] sm:$0xf]
    %v2485 = vld [vmem:[%s6 + $0x8] sm:$0xf]
    %v2486 = vld [vmem:[%s6 + $0xc] sm:$0xf]
    %v2487 = vld [vmem:[%s6 + $0x10] sm:$0xf]
    %v2488 = vld [vmem:[%s6 + $0x14] sm:$0xf]
    %v2489 = vld [vmem:[%s6 + $0x18] sm:$0xf]
    %v2490 = vld [vmem:[%s6 + $0x1c] sm:$0xf]
    %v2491 = vld [vmem:[#allocation13] sm:$0x1]
    %v2493 = vlaneseq
    %v2494 = vshrl.u32 %v2493, 7
    %v2495 = vsub.s32 0, %v2494
    %v2496 = vrot.slane %v2491, %v2495
    %v2506 = vunpack.c.l.b16 %v2483
    %v2507 = vunpack.c.l.b16 %v2484
    %v2508 = vunpack.c.l.b16 %v2485
    %v2509 = vunpack.c.l.b16 %v2486
    %v2510 = vunpack.c.l.b16 %v2487
    %v2511 = vunpack.c.l.b16 %v2488
    %v2512 = vunpack.c.l.b16 %v2489
    %v2513 = vunpack.c.l.b16 %v2490
    %v2514 = vpack.c.b16 %v2507, %v2506
    %v2515 = vpack.c.b16 %v2509, %v2508
    %v2516 = vpack.c.b16 %v2511, %v2510
    %v2517 = vpack.c.b16 %v2513, %v2512
    %vm2522 = vcmask 523264
    %v2524 = vsel %vm2522, %v2482, 0
    %2526 = vmatprep.subr.bf16.mxu0 0
    %2527 = vmatpush1.bf16.msra.mxu0 0
    %2528 = vmatprep.subr.bf16.mxu0 0
    %2529 = vmatpush1.bf16.msra.mxu0 0
    %2530 = vmatprep.subr.bf16.mxu0 0
    %2531 = vmatpush1.bf16.msra.mxu0 0
    %2532 = vmatprep.subr.bf16.mxu0 0
    %2533 = vmatpush1.bf16.msra.mxu0 0
    %2534 = vmatprep.subr.bf16.mxu0 0
    %2535 = vmatpush1.bf16.msra.mxu0 %v2517
    %2536 = vmatprep.subr.bf16.mxu0 0
    %2537 = vmatpush1.bf16.msra.mxu0 %v2516
    %2538 = vmatprep.subr.bf16.mxu0 0
    %2539 = vmatpush1.bf16.msra.mxu0 %v2515
    %2540 = vmatprep.subr.bf16.mxu0 0
    %2541 = vmatpush1.bf16.msra.mxu0 %v2514
    %2542 = vmatprep.subr.bf16.mxu0 0
    %2543 = vmatpush2.bf16.msra.mxu0 0
    %2544 = vmatprep.subr.bf16.mxu0 0
    %2545 = vmatpush2.bf16.msra.mxu0 0
    %2546 = vmatprep.subr.bf16.mxu0 0
    %2547 = vmatpush2.bf16.msra.mxu0 0
    %2548 = vmatprep.subr.bf16.mxu0 0
    %2549 = vmatpush2.bf16.msra.mxu0 0
    %2550 = vmatprep.subr.bf16.mxu0 0
    %2551 = vmatpush2.bf16.msra.mxu0 0
    %2552 = vmatprep.subr.bf16.mxu0 0
    %2553 = vmatpush2.bf16.msra.mxu0 0
    %2554 = vmatprep.subr.bf16.mxu0 0
    %2555 = vmatpush2.bf16.msra.mxu0 0
    %2556 = vmatprep.subr.bf16.mxu0 0
    %2557 = vmatpush2.bf16.msra.mxu0 0
    %2558 = vmatprep.mubr.bf16.mxu0 0
    %2559 = vmatmul.mubr.bf16.gmra.mxu0 %v2524
    %v2560 = vpop.f32.mrf.mxu0
    %v2561 = vadd.f32 %v2496, %v2560
    %v2562 = vpop.f32.mrf.mxu0
    %v2563 = vpop.f32.mrf.mxu0
    %v2564 = vadd.f32 %v2496, %v2563
    %v2565 = vpop.f32.mrf.mxu0
    %2566 = vdwg.mxu0
    %v2567 = vmax.f32 %v2561, 0.0
    %v2568 = vmax.f32 %v2564, 0.0
    %v2569 = vpack.c.bf16 %v2568, %v2567
    %v2570 = vld [vmem:[#allocation14] sm:$0xff]
    %v2571 = vld [vmem:[#allocation14 + $0x8] sm:$0xff]
    %v2572 = vld [vmem:[#allocation14 + $0x10] sm:$0xff]
    %v2573 = vld [vmem:[#allocation14 + $0x18] sm:$0xf]
    %v2574 = vld [vmem:[#allocation14 + $0x1c] sm:$0xff]
    %v2575 = vld [vmem:[#allocation14 + $0x24] sm:$0xff]
    %v2576 = vld [vmem:[#allocation14 + $0x2c] sm:$0xff]
    %v2577 = vld [vmem:[#allocation14 + $0x34] sm:$0xf]
    %v2578 = vld [vmem:[#allocation14 + $0x38] sm:$0xff]
    %v2579 = vld [vmem:[#allocation14 + $0x40] sm:$0xff]
    %v2580 = vld [vmem:[#allocation14 + $0x48] sm:$0xff]
    %v2581 = vld [vmem:[#allocation14 + $0x50] sm:$0xf]
    %v2582 = vld [vmem:[#allocation14 + $0x54] sm:$0xff]
    %v2583 = vld [vmem:[#allocation14 + $0x5c] sm:$0xff]
    %v2584 = vld [vmem:[#allocation14 + $0x64] sm:$0xff]
    %v2585 = vld [vmem:[#allocation14 + $0x6c] sm:$0xf]
    %v2586 = vld [vmem:[#allocation14 + $0x70] sm:$0xff]
    %v2587 = vld [vmem:[#allocation14 + $0x78] sm:$0xff]
    %v2588 = vld [vmem:[#allocation14 + $0x80] sm:$0xff]
    %v2589 = vld [vmem:[#allocation14 + $0x88] sm:$0xf]
    %v2590 = vld [vmem:[#allocation14 + $0x8c] sm:$0xff]
    %v2591 = vld [vmem:[#allocation14 + $0x94] sm:$0xff]
    %v2592 = vld [vmem:[#allocation14 + $0x9c] sm:$0xff]
    %v2593 = vld [vmem:[#allocation14 + $0xa4] sm:$0xf]
    %v2594 = vld [vmem:[#allocation14 + $0xa8] sm:$0xff]
    %v2595 = vld [vmem:[#allocation14 + $0xb0] sm:$0xff]
    %v2596 = vld [vmem:[#allocation14 + $0xb8] sm:$0xff]
    %v2597 = vld [vmem:[#allocation14 + $0xc0] sm:$0xf]
    %v2598 = vld [vmem:[#allocation14 + $0xc4] sm:$0xff]
    %v2599 = vld [vmem:[#allocation14 + $0xcc] sm:$0xff]
    %v2600 = vld [vmem:[#allocation14 + $0xd4] sm:$0xff]
    %v2601 = vld [vmem:[#allocation14 + $0xdc] sm:$0xf]
    %v2602 = vld [vmem:[#allocation14 + $0xe0] sm:$0xff]
    %v2603 = vld [vmem:[#allocation14 + $0xe8] sm:$0xff]
    %v2604 = vld [vmem:[#allocation14 + $0xf0] sm:$0xff]
    %v2605 = vld [vmem:[#allocation14 + $0xf8] sm:$0xf]
    %v2606 = vld [vmem:[#allocation14 + $0xfc] sm:$0xff]
    %v2607 = vld [vmem:[#allocation14 + $0x104] sm:$0xff]
    %v2608 = vld [vmem:[#allocation14 + $0x10c] sm:$0xff]
    %v2609 = vld [vmem:[#allocation14 + $0x114] sm:$0xf]
    %v2610 = vld [vmem:[#allocation14 + $0x118] sm:$0xff]
    %v2611 = vld [vmem:[#allocation14 + $0x120] sm:$0xff]
    %v2612 = vld [vmem:[#allocation14 + $0x128] sm:$0xff]
    %v2613 = vld [vmem:[#allocation14 + $0x130] sm:$0xf]
    %v2614 = vld [vmem:[#allocation14 + $0x134] sm:$0xff]
    %v2615 = vld [vmem:[#allocation14 + $0x13c] sm:$0xff]
    %v2616 = vld [vmem:[#allocation14 + $0x144] sm:$0xff]
    %v2617 = vld [vmem:[#allocation14 + $0x14c] sm:$0xf]
    %v2618 = vld [vmem:[#allocation14 + $0x150] sm:$0xff]
    %v2619 = vld [vmem:[#allocation14 + $0x158] sm:$0xff]
    %v2620 = vld [vmem:[#allocation14 + $0x160] sm:$0xff]
    %v2621 = vld [vmem:[#allocation14 + $0x168] sm:$0xf]
    %v2622 = vld [vmem:[#allocation14 + $0x16c] sm:$0xff]
    %v2623 = vld [vmem:[#allocation14 + $0x174] sm:$0xff]
    %v2624 = vld [vmem:[#allocation14 + $0x17c] sm:$0xff]
    %v2625 = vld [vmem:[#allocation14 + $0x184] sm:$0xf]
    %v2626 = vld [vmem:[#allocation14 + $0x188] sm:$0xff]
    %v2627 = vld [vmem:[#allocation14 + $0x190] sm:$0xff]
    %v2628 = vld [vmem:[#allocation14 + $0x198] sm:$0xff]
    %v2629 = vld [vmem:[#allocation14 + $0x1a0] sm:$0xf]
    %v2630 = vld [vmem:[#allocation14 + $0x1a4] sm:$0xff]
    %v2631 = vld [vmem:[#allocation14 + $0x1ac] sm:$0xff]
    %v2632 = vld [vmem:[#allocation14 + $0x1b4] sm:$0xff]
    %v2633 = vld [vmem:[#allocation14 + $0x1bc] sm:$0xf]
    %v2634 = vld [vmem:[#allocation14 + $0x1c0] sm:$0xff]
    %v2635 = vld [vmem:[#allocation14 + $0x1c8] sm:$0xff]
    %v2636 = vld [vmem:[#allocation14 + $0x1d0] sm:$0xff]
    %v2637 = vld [vmem:[#allocation14 + $0x1d8] sm:$0xf]
    %v2638 = vld [vmem:[#allocation14 + $0x1dc] sm:$0xff]
    %v2639 = vld [vmem:[#allocation14 + $0x1e4] sm:$0xff]
    %v2640 = vld [vmem:[#allocation14 + $0x1ec] sm:$0xff]
    %v2641 = vld [vmem:[#allocation14 + $0x1f4] sm:$0xf]
    %v2642 = vld [vmem:[#allocation14 + $0x1f8] sm:$0xff]
    %v2643 = vld [vmem:[#allocation14 + $0x200] sm:$0xff]
    %v2644 = vld [vmem:[#allocation14 + $0x208] sm:$0xff]
    %v2645 = vld [vmem:[#allocation14 + $0x210] sm:$0xf]
    %v2646 = vld [vmem:[#allocation14 + $0x214] sm:$0xff]
    %v2647 = vld [vmem:[#allocation14 + $0x21c] sm:$0xff]
    %v2648 = vld [vmem:[#allocation14 + $0x224] sm:$0xff]
    %v2649 = vld [vmem:[#allocation14 + $0x22c] sm:$0xf]
    %v2650 = vld [vmem:[#allocation14 + $0x230] sm:$0xff]
    %v2651 = vld [vmem:[#allocation14 + $0x238] sm:$0xff]
    %v2652 = vld [vmem:[#allocation14 + $0x240] sm:$0xff]
    %v2653 = vld [vmem:[#allocation14 + $0x248] sm:$0xf]
    %v2654 = vld [vmem:[#allocation14 + $0x24c] sm:$0xff]
    %v2655 = vld [vmem:[#allocation14 + $0x254] sm:$0xff]
    %v2656 = vld [vmem:[#allocation14 + $0x25c] sm:$0xff]
    %v2657 = vld [vmem:[#allocation14 + $0x264] sm:$0xf]
    %v2658 = vld [vmem:[#allocation14 + $0x268] sm:$0xff]
    %v2659 = vld [vmem:[#allocation14 + $0x270] sm:$0xff]
    %v2660 = vld [vmem:[#allocation14 + $0x278] sm:$0xff]
    %v2661 = vld [vmem:[#allocation14 + $0x280] sm:$0xf]
    %v2662 = vld [vmem:[#allocation14 + $0x284] sm:$0xff]
    %v2663 = vld [vmem:[#allocation14 + $0x28c] sm:$0xff]
    %v2664 = vld [vmem:[#allocation14 + $0x294] sm:$0xff]
    %v2665 = vld [vmem:[#allocation14 + $0x29c] sm:$0xf]
    %v2666 = vld [vmem:[#allocation14 + $0x2a0] sm:$0xff]
    %v2667 = vld [vmem:[#allocation14 + $0x2a8] sm:$0xff]
    %v2668 = vld [vmem:[#allocation14 + $0x2b0] sm:$0xff]
    %v2669 = vld [vmem:[#allocation14 + $0x2b8] sm:$0xf]
    %v2670 = vld [vmem:[#allocation14 + $0x2bc] sm:$0xff]
    %v2671 = vld [vmem:[#allocation14 + $0x2c4] sm:$0xff]
    %v2672 = vld [vmem:[#allocation14 + $0x2cc] sm:$0xff]
    %v2673 = vld [vmem:[#allocation14 + $0x2d4] sm:$0xf]
    %v2674 = vld [vmem:[#allocation14 + $0x2d8] sm:$0xff]
    %v2675 = vld [vmem:[#allocation14 + $0x2e0] sm:$0xff]
    %v2676 = vld [vmem:[#allocation14 + $0x2e8] sm:$0xff]
    %v2677 = vld [vmem:[#allocation14 + $0x2f0] sm:$0xf]
    %v2678 = vld [vmem:[#allocation14 + $0x2f4] sm:$0xff]
    %v2679 = vld [vmem:[#allocation14 + $0x2fc] sm:$0xff]
    %v2680 = vld [vmem:[#allocation14 + $0x304] sm:$0xff]
    %v2681 = vld [vmem:[#allocation14 + $0x30c] sm:$0xf]
    %v2682 = vld [vmem:[#allocation14 + $0x310] sm:$0xff]
    %v2683 = vld [vmem:[#allocation14 + $0x318] sm:$0xff]
    %v2684 = vld [vmem:[#allocation14 + $0x320] sm:$0xff]
    %v2685 = vld [vmem:[#allocation14 + $0x328] sm:$0xf]
    %v2686 = vld [vmem:[#allocation14 + $0x32c] sm:$0xff]
    %v2687 = vld [vmem:[#allocation14 + $0x334] sm:$0xff]
    %v2688 = vld [vmem:[#allocation14 + $0x33c] sm:$0xff]
    %v2689 = vld [vmem:[#allocation14 + $0x344] sm:$0xf]
    %v2690 = vld [vmem:[#allocation14 + $0x348] sm:$0xff]
    %v2691 = vld [vmem:[#allocation14 + $0x350] sm:$0xff]
    %v2692 = vld [vmem:[#allocation14 + $0x358] sm:$0xff]
    %v2693 = vld [vmem:[#allocation14 + $0x360] sm:$0xf]
    %v2694 = vld [vmem:[#allocation14 + $0x364] sm:$0xff]
    %v2695 = vld [vmem:[#allocation14 + $0x36c] sm:$0xff]
    %v2696 = vld [vmem:[#allocation14 + $0x374] sm:$0xff]
    %v2697 = vld [vmem:[#allocation14 + $0x37c] sm:$0xf]
    %v2698 = vld [vmem:[#allocation14 + $0x380] sm:$0xff]
    %v2699 = vld [vmem:[#allocation14 + $0x388] sm:$0xff]
    %v2700 = vld [vmem:[#allocation14 + $0x390] sm:$0xff]
    %v2701 = vld [vmem:[#allocation14 + $0x398] sm:$0xf]
    %v2702 = vld [vmem:[#allocation14 + $0x39c] sm:$0xff]
    %v2703 = vld [vmem:[#allocation14 + $0x3a4] sm:$0xff]
    %v2704 = vld [vmem:[#allocation14 + $0x3ac] sm:$0xff]
    %v2705 = vld [vmem:[#allocation14 + $0x3b4] sm:$0xf]
    %v2706 = vld [vmem:[#allocation14 + $0x3b8] sm:$0xff]
    %v2707 = vld [vmem:[#allocation14 + $0x3c0] sm:$0xff]
    %v2708 = vld [vmem:[#allocation14 + $0x3c8] sm:$0xff]
    %v2709 = vld [vmem:[#allocation14 + $0x3d0] sm:$0xf]
    %v2710 = vld [vmem:[#allocation14 + $0x3d4] sm:$0xff]
    %v2711 = vld [vmem:[#allocation14 + $0x3dc] sm:$0xff]
    %v2712 = vld [vmem:[#allocation14 + $0x3e4] sm:$0xff]
    %v2713 = vld [vmem:[#allocation14 + $0x3ec] sm:$0xf]
    %v2714 = vld [vmem:[#allocation14 + $0x3f0] sm:$0xff]
    %v2715 = vld [vmem:[#allocation14 + $0x3f8] sm:$0xff]
    %v2716 = vld [vmem:[#allocation14 + $0x400] sm:$0xff]
    %v2717 = vld [vmem:[#allocation14 + $0x408] sm:$0xf]
    %v2718 = vld [vmem:[#allocation14 + $0x40c] sm:$0xff]
    %v2719 = vld [vmem:[#allocation14 + $0x414] sm:$0xff]
    %v2720 = vld [vmem:[#allocation14 + $0x41c] sm:$0xff]
    %v2721 = vld [vmem:[#allocation14 + $0x424] sm:$0xf]
    %v2722 = vld [vmem:[#allocation14 + $0x428] sm:$0xff]
    %v2723 = vld [vmem:[#allocation14 + $0x430] sm:$0xff]
    %v2724 = vld [vmem:[#allocation14 + $0x438] sm:$0xff]
    %v2725 = vld [vmem:[#allocation14 + $0x440] sm:$0xf]
    %v2726 = vld [vmem:[#allocation14 + $0x444] sm:$0xff]
    %v2727 = vld [vmem:[#allocation14 + $0x44c] sm:$0xff]
    %v2728 = vld [vmem:[#allocation14 + $0x454] sm:$0xff]
    %v2729 = vld [vmem:[#allocation14 + $0x45c] sm:$0xf]
    %v2730 = vld [vmem:[#allocation14 + $0x460] sm:$0xff]
    %v2731 = vld [vmem:[#allocation14 + $0x468] sm:$0xff]
    %v2732 = vld [vmem:[#allocation14 + $0x470] sm:$0xff]
    %v2733 = vld [vmem:[#allocation14 + $0x478] sm:$0xf]
    %v2734 = vld [vmem:[#allocation14 + $0x47c] sm:$0xff]
    %v2735 = vld [vmem:[#allocation14 + $0x484] sm:$0xff]
    %v2736 = vld [vmem:[#allocation14 + $0x48c] sm:$0xff]
    %v2737 = vld [vmem:[#allocation14 + $0x494] sm:$0xf]
    %v2738 = vld [vmem:[#allocation14 + $0x498] sm:$0xff]
    %v2739 = vld [vmem:[#allocation14 + $0x4a0] sm:$0xff]
    %v2740 = vld [vmem:[#allocation14 + $0x4a8] sm:$0xff]
    %v2741 = vld [vmem:[#allocation14 + $0x4b0] sm:$0xf]
    %v2742 = vld [vmem:[#allocation14 + $0x4b4] sm:$0xff]
    %v2743 = vld [vmem:[#allocation14 + $0x4bc] sm:$0xff]
    %v2744 = vld [vmem:[#allocation14 + $0x4c4] sm:$0xff]
    %v2745 = vld [vmem:[#allocation14 + $0x4cc] sm:$0xf]
    %v2746 = vld [vmem:[#allocation14 + $0x4d0] sm:$0xff]
    %v2747 = vld [vmem:[#allocation14 + $0x4d8] sm:$0xff]
    %v2748 = vld [vmem:[#allocation14 + $0x4e0] sm:$0xff]
    %v2749 = vld [vmem:[#allocation14 + $0x4e8] sm:$0xf]
    %v2750 = vld [vmem:[#allocation14 + $0x4ec] sm:$0xff]
    %v2751 = vld [vmem:[#allocation14 + $0x4f4] sm:$0xff]
    %v2752 = vld [vmem:[#allocation14 + $0x4fc] sm:$0xff]
    %v2753 = vld [vmem:[#allocation14 + $0x504] sm:$0xf]
    %v2754 = vld [vmem:[#allocation14 + $0x508] sm:$0xff]
    %v2755 = vld [vmem:[#allocation14 + $0x510] sm:$0xff]
    %v2756 = vld [vmem:[#allocation14 + $0x518] sm:$0xff]
    %v2757 = vld [vmem:[#allocation14 + $0x520] sm:$0xf]
    %v2758 = vld [vmem:[#allocation14 + $0x524] sm:$0xff]
    %v2759 = vld [vmem:[#allocation14 + $0x52c] sm:$0xff]
    %v2760 = vld [vmem:[#allocation14 + $0x534] sm:$0xff]
    %v2761 = vld [vmem:[#allocation14 + $0x53c] sm:$0xf]
    %v2762 = vld [vmem:[#allocation14 + $0x540] sm:$0xff]
    %v2763 = vld [vmem:[#allocation14 + $0x548] sm:$0xff]
    %v2764 = vld [vmem:[#allocation14 + $0x550] sm:$0xff]
    %v2765 = vld [vmem:[#allocation14 + $0x558] sm:$0xf]
    %v2766 = vld [vmem:[#allocation14 + $0x55c] sm:$0xff]
    %v2767 = vld [vmem:[#allocation14 + $0x564] sm:$0xff]
    %v2768 = vld [vmem:[#allocation14 + $0x56c] sm:$0xff]
    %v2769 = vld [vmem:[#allocation14 + $0x574] sm:$0xf]
    %v2770 = vld [vmem:[#allocation14 + $0x578] sm:$0xff]
    %v2771 = vld [vmem:[#allocation14 + $0x580] sm:$0xff]
    %v2772 = vld [vmem:[#allocation14 + $0x588] sm:$0xff]
    %v2773 = vld [vmem:[#allocation14 + $0x590] sm:$0xf]
    %v2774 = vld [vmem:[#allocation14 + $0x594] sm:$0xff]
    %v2775 = vld [vmem:[#allocation14 + $0x59c] sm:$0xff]
    %v2776 = vld [vmem:[#allocation14 + $0x5a4] sm:$0xff]
    %v2777 = vld [vmem:[#allocation14 + $0x5ac] sm:$0xf]
    %v2778 = vld [vmem:[#allocation14 + $0x5b0] sm:$0xff]
    %v2779 = vld [vmem:[#allocation14 + $0x5b8] sm:$0xff]
    %v2780 = vld [vmem:[#allocation14 + $0x5c0] sm:$0xff]
    %v2781 = vld [vmem:[#allocation14 + $0x5c8] sm:$0xf]
    %v2782 = vld [vmem:[#allocation14 + $0x5cc] sm:$0xff]
    %v2783 = vld [vmem:[#allocation14 + $0x5d4] sm:$0xff]
    %v2784 = vld [vmem:[#allocation14 + $0x5dc] sm:$0xff]
    %v2785 = vld [vmem:[#allocation14 + $0x5e4] sm:$0xf]
    %v2786 = vld [vmem:[#allocation14 + $0x5e8] sm:$0xff]
    %v2787 = vld [vmem:[#allocation14 + $0x5f0] sm:$0xff]
    %v2788 = vld [vmem:[#allocation14 + $0x5f8] sm:$0xff]
    %v2789 = vld [vmem:[#allocation14 + $0x600] sm:$0xf]
    %v2790 = vld [vmem:[#allocation14 + $0x604] sm:$0xff]
    %v2791 = vld [vmem:[#allocation14 + $0x60c] sm:$0xff]
    %v2792 = vld [vmem:[#allocation14 + $0x614] sm:$0xff]
    %v2793 = vld [vmem:[#allocation14 + $0x61c] sm:$0xf]
    %v2794 = vld [vmem:[#allocation14 + $0x620] sm:$0xff]
    %v2795 = vld [vmem:[#allocation14 + $0x628] sm:$0xff]
    %v2796 = vld [vmem:[#allocation14 + $0x630] sm:$0xff]
    %v2797 = vld [vmem:[#allocation14 + $0x638] sm:$0xf]
    %v2798 = vld [vmem:[#allocation14 + $0x63c] sm:$0xff]
    %v2799 = vld [vmem:[#allocation14 + $0x644] sm:$0xff]
    %v2800 = vld [vmem:[#allocation14 + $0x64c] sm:$0xff]
    %v2801 = vld [vmem:[#allocation14 + $0x654] sm:$0xf]
    %v2802 = vld [vmem:[#allocation14 + $0x658] sm:$0xff]
    %v2803 = vld [vmem:[#allocation14 + $0x660] sm:$0xff]
    %v2804 = vld [vmem:[#allocation14 + $0x668] sm:$0xff]
    %v2805 = vld [vmem:[#allocation14 + $0x670] sm:$0xf]
    %v2806 = vld [vmem:[#allocation14 + $0x674] sm:$0xff]
    %v2807 = vld [vmem:[#allocation14 + $0x67c] sm:$0xff]
    %v2808 = vld [vmem:[#allocation14 + $0x684] sm:$0xff]
    %v2809 = vld [vmem:[#allocation14 + $0x68c] sm:$0xf]
    %v2810 = vld [vmem:[#allocation14 + $0x690] sm:$0xff]
    %v2811 = vld [vmem:[#allocation14 + $0x698] sm:$0xff]
    %v2812 = vld [vmem:[#allocation14 + $0x6a0] sm:$0xff]
    %v2813 = vld [vmem:[#allocation14 + $0x6a8] sm:$0xf]
    %v2814 = vld [vmem:[#allocation14 + $0x6ac] sm:$0xff]
    %v2815 = vld [vmem:[#allocation14 + $0x6b4] sm:$0xff]
    %v2816 = vld [vmem:[#allocation14 + $0x6bc] sm:$0xff]
    %v2817 = vld [vmem:[#allocation14 + $0x6c4] sm:$0xf]
    %v2818 = vld [vmem:[#allocation14 + $0x6c8] sm:$0xff]
    %v2819 = vld [vmem:[#allocation14 + $0x6d0] sm:$0xff]
    %v2820 = vld [vmem:[#allocation14 + $0x6d8] sm:$0xff]
    %v2821 = vld [vmem:[#allocation14 + $0x6e0] sm:$0xf]
    %v2822 = vld [vmem:[#allocation14 + $0x6e4] sm:$0xff]
    %v2823 = vld [vmem:[#allocation14 + $0x6ec] sm:$0xff]
    %v2824 = vld [vmem:[#allocation14 + $0x6f4] sm:$0xff]
    %v2825 = vld [vmem:[#allocation14 + $0x6fc] sm:$0xf]
    %v2826 = vld [vmem:[#allocation14 + $0x700] sm:$0xff]
    %v2827 = vld [vmem:[#allocation14 + $0x708] sm:$0xff]
    %v2828 = vld [vmem:[#allocation14 + $0x710] sm:$0xff]
    %v2829 = vld [vmem:[#allocation14 + $0x718] sm:$0xf]
    %v2830 = vld [vmem:[#allocation14 + $0x71c] sm:$0xff]
    %v2831 = vld [vmem:[#allocation14 + $0x724] sm:$0xff]
    %v2832 = vld [vmem:[#allocation14 + $0x72c] sm:$0xff]
    %v2833 = vld [vmem:[#allocation14 + $0x734] sm:$0xf]
    %v2834 = vld [vmem:[#allocation14 + $0x738] sm:$0xff]
    %v2835 = vld [vmem:[#allocation14 + $0x740] sm:$0xff]
    %v2836 = vld [vmem:[#allocation14 + $0x748] sm:$0xff]
    %v2837 = vld [vmem:[#allocation14 + $0x750] sm:$0xf]
    %v2838 = vld [vmem:[#allocation14 + $0x754] sm:$0xff]
    %v2839 = vld [vmem:[#allocation14 + $0x75c] sm:$0xff]
    %v2840 = vld [vmem:[#allocation14 + $0x764] sm:$0xff]
    %v2841 = vld [vmem:[#allocation14 + $0x76c] sm:$0xf]
    %v2842 = vld [vmem:[#allocation14 + $0x770] sm:$0xff]
    %v2843 = vld [vmem:[#allocation14 + $0x778] sm:$0xff]
    %v2844 = vld [vmem:[#allocation14 + $0x780] sm:$0xff]
    %v2845 = vld [vmem:[#allocation14 + $0x788] sm:$0xf]
    %v2846 = vld [vmem:[#allocation14 + $0x78c] sm:$0xff]
    %v2847 = vld [vmem:[#allocation14 + $0x794] sm:$0xff]
    %v2848 = vld [vmem:[#allocation14 + $0x79c] sm:$0xff]
    %v2849 = vld [vmem:[#allocation14 + $0x7a4] sm:$0xf]
    %v2850 = vld [vmem:[#allocation14 + $0x7a8] sm:$0xff]
    %v2851 = vld [vmem:[#allocation14 + $0x7b0] sm:$0xff]
    %v2852 = vld [vmem:[#allocation14 + $0x7b8] sm:$0xff]
    %v2853 = vld [vmem:[#allocation14 + $0x7c0] sm:$0xf]
    %v2854 = vld [vmem:[#allocation14 + $0x7c4] sm:$0xff]
    %v2855 = vld [vmem:[#allocation14 + $0x7cc] sm:$0xff]
    %v2856 = vld [vmem:[#allocation14 + $0x7d4] sm:$0xff]
    %v2857 = vld [vmem:[#allocation14 + $0x7dc] sm:$0xf]
    %v2858 = vld [vmem:[#allocation14 + $0x7e0] sm:$0xff]
    %v2859 = vld [vmem:[#allocation14 + $0x7e8] sm:$0xff]
    %v2860 = vld [vmem:[#allocation14 + $0x7f0] sm:$0xff]
    %v2861 = vld [vmem:[#allocation14 + $0x7f8] sm:$0xf]
    %v2862 = vld [vmem:[#allocation14 + $0x7fc] sm:$0xff]
    %v2863 = vld [vmem:[#allocation14 + $0x804] sm:$0xff]
    %v2864 = vld [vmem:[#allocation14 + $0x80c] sm:$0xff]
    %v2865 = vld [vmem:[#allocation14 + $0x814] sm:$0xf]
    %v2866 = vld [vmem:[#allocation14 + $0x818] sm:$0xff]
    %v2867 = vld [vmem:[#allocation14 + $0x820] sm:$0xff]
    %v2868 = vld [vmem:[#allocation14 + $0x828] sm:$0xff]
    %v2869 = vld [vmem:[#allocation14 + $0x830] sm:$0xf]
    %v2870 = vld [vmem:[#allocation14 + $0x834] sm:$0xff]
    %v2871 = vld [vmem:[#allocation14 + $0x83c] sm:$0xff]
    %v2872 = vld [vmem:[#allocation14 + $0x844] sm:$0xff]
    %v2873 = vld [vmem:[#allocation14 + $0x84c] sm:$0xf]
    %v2874 = vld [vmem:[#allocation14 + $0x850] sm:$0xff]
    %v2875 = vld [vmem:[#allocation14 + $0x858] sm:$0xff]
    %v2876 = vld [vmem:[#allocation14 + $0x860] sm:$0xff]
    %v2877 = vld [vmem:[#allocation14 + $0x868] sm:$0xf]
    %v2878 = vld [vmem:[#allocation14 + $0x86c] sm:$0xff]
    %v2879 = vld [vmem:[#allocation14 + $0x874] sm:$0xff]
    %v2880 = vld [vmem:[#allocation14 + $0x87c] sm:$0xff]
    %v2881 = vld [vmem:[#allocation14 + $0x884] sm:$0xf]
    %v2882 = vld [vmem:[#allocation14 + $0x888] sm:$0xff]
    %v2883 = vld [vmem:[#allocation14 + $0x890] sm:$0xff]
    %v2884 = vld [vmem:[#allocation14 + $0x898] sm:$0xff]
    %v2885 = vld [vmem:[#allocation14 + $0x8a0] sm:$0xf]
    %v2886 = vld [vmem:[#allocation14 + $0x8a4] sm:$0xff]
    %v2887 = vld [vmem:[#allocation14 + $0x8ac] sm:$0xff]
    %v2888 = vld [vmem:[#allocation14 + $0x8b4] sm:$0xff]
    %v2889 = vld [vmem:[#allocation14 + $0x8bc] sm:$0xf]
    %v2890 = vld [vmem:[#allocation14 + $0x8c0] sm:$0xff]
    %v2891 = vld [vmem:[#allocation14 + $0x8c8] sm:$0xff]
    %v2892 = vld [vmem:[#allocation14 + $0x8d0] sm:$0xff]
    %v2893 = vld [vmem:[#allocation14 + $0x8d8] sm:$0xf]
    %v2894 = vld [vmem:[#allocation14 + $0x8dc] sm:$0xff]
    %v2895 = vld [vmem:[#allocation14 + $0x8e4] sm:$0xff]
    %v2896 = vld [vmem:[#allocation14 + $0x8ec] sm:$0xff]
    %v2897 = vld [vmem:[#allocation14 + $0x8f4] sm:$0xf]
    %v2898 = vld [vmem:[#allocation14 + $0x8f8] sm:$0xff]
    %v2899 = vld [vmem:[#allocation14 + $0x900] sm:$0xff]
    %v2900 = vld [vmem:[#allocation14 + $0x908] sm:$0xff]
    %v2901 = vld [vmem:[#allocation14 + $0x910] sm:$0xf]
    %v2902 = vld [vmem:[#allocation14 + $0x914] sm:$0xff]
    %v2903 = vld [vmem:[#allocation14 + $0x91c] sm:$0xff]
    %v2904 = vld [vmem:[#allocation14 + $0x924] sm:$0xff]
    %v2905 = vld [vmem:[#allocation14 + $0x92c] sm:$0xf]
    %v2906 = vld [vmem:[#allocation14 + $0x930] sm:$0xff]
    %v2907 = vld [vmem:[#allocation14 + $0x938] sm:$0xff]
    %v2908 = vld [vmem:[#allocation14 + $0x940] sm:$0xff]
    %v2909 = vld [vmem:[#allocation14 + $0x948] sm:$0xf]
    %v2910 = vld [vmem:[#allocation14 + $0x94c] sm:$0xff]
    %v2911 = vld [vmem:[#allocation14 + $0x954] sm:$0xff]
    %v2912 = vld [vmem:[#allocation14 + $0x95c] sm:$0xff]
    %v2913 = vld [vmem:[#allocation14 + $0x964] sm:$0xf]
    %v2914 = vld [vmem:[#allocation14 + $0x968] sm:$0xff]
    %v2915 = vld [vmem:[#allocation14 + $0x970] sm:$0xff]
    %v2916 = vld [vmem:[#allocation14 + $0x978] sm:$0xff]
    %v2917 = vld [vmem:[#allocation14 + $0x980] sm:$0xf]
    %v2918 = vld [vmem:[#allocation14 + $0x984] sm:$0xff]
    %v2919 = vld [vmem:[#allocation14 + $0x98c] sm:$0xff]
    %v2920 = vld [vmem:[#allocation14 + $0x994] sm:$0xff]
    %v2921 = vld [vmem:[#allocation14 + $0x99c] sm:$0xf]
    %v2922 = vld [vmem:[#allocation14 + $0x9a0] sm:$0xff]
    %v2923 = vld [vmem:[#allocation14 + $0x9a8] sm:$0xff]
    %v2924 = vld [vmem:[#allocation14 + $0x9b0] sm:$0xff]
    %v2925 = vld [vmem:[#allocation14 + $0x9b8] sm:$0xf]
    %v2926 = vld [vmem:[#allocation14 + $0x9bc] sm:$0xff]
    %v2927 = vld [vmem:[#allocation14 + $0x9c4] sm:$0xff]
    %v2928 = vld [vmem:[#allocation14 + $0x9cc] sm:$0xff]
    %v2929 = vld [vmem:[#allocation14 + $0x9d4] sm:$0xf]
    %v2930 = vld [vmem:[#allocation14 + $0x9d8] sm:$0xff]
    %v2931 = vld [vmem:[#allocation14 + $0x9e0] sm:$0xff]
    %v2932 = vld [vmem:[#allocation14 + $0x9e8] sm:$0xff]
    %v2933 = vld [vmem:[#allocation14 + $0x9f0] sm:$0xf]
    %v2934 = vld [vmem:[#allocation14 + $0x9f4] sm:$0xff]
    %v2935 = vld [vmem:[#allocation14 + $0x9fc] sm:$0xff]
    %v2936 = vld [vmem:[#allocation14 + $0xa04] sm:$0xff]
    %v2937 = vld [vmem:[#allocation14 + $0xa0c] sm:$0xf]
    %v2938 = vld [vmem:[#allocation14 + $0xa10] sm:$0xff]
    %v2939 = vld [vmem:[#allocation14 + $0xa18] sm:$0xff]
    %v2940 = vld [vmem:[#allocation14 + $0xa20] sm:$0xff]
    %v2941 = vld [vmem:[#allocation14 + $0xa28] sm:$0xf]
    %v2942 = vld [vmem:[#allocation14 + $0xa2c] sm:$0xff]
    %v2943 = vld [vmem:[#allocation14 + $0xa34] sm:$0xff]
    %v2944 = vld [vmem:[#allocation14 + $0xa3c] sm:$0xff]
    %v2945 = vld [vmem:[#allocation14 + $0xa44] sm:$0xf]
    %v2946 = vld [vmem:[#allocation14 + $0xa48] sm:$0xff]
    %v2947 = vld [vmem:[#allocation14 + $0xa50] sm:$0xff]
    %v2948 = vld [vmem:[#allocation14 + $0xa58] sm:$0xff]
    %v2949 = vld [vmem:[#allocation14 + $0xa60] sm:$0xf]
    %v2950 = vld [vmem:[#allocation14 + $0xa64] sm:$0xff]
    %v2951 = vld [vmem:[#allocation14 + $0xa6c] sm:$0xff]
    %v2952 = vld [vmem:[#allocation14 + $0xa74] sm:$0xff]
    %v2953 = vld [vmem:[#allocation14 + $0xa7c] sm:$0xf]
    %v2954 = vld [vmem:[#allocation16] sm:$0xff]
    %v2955 = vld [vmem:[#allocation16 + $0x8] sm:$0xff]
    %v2956 = vld [vmem:[#allocation16 + $0x10] sm:$0xff]
    %v2957 = vld [vmem:[#allocation16 + $0x18] sm:$0xf]
    %v2958 = vld [vmem:[#allocation16 + $0x1c] sm:$0xff]
    %v2959 = vld [vmem:[#allocation16 + $0x24] sm:$0xff]
    %v2960 = vld [vmem:[#allocation16 + $0x2c] sm:$0xff]
    %v2961 = vld [vmem:[#allocation16 + $0x34] sm:$0xf]
    %v2962 = vld [vmem:[#allocation16 + $0x38] sm:$0xff]
    %v2963 = vld [vmem:[#allocation16 + $0x40] sm:$0xff]
    %v2964 = vld [vmem:[#allocation16 + $0x48] sm:$0xff]
    %v2965 = vld [vmem:[#allocation16 + $0x50] sm:$0xf]
    %v2966 = vld [vmem:[#allocation16 + $0x54] sm:$0xff]
    %v2967 = vld [vmem:[#allocation16 + $0x5c] sm:$0xff]
    %v2968 = vld [vmem:[#allocation16 + $0x64] sm:$0xff]
    %v2969 = vld [vmem:[#allocation16 + $0x6c] sm:$0xf]
    %v2986 = vunpack.c.l.b16 %v2954
    %v2987 = vunpack.c.h.b16 %v2954
    %v2988 = vunpack.c.l.b16 %v2955
    %v2989 = vunpack.c.h.b16 %v2955
    %v2990 = vunpack.c.l.b16 %v2956
    %v2991 = vunpack.c.h.b16 %v2956
    %v2992 = vunpack.c.l.b16 %v2957
    %v2993 = vunpack.c.l.b16 %v2958
    %v2994 = vunpack.c.h.b16 %v2958
    %v2995 = vunpack.c.l.b16 %v2959
    %v2996 = vunpack.c.h.b16 %v2959
    %v2997 = vunpack.c.l.b16 %v2960
    %v2998 = vunpack.c.h.b16 %v2960
    %v2999 = vunpack.c.l.b16 %v2961
    %v3000 = vunpack.c.l.b16 %v2962
    %v3001 = vunpack.c.h.b16 %v2962
    %v3002 = vunpack.c.l.b16 %v2963
    %v3003 = vunpack.c.h.b16 %v2963
    %v3004 = vunpack.c.l.b16 %v2964
    %v3005 = vunpack.c.h.b16 %v2964
    %v3006 = vunpack.c.l.b16 %v2965
    %v3007 = vunpack.c.l.b16 %v2966
    %v3008 = vunpack.c.h.b16 %v2966
    %v3009 = vunpack.c.l.b16 %v2967
    %v3010 = vunpack.c.h.b16 %v2967
    %v3011 = vunpack.c.l.b16 %v2968
    %v3012 = vunpack.c.h.b16 %v2968
    %v3013 = vunpack.c.l.b16 %v2969
    %v3014 = vpack.c.b16 %v2993, %v2986
    %v3015 = vpack.c.b16 %v2994, %v2987
    %v3016 = vpack.c.b16 %v2995, %v2988
    %v3017 = vpack.c.b16 %v2996, %v2989
    %v3018 = vpack.c.b16 %v2997, %v2990
    %v3019 = vpack.c.b16 %v2998, %v2991
    %v3020 = vpack.c.b16 %v2999, %v2992
    %v3021 = vpack.c.b16 %v3007, %v3000
    %v3022 = vpack.c.b16 %v3008, %v3001
    %v3023 = vpack.c.b16 %v3009, %v3002
    %v3024 = vpack.c.b16 %v3010, %v3003
    %v3025 = vpack.c.b16 %v3011, %v3004
    %v3026 = vpack.c.b16 %v3012, %v3005
    %v3027 = vpack.c.b16 %v3013, %v3006
    %vm3042 = vcmask 261120
    %v3044 = vsel %vm3042, %v2569, 0
    %3046 = vmatprep.subr.bf16.mxu0 0
    %3047 = vmatpush1.bf16.msra.mxu0 0
    %3048 = vmatprep.subr.bf16.mxu0 0
    %3049 = vmatpush1.bf16.msra.mxu0 0
    %3050 = vmatprep.subr.bf16.mxu0 0
    %3051 = vmatpush1.bf16.msra.mxu0 0
    %3052 = vmatprep.subr.bf16.mxu0 0
    %3053 = vmatpush1.bf16.msra.mxu0 0
    %3054 = vmatprep.subr.bf16.mxu0 0
    %3055 = vmatpush1.bf16.msra.mxu0 0
    %3056 = vmatprep.subr.bf16.mxu0 0
    %3057 = vmatpush1.bf16.msra.mxu0 0
    %3058 = vmatprep.subr.bf16.mxu0 %v3022
    %3059 = vmatpush1.bf16.msra.mxu0 %v3021
    %3060 = vmatprep.subr.bf16.mxu0 %v3015
    %3061 = vmatpush1.bf16.msra.mxu0 %v3014
    %3062 = vmatprep.subr.bf16.mxu0 0
    %3063 = vmatpush2.bf16.msra.mxu0 0
    %3064 = vmatprep.subr.bf16.mxu0 0
    %3065 = vmatpush2.bf16.msra.mxu0 0
    %3066 = vmatprep.subr.bf16.mxu0 0
    %3067 = vmatpush2.bf16.msra.mxu0 0
    %3068 = vmatprep.subr.bf16.mxu0 0
    %3069 = vmatpush2.bf16.msra.mxu0 0
    %3070 = vmatprep.subr.bf16.mxu0 0
    %3071 = vmatpush2.bf16.msra.mxu0 0
    %3072 = vmatprep.subr.bf16.mxu0 0
    %3073 = vmatpush2.bf16.msra.mxu0 0
    %3074 = vmatprep.subr.bf16.mxu0 0
    %3075 = vmatpush2.bf16.msra.mxu0 0
    %3076 = vmatprep.subr.bf16.mxu0 0
    %3077 = vmatpush2.bf16.msra.mxu0 0
    %3078 = vmatprep.mubr.bf16.mxu0 0
    %3079 = vmatmul.mubr.bf16.gmra.mxu0 %v3044
    %v3080 = vpop.f32.mrf.mxu0
    %v3081 = vadd.f32 0.0, %v3080
    %v3082 = vpop.f32.mrf.mxu0
    %v3083 = vadd.f32 0.0, %v3082
    %v3084 = vpop.f32.mrf.mxu0
    %v3085 = vadd.f32 0.0, %v3084
    %v3086 = vpop.f32.mrf.mxu0
    %v3087 = vadd.f32 0.0, %v3086
    %3088 = vdwg.mxu0
    %3089 = vmatprep.subr.bf16.mxu0 0
    %3090 = vmatpush1.bf16.msra.mxu0 0
    %3091 = vmatprep.subr.bf16.mxu0 0
    %3092 = vmatpush1.bf16.msra.mxu0 0
    %3093 = vmatprep.subr.bf16.mxu0 0
    %3094 = vmatpush1.bf16.msra.mxu0 0
    %3095 = vmatprep.subr.bf16.mxu0 0
    %3096 = vmatpush1.bf16.msra.mxu0 0
    %3097 = vmatprep.subr.bf16.mxu0 0
    %3098 = vmatpush1.bf16.msra.mxu0 0
    %3099 = vmatprep.subr.bf16.mxu0 0
    %3100 = vmatpush1.bf16.msra.mxu0 0
    %3101 = vmatprep.subr.bf16.mxu0 %v3024
    %3102 = vmatpush1.bf16.msra.mxu0 %v3023
    %3103 = vmatprep.subr.bf16.mxu0 %v3017
    %3104 = vmatpush1.bf16.msra.mxu0 %v3016
    %3105 = vmatprep.subr.bf16.mxu0 0
    %3106 = vmatpush2.bf16.msra.mxu0 0
    %3107 = vmatprep.subr.bf16.mxu0 0
    %3108 = vmatpush2.bf16.msra.mxu0 0
    %3109 = vmatprep.subr.bf16.mxu0 0
    %3110 = vmatpush2.bf16.msra.mxu0 0
    %3111 = vmatprep.subr.bf16.mxu0 0
    %3112 = vmatpush2.bf16.msra.mxu0 0
    %3113 = vmatprep.subr.bf16.mxu0 0
    %3114 = vmatpush2.bf16.msra.mxu0 0
    %3115 = vmatprep.subr.bf16.mxu0 0
    %3116 = vmatpush2.bf16.msra.mxu0 0
    %3117 = vmatprep.subr.bf16.mxu0 0
    %3118 = vmatpush2.bf16.msra.mxu0 0
    %3119 = vmatprep.subr.bf16.mxu0 0
    %3120 = vmatpush2.bf16.msra.mxu0 0
    %3121 = vmatprep.mubr.bf16.mxu0 0
    %3122 = vmatmul.mubr.bf16.gmra.mxu0 %v3044
    %v3123 = vpop.f32.mrf.mxu0
    %v3124 = vadd.f32 0.0, %v3123
    %v3125 = vpop.f32.mrf.mxu0
    %v3126 = vadd.f32 0.0, %v3125
    %v3127 = vpop.f32.mrf.mxu0
    %v3128 = vadd.f32 0.0, %v3127
    %v3129 = vpop.f32.mrf.mxu0
    %v3130 = vadd.f32 0.0, %v3129
    %3131 = vdwg.mxu0
    %3132 = vmatprep.subr.bf16.mxu0 0
    %3133 = vmatpush1.bf16.msra.mxu0 0
    %3134 = vmatprep.subr.bf16.mxu0 0
    %3135 = vmatpush1.bf16.msra.mxu0 0
    %3136 = vmatprep.subr.bf16.mxu0 0
    %3137 = vmatpush1.bf16.msra.mxu0 0
    %3138 = vmatprep.subr.bf16.mxu0 0
    %3139 = vmatpush1.bf16.msra.mxu0 0
    %3140 = vmatprep.subr.bf16.mxu0 0
    %3141 = vmatpush1.bf16.msra.mxu0 0
    %3142 = vmatprep.subr.bf16.mxu0 0
    %3143 = vmatpush1.bf16.msra.mxu0 0
    %3144 = vmatprep.subr.bf16.mxu0 %v3026
    %3145 = vmatpush1.bf16.msra.mxu0 %v3025
    %3146 = vmatprep.subr.bf16.mxu0 %v3019
    %3147 = vmatpush1.bf16.msra.mxu0 %v3018
    %3148 = vmatprep.subr.bf16.mxu0 0
    %3149 = vmatpush2.bf16.msra.mxu0 0
    %3150 = vmatprep.subr.bf16.mxu0 0
    %3151 = vmatpush2.bf16.msra.mxu0 0
    %3152 = vmatprep.subr.bf16.mxu0 0
    %3153 = vmatpush2.bf16.msra.mxu0 0
    %3154 = vmatprep.subr.bf16.mxu0 0
    %3155 = vmatpush2.bf16.msra.mxu0 0
    %3156 = vmatprep.subr.bf16.mxu0 0
    %3157 = vmatpush2.bf16.msra.mxu0 0
    %3158 = vmatprep.subr.bf16.mxu0 0
    %3159 = vmatpush2.bf16.msra.mxu0 0
    %3160 = vmatprep.subr.bf16.mxu0 0
    %3161 = vmatpush2.bf16.msra.mxu0 0
    %3162 = vmatprep.subr.bf16.mxu0 0
    %3163 = vmatpush2.bf16.msra.mxu0 0
    %3164 = vmatprep.mubr.bf16.mxu0 0
    %3165 = vmatmul.mubr.bf16.gmra.mxu0 %v3044
    %v3166 = vpop.f32.mrf.mxu0
    %v3167 = vadd.f32 0.0, %v3166
    %v3168 = vpop.f32.mrf.mxu0
    %v3169 = vadd.f32 0.0, %v3168
    %v3170 = vpop.f32.mrf.mxu0
    %v3171 = vadd.f32 0.0, %v3170
    %v3172 = vpop.f32.mrf.mxu0
    %v3173 = vadd.f32 0.0, %v3172
    %3174 = vdwg.mxu0
    %3175 = vmatprep.subr.bf16.mxu0 0
    %3176 = vmatpush1.bf16.msra.mxu0 0
    %3177 = vmatprep.subr.bf16.mxu0 0
    %3178 = vmatpush1.bf16.msra.mxu0 0
    %3179 = vmatprep.subr.bf16.mxu0 0
    %3180 = vmatpush1.bf16.msra.mxu0 0
    %3181 = vmatprep.subr.bf16.mxu0 0
    %3182 = vmatpush1.bf16.msra.mxu0 0
    %3183 = vmatprep.subr.bf16.mxu0 0
    %3184 = vmatpush1.bf16.msra.mxu0 0
    %3185 = vmatprep.subr.bf16.mxu0 0
    %3186 = vmatpush1.bf16.msra.mxu0 0
    %3187 = vmatprep.subr.bf16.mxu0 0
    %3188 = vmatpush1.bf16.msra.mxu0 %v3027
    %3189 = vmatprep.subr.bf16.mxu0 0
    %3190 = vmatpush1.bf16.msra.mxu0 %v3020
    %3191 = vmatprep.subr.bf16.mxu0 0
    %3192 = vmatpush2.bf16.msra.mxu0 0
    %3193 = vmatprep.subr.bf16.mxu0 0
    %3194 = vmatpush2.bf16.msra.mxu0 0
    %3195 = vmatprep.subr.bf16.mxu0 0
    %3196 = vmatpush2.bf16.msra.mxu0 0
    %3197 = vmatprep.subr.bf16.mxu0 0
    %3198 = vmatpush2.bf16.msra.mxu0 0
    %3199 = vmatprep.subr.bf16.mxu0 0
    %3200 = vmatpush2.bf16.msra.mxu0 0
    %3201 = vmatprep.subr.bf16.mxu0 0
    %3202 = vmatpush2.bf16.msra.mxu0 0
    %3203 = vmatprep.subr.bf16.mxu0 0
    %3204 = vmatpush2.bf16.msra.mxu0 0
    %3205 = vmatprep.subr.bf16.mxu0 0
    %3206 = vmatpush2.bf16.msra.mxu0 0
    %3207 = vmatprep.mubr.bf16.mxu0 0
    %3208 = vmatmul.mubr.bf16.gmra.mxu0 %v3044
    %v3209 = vpop.f32.mrf.mxu0
    %v3210 = vadd.f32 0.0, %v3209
    %v3211 = vpop.f32.mrf.mxu0
    %v3212 = vpop.f32.mrf.mxu0
    %v3213 = vadd.f32 0.0, %v3212
    %v3214 = vpop.f32.mrf.mxu0
    %3215 = vdwg.mxu0
    %v3600 = vunpack.c.l.b16 %v2570
    %v3601 = vunpack.c.h.b16 %v2570
    %v3602 = vunpack.c.l.b16 %v2571
    %v3603 = vunpack.c.h.b16 %v2571
    %v3604 = vunpack.c.l.b16 %v2572
    %v3605 = vunpack.c.h.b16 %v2572
    %v3606 = vunpack.c.l.b16 %v2573
    %v3607 = vunpack.c.l.b16 %v2574
    %v3608 = vunpack.c.h.b16 %v2574
    %v3609 = vunpack.c.l.b16 %v2575
    %v3610 = vunpack.c.h.b16 %v2575
    %v3611 = vunpack.c.l.b16 %v2576
    %v3612 = vunpack.c.h.b16 %v2576
    %v3613 = vunpack.c.l.b16 %v2577
    %v3614 = vunpack.c.l.b16 %v2578
    %v3615 = vunpack.c.h.b16 %v2578
    %v3616 = vunpack.c.l.b16 %v2579
    %v3617 = vunpack.c.h.b16 %v2579
    %v3618 = vunpack.c.l.b16 %v2580
    %v3619 = vunpack.c.h.b16 %v2580
    %v3620 = vunpack.c.l.b16 %v2581
    %v3621 = vunpack.c.l.b16 %v2582
    %v3622 = vunpack.c.h.b16 %v2582
    %v3623 = vunpack.c.l.b16 %v2583
    %v3624 = vunpack.c.h.b16 %v2583
    %v3625 = vunpack.c.l.b16 %v2584
    %v3626 = vunpack.c.h.b16 %v2584
    %v3627 = vunpack.c.l.b16 %v2585
    %v3628 = vunpack.c.l.b16 %v2586
    %v3629 = vunpack.c.h.b16 %v2586
    %v3630 = vunpack.c.l.b16 %v2587
    %v3631 = vunpack.c.h.b16 %v2587
    %v3632 = vunpack.c.l.b16 %v2588
    %v3633 = vunpack.c.h.b16 %v2588
    %v3634 = vunpack.c.l.b16 %v2589
    %v3635 = vunpack.c.l.b16 %v2590
    %v3636 = vunpack.c.h.b16 %v2590
    %v3637 = vunpack.c.l.b16 %v2591
    %v3638 = vunpack.c.h.b16 %v2591
    %v3639 = vunpack.c.l.b16 %v2592
    %v3640 = vunpack.c.h.b16 %v2592
    %v3641 = vunpack.c.l.b16 %v2593
    %v3642 = vunpack.c.l.b16 %v2594
    %v3643 = vunpack.c.h.b16 %v2594
    %v3644 = vunpack.c.l.b16 %v2595
    %v3645 = vunpack.c.h.b16 %v2595
    %v3646 = vunpack.c.l.b16 %v2596
    %v3647 = vunpack.c.h.b16 %v2596
    %v3648 = vunpack.c.l.b16 %v2597
    %v3649 = vunpack.c.l.b16 %v2598
    %v3650 = vunpack.c.h.b16 %v2598
    %v3651 = vunpack.c.l.b16 %v2599
    %v3652 = vunpack.c.h.b16 %v2599
    %v3653 = vunpack.c.l.b16 %v2600
    %v3654 = vunpack.c.h.b16 %v2600
    %v3655 = vunpack.c.l.b16 %v2601
    %v3656 = vunpack.c.l.b16 %v2602
    %v3657 = vunpack.c.h.b16 %v2602
    %v3658 = vunpack.c.l.b16 %v2603
    %v3659 = vunpack.c.h.b16 %v2603
    %v3660 = vunpack.c.l.b16 %v2604
    %v3661 = vunpack.c.h.b16 %v2604
    %v3662 = vunpack.c.l.b16 %v2605
    %v3663 = vunpack.c.l.b16 %v2606
    %v3664 = vunpack.c.h.b16 %v2606
    %v3665 = vunpack.c.l.b16 %v2607
    %v3666 = vunpack.c.h.b16 %v2607
    %v3667 = vunpack.c.l.b16 %v2608
    %v3668 = vunpack.c.h.b16 %v2608
    %v3669 = vunpack.c.l.b16 %v2609
    %v3670 = vunpack.c.l.b16 %v2610
    %v3671 = vunpack.c.h.b16 %v2610
    %v3672 = vunpack.c.l.b16 %v2611
    %v3673 = vunpack.c.h.b16 %v2611
    %v3674 = vunpack.c.l.b16 %v2612
    %v3675 = vunpack.c.h.b16 %v2612
    %v3676 = vunpack.c.l.b16 %v2613
    %v3677 = vunpack.c.l.b16 %v2614
    %v3678 = vunpack.c.h.b16 %v2614
    %v3679 = vunpack.c.l.b16 %v2615
    %v3680 = vunpack.c.h.b16 %v2615
    %v3681 = vunpack.c.l.b16 %v2616
    %v3682 = vunpack.c.h.b16 %v2616
    %v3683 = vunpack.c.l.b16 %v2617
    %v3684 = vunpack.c.l.b16 %v2618
    %v3685 = vunpack.c.h.b16 %v2618
    %v3686 = vunpack.c.l.b16 %v2619
    %v3687 = vunpack.c.h.b16 %v2619
    %v3688 = vunpack.c.l.b16 %v2620
    %v3689 = vunpack.c.h.b16 %v2620
    %v3690 = vunpack.c.l.b16 %v2621
    %v3691 = vunpack.c.l.b16 %v2622
    %v3692 = vunpack.c.h.b16 %v2622
    %v3693 = vunpack.c.l.b16 %v2623
    %v3694 = vunpack.c.h.b16 %v2623
    %v3695 = vunpack.c.l.b16 %v2624
    %v3696 = vunpack.c.h.b16 %v2624
    %v3697 = vunpack.c.l.b16 %v2625
    %v3698 = vunpack.c.l.b16 %v2626
    %v3699 = vunpack.c.h.b16 %v2626
    %v3700 = vunpack.c.l.b16 %v2627
    %v3701 = vunpack.c.h.b16 %v2627
    %v3702 = vunpack.c.l.b16 %v2628
    %v3703 = vunpack.c.h.b16 %v2628
    %v3704 = vunpack.c.l.b16 %v2629
    %v3705 = vunpack.c.l.b16 %v2630
    %v3706 = vunpack.c.h.b16 %v2630
    %v3707 = vunpack.c.l.b16 %v2631
    %v3708 = vunpack.c.h.b16 %v2631
    %v3709 = vunpack.c.l.b16 %v2632
    %v3710 = vunpack.c.h.b16 %v2632
    %v3711 = vunpack.c.l.b16 %v2633
    %v3712 = vunpack.c.l.b16 %v2634
    %v3713 = vunpack.c.h.b16 %v2634
    %v3714 = vunpack.c.l.b16 %v2635
    %v3715 = vunpack.c.h.b16 %v2635
    %v3716 = vunpack.c.l.b16 %v2636
    %v3717 = vunpack.c.h.b16 %v2636
    %v3718 = vunpack.c.l.b16 %v2637
    %v3719 = vunpack.c.l.b16 %v2638
    %v3720 = vunpack.c.h.b16 %v2638
    %v3721 = vunpack.c.l.b16 %v2639
    %v3722 = vunpack.c.h.b16 %v2639
    %v3723 = vunpack.c.l.b16 %v2640
    %v3724 = vunpack.c.h.b16 %v2640
    %v3725 = vunpack.c.l.b16 %v2641
    %v3726 = vunpack.c.l.b16 %v2642
    %v3727 = vunpack.c.h.b16 %v2642
    %v3728 = vunpack.c.l.b16 %v2643
    %v3729 = vunpack.c.h.b16 %v2643
    %v3730 = vunpack.c.l.b16 %v2644
    %v3731 = vunpack.c.h.b16 %v2644
    %v3732 = vunpack.c.l.b16 %v2645
    %v3733 = vunpack.c.l.b16 %v2646
    %v3734 = vunpack.c.h.b16 %v2646
    %v3735 = vunpack.c.l.b16 %v2647
    %v3736 = vunpack.c.h.b16 %v2647
    %v3737 = vunpack.c.l.b16 %v2648
    %v3738 = vunpack.c.h.b16 %v2648
    %v3739 = vunpack.c.l.b16 %v2649
    %v3740 = vunpack.c.l.b16 %v2650
    %v3741 = vunpack.c.h.b16 %v2650
    %v3742 = vunpack.c.l.b16 %v2651
    %v3743 = vunpack.c.h.b16 %v2651
    %v3744 = vunpack.c.l.b16 %v2652
    %v3745 = vunpack.c.h.b16 %v2652
    %v3746 = vunpack.c.l.b16 %v2653
    %v3747 = vunpack.c.l.b16 %v2654
    %v3748 = vunpack.c.h.b16 %v2654
    %v3749 = vunpack.c.l.b16 %v2655
    %v3750 = vunpack.c.h.b16 %v2655
    %v3751 = vunpack.c.l.b16 %v2656
    %v3752 = vunpack.c.h.b16 %v2656
    %v3753 = vunpack.c.l.b16 %v2657
    %v3754 = vunpack.c.l.b16 %v2658
    %v3755 = vunpack.c.h.b16 %v2658
    %v3756 = vunpack.c.l.b16 %v2659
    %v3757 = vunpack.c.h.b16 %v2659
    %v3758 = vunpack.c.l.b16 %v2660
    %v3759 = vunpack.c.h.b16 %v2660
    %v3760 = vunpack.c.l.b16 %v2661
    %v3761 = vunpack.c.l.b16 %v2662
    %v3762 = vunpack.c.h.b16 %v2662
    %v3763 = vunpack.c.l.b16 %v2663
    %v3764 = vunpack.c.h.b16 %v2663
    %v3765 = vunpack.c.l.b16 %v2664
    %v3766 = vunpack.c.h.b16 %v2664
    %v3767 = vunpack.c.l.b16 %v2665
    %v3768 = vunpack.c.l.b16 %v2666
    %v3769 = vunpack.c.h.b16 %v2666
    %v3770 = vunpack.c.l.b16 %v2667
    %v3771 = vunpack.c.h.b16 %v2667
    %v3772 = vunpack.c.l.b16 %v2668
    %v3773 = vunpack.c.h.b16 %v2668
    %v3774 = vunpack.c.l.b16 %v2669
    %v3775 = vunpack.c.l.b16 %v2670
    %v3776 = vunpack.c.h.b16 %v2670
    %v3777 = vunpack.c.l.b16 %v2671
    %v3778 = vunpack.c.h.b16 %v2671
    %v3779 = vunpack.c.l.b16 %v2672
    %v3780 = vunpack.c.h.b16 %v2672
    %v3781 = vunpack.c.l.b16 %v2673
    %v3782 = vunpack.c.l.b16 %v2674
    %v3783 = vunpack.c.h.b16 %v2674
    %v3784 = vunpack.c.l.b16 %v2675
    %v3785 = vunpack.c.h.b16 %v2675
    %v3786 = vunpack.c.l.b16 %v2676
    %v3787 = vunpack.c.h.b16 %v2676
    %v3788 = vunpack.c.l.b16 %v2677
    %v3789 = vunpack.c.l.b16 %v2678
    %v3790 = vunpack.c.h.b16 %v2678
    %v3791 = vunpack.c.l.b16 %v2679
    %v3792 = vunpack.c.h.b16 %v2679
    %v3793 = vunpack.c.l.b16 %v2680
    %v3794 = vunpack.c.h.b16 %v2680
    %v3795 = vunpack.c.l.b16 %v2681
    %v3796 = vunpack.c.l.b16 %v2682
    %v3797 = vunpack.c.h.b16 %v2682
    %v3798 = vunpack.c.l.b16 %v2683
    %v3799 = vunpack.c.h.b16 %v2683
    %v3800 = vunpack.c.l.b16 %v2684
    %v3801 = vunpack.c.h.b16 %v2684
    %v3802 = vunpack.c.l.b16 %v2685
    %v3803 = vunpack.c.l.b16 %v2686
    %v3804 = vunpack.c.h.b16 %v2686
    %v3805 = vunpack.c.l.b16 %v2687
    %v3806 = vunpack.c.h.b16 %v2687
    %v3807 = vunpack.c.l.b16 %v2688
    %v3808 = vunpack.c.h.b16 %v2688
    %v3809 = vunpack.c.l.b16 %v2689
    %v3810 = vunpack.c.l.b16 %v2690
    %v3811 = vunpack.c.h.b16 %v2690
    %v3812 = vunpack.c.l.b16 %v2691
    %v3813 = vunpack.c.h.b16 %v2691
    %v3814 = vunpack.c.l.b16 %v2692
    %v3815 = vunpack.c.h.b16 %v2692
    %v3816 = vunpack.c.l.b16 %v2693
    %v3817 = vunpack.c.l.b16 %v2694
    %v3818 = vunpack.c.h.b16 %v2694
    %v3819 = vunpack.c.l.b16 %v2695
    %v3820 = vunpack.c.h.b16 %v2695
    %v3821 = vunpack.c.l.b16 %v2696
    %v3822 = vunpack.c.h.b16 %v2696
    %v3823 = vunpack.c.l.b16 %v2697
    %v3824 = vunpack.c.l.b16 %v2698
    %v3825 = vunpack.c.h.b16 %v2698
    %v3826 = vunpack.c.l.b16 %v2699
    %v3827 = vunpack.c.h.b16 %v2699
    %v3828 = vunpack.c.l.b16 %v2700
    %v3829 = vunpack.c.h.b16 %v2700
    %v3830 = vunpack.c.l.b16 %v2701
    %v3831 = vunpack.c.l.b16 %v2702
    %v3832 = vunpack.c.h.b16 %v2702
    %v3833 = vunpack.c.l.b16 %v2703
    %v3834 = vunpack.c.h.b16 %v2703
    %v3835 = vunpack.c.l.b16 %v2704
    %v3836 = vunpack.c.h.b16 %v2704
    %v3837 = vunpack.c.l.b16 %v2705
    %v3838 = vunpack.c.l.b16 %v2706
    %v3839 = vunpack.c.h.b16 %v2706
    %v3840 = vunpack.c.l.b16 %v2707
    %v3841 = vunpack.c.h.b16 %v2707
    %v3842 = vunpack.c.l.b16 %v2708
    %v3843 = vunpack.c.h.b16 %v2708
    %v3844 = vunpack.c.l.b16 %v2709
    %v3845 = vunpack.c.l.b16 %v2710
    %v3846 = vunpack.c.h.b16 %v2710
    %v3847 = vunpack.c.l.b16 %v2711
    %v3848 = vunpack.c.h.b16 %v2711
    %v3849 = vunpack.c.l.b16 %v2712
    %v3850 = vunpack.c.h.b16 %v2712
    %v3851 = vunpack.c.l.b16 %v2713
    %v3852 = vunpack.c.l.b16 %v2714
    %v3853 = vunpack.c.h.b16 %v2714
    %v3854 = vunpack.c.l.b16 %v2715
    %v3855 = vunpack.c.h.b16 %v2715
    %v3856 = vunpack.c.l.b16 %v2716
    %v3857 = vunpack.c.h.b16 %v2716
    %v3858 = vunpack.c.l.b16 %v2717
    %v3859 = vunpack.c.l.b16 %v2718
    %v3860 = vunpack.c.h.b16 %v2718
    %v3861 = vunpack.c.l.b16 %v2719
    %v3862 = vunpack.c.h.b16 %v2719
    %v3863 = vunpack.c.l.b16 %v2720
    %v3864 = vunpack.c.h.b16 %v2720
    %v3865 = vunpack.c.l.b16 %v2721
    %v3866 = vunpack.c.l.b16 %v2722
    %v3867 = vunpack.c.h.b16 %v2722
    %v3868 = vunpack.c.l.b16 %v2723
    %v3869 = vunpack.c.h.b16 %v2723
    %v3870 = vunpack.c.l.b16 %v2724
    %v3871 = vunpack.c.h.b16 %v2724
    %v3872 = vunpack.c.l.b16 %v2725
    %v3873 = vunpack.c.l.b16 %v2726
    %v3874 = vunpack.c.h.b16 %v2726
    %v3875 = vunpack.c.l.b16 %v2727
    %v3876 = vunpack.c.h.b16 %v2727
    %v3877 = vunpack.c.l.b16 %v2728
    %v3878 = vunpack.c.h.b16 %v2728
    %v3879 = vunpack.c.l.b16 %v2729
    %v3880 = vunpack.c.l.b16 %v2730
    %v3881 = vunpack.c.h.b16 %v2730
    %v3882 = vunpack.c.l.b16 %v2731
    %v3883 = vunpack.c.h.b16 %v2731
    %v3884 = vunpack.c.l.b16 %v2732
    %v3885 = vunpack.c.h.b16 %v2732
    %v3886 = vunpack.c.l.b16 %v2733
    %v3887 = vunpack.c.l.b16 %v2734
    %v3888 = vunpack.c.h.b16 %v2734
    %v3889 = vunpack.c.l.b16 %v2735
    %v3890 = vunpack.c.h.b16 %v2735
    %v3891 = vunpack.c.l.b16 %v2736
    %v3892 = vunpack.c.h.b16 %v2736
    %v3893 = vunpack.c.l.b16 %v2737
    %v3894 = vunpack.c.l.b16 %v2738
    %v3895 = vunpack.c.h.b16 %v2738
    %v3896 = vunpack.c.l.b16 %v2739
    %v3897 = vunpack.c.h.b16 %v2739
    %v3898 = vunpack.c.l.b16 %v2740
    %v3899 = vunpack.c.h.b16 %v2740
    %v3900 = vunpack.c.l.b16 %v2741
    %v3901 = vunpack.c.l.b16 %v2742
    %v3902 = vunpack.c.h.b16 %v2742
    %v3903 = vunpack.c.l.b16 %v2743
    %v3904 = vunpack.c.h.b16 %v2743
    %v3905 = vunpack.c.l.b16 %v2744
    %v3906 = vunpack.c.h.b16 %v2744
    %v3907 = vunpack.c.l.b16 %v2745
    %v3908 = vunpack.c.l.b16 %v2746
    %v3909 = vunpack.c.h.b16 %v2746
    %v3910 = vunpack.c.l.b16 %v2747
    %v3911 = vunpack.c.h.b16 %v2747
    %v3912 = vunpack.c.l.b16 %v2748
    %v3913 = vunpack.c.h.b16 %v2748
    %v3914 = vunpack.c.l.b16 %v2749
    %v3915 = vunpack.c.l.b16 %v2750
    %v3916 = vunpack.c.h.b16 %v2750
    %v3917 = vunpack.c.l.b16 %v2751
    %v3918 = vunpack.c.h.b16 %v2751
    %v3919 = vunpack.c.l.b16 %v2752
    %v3920 = vunpack.c.h.b16 %v2752
    %v3921 = vunpack.c.l.b16 %v2753
    %v3922 = vunpack.c.l.b16 %v2754
    %v3923 = vunpack.c.h.b16 %v2754
    %v3924 = vunpack.c.l.b16 %v2755
    %v3925 = vunpack.c.h.b16 %v2755
    %v3926 = vunpack.c.l.b16 %v2756
    %v3927 = vunpack.c.h.b16 %v2756
    %v3928 = vunpack.c.l.b16 %v2757
    %v3929 = vunpack.c.l.b16 %v2758
    %v3930 = vunpack.c.h.b16 %v2758
    %v3931 = vunpack.c.l.b16 %v2759
    %v3932 = vunpack.c.h.b16 %v2759
    %v3933 = vunpack.c.l.b16 %v2760
    %v3934 = vunpack.c.h.b16 %v2760
    %v3935 = vunpack.c.l.b16 %v2761
    %v3936 = vunpack.c.l.b16 %v2762
    %v3937 = vunpack.c.h.b16 %v2762
    %v3938 = vunpack.c.l.b16 %v2763
    %v3939 = vunpack.c.h.b16 %v2763
    %v3940 = vunpack.c.l.b16 %v2764
    %v3941 = vunpack.c.h.b16 %v2764
    %v3942 = vunpack.c.l.b16 %v2765
    %v3943 = vunpack.c.l.b16 %v2766
    %v3944 = vunpack.c.h.b16 %v2766
    %v3945 = vunpack.c.l.b16 %v2767
    %v3946 = vunpack.c.h.b16 %v2767
    %v3947 = vunpack.c.l.b16 %v2768
    %v3948 = vunpack.c.h.b16 %v2768
    %v3949 = vunpack.c.l.b16 %v2769
    %v3950 = vunpack.c.l.b16 %v2770
    %v3951 = vunpack.c.h.b16 %v2770
    %v3952 = vunpack.c.l.b16 %v2771
    %v3953 = vunpack.c.h.b16 %v2771
    %v3954 = vunpack.c.l.b16 %v2772
    %v3955 = vunpack.c.h.b16 %v2772
    %v3956 = vunpack.c.l.b16 %v2773
    %v3957 = vunpack.c.l.b16 %v2774
    %v3958 = vunpack.c.h.b16 %v2774
    %v3959 = vunpack.c.l.b16 %v2775
    %v3960 = vunpack.c.h.b16 %v2775
    %v3961 = vunpack.c.l.b16 %v2776
    %v3962 = vunpack.c.h.b16 %v2776
    %v3963 = vunpack.c.l.b16 %v2777
    %v3964 = vunpack.c.l.b16 %v2778
    %v3965 = vunpack.c.h.b16 %v2778
    %v3966 = vunpack.c.l.b16 %v2779
    %v3967 = vunpack.c.h.b16 %v2779
    %v3968 = vunpack.c.l.b16 %v2780
    %v3969 = vunpack.c.h.b16 %v2780
    %v3970 = vunpack.c.l.b16 %v2781
    %v3971 = vunpack.c.l.b16 %v2782
    %v3972 = vunpack.c.h.b16 %v2782
    %v3973 = vunpack.c.l.b16 %v2783
    %v3974 = vunpack.c.h.b16 %v2783
    %v3975 = vunpack.c.l.b16 %v2784
    %v3976 = vunpack.c.h.b16 %v2784
    %v3977 = vunpack.c.l.b16 %v2785
    %v3978 = vunpack.c.l.b16 %v2786
    %v3979 = vunpack.c.h.b16 %v2786
    %v3980 = vunpack.c.l.b16 %v2787
    %v3981 = vunpack.c.h.b16 %v2787
    %v3982 = vunpack.c.l.b16 %v2788
    %v3983 = vunpack.c.h.b16 %v2788
    %v3984 = vunpack.c.l.b16 %v2789
    %v3985 = vunpack.c.l.b16 %v2790
    %v3986 = vunpack.c.h.b16 %v2790
    %v3987 = vunpack.c.l.b16 %v2791
    %v3988 = vunpack.c.h.b16 %v2791
    %v3989 = vunpack.c.l.b16 %v2792
    %v3990 = vunpack.c.h.b16 %v2792
    %v3991 = vunpack.c.l.b16 %v2793
    %v3992 = vunpack.c.l.b16 %v2794
    %v3993 = vunpack.c.h.b16 %v2794
    %v3994 = vunpack.c.l.b16 %v2795
    %v3995 = vunpack.c.h.b16 %v2795
    %v3996 = vunpack.c.l.b16 %v2796
    %v3997 = vunpack.c.h.b16 %v2796
    %v3998 = vunpack.c.l.b16 %v2797
    %v3999 = vunpack.c.l.b16 %v2798
    %v4000 = vunpack.c.h.b16 %v2798
    %v4001 = vunpack.c.l.b16 %v2799
    %v4002 = vunpack.c.h.b16 %v2799
    %v4003 = vunpack.c.l.b16 %v2800
    %v4004 = vunpack.c.h.b16 %v2800
    %v4005 = vunpack.c.l.b16 %v2801
    %v4006 = vunpack.c.l.b16 %v2802
    %v4007 = vunpack.c.h.b16 %v2802
    %v4008 = vunpack.c.l.b16 %v2803
    %v4009 = vunpack.c.h.b16 %v2803
    %v4010 = vunpack.c.l.b16 %v2804
    %v4011 = vunpack.c.h.b16 %v2804
    %v4012 = vunpack.c.l.b16 %v2805
    %v4013 = vunpack.c.l.b16 %v2806
    %v4014 = vunpack.c.h.b16 %v2806
    %v4015 = vunpack.c.l.b16 %v2807
    %v4016 = vunpack.c.h.b16 %v2807
    %v4017 = vunpack.c.l.b16 %v2808
    %v4018 = vunpack.c.h.b16 %v2808
    %v4019 = vunpack.c.l.b16 %v2809
    %v4020 = vunpack.c.l.b16 %v2810
    %v4021 = vunpack.c.h.b16 %v2810
    %v4022 = vunpack.c.l.b16 %v2811
    %v4023 = vunpack.c.h.b16 %v2811
    %v4024 = vunpack.c.l.b16 %v2812
    %v4025 = vunpack.c.h.b16 %v2812
    %v4026 = vunpack.c.l.b16 %v2813
    %v4027 = vunpack.c.l.b16 %v2814
    %v4028 = vunpack.c.h.b16 %v2814
    %v4029 = vunpack.c.l.b16 %v2815
    %v4030 = vunpack.c.h.b16 %v2815
    %v4031 = vunpack.c.l.b16 %v2816
    %v4032 = vunpack.c.h.b16 %v2816
    %v4033 = vunpack.c.l.b16 %v2817
    %v4034 = vunpack.c.l.b16 %v2818
    %v4035 = vunpack.c.h.b16 %v2818
    %v4036 = vunpack.c.l.b16 %v2819
    %v4037 = vunpack.c.h.b16 %v2819
    %v4038 = vunpack.c.l.b16 %v2820
    %v4039 = vunpack.c.h.b16 %v2820
    %v4040 = vunpack.c.l.b16 %v2821
    %v4041 = vunpack.c.l.b16 %v2822
    %v4042 = vunpack.c.h.b16 %v2822
    %v4043 = vunpack.c.l.b16 %v2823
    %v4044 = vunpack.c.h.b16 %v2823
    %v4045 = vunpack.c.l.b16 %v2824
    %v4046 = vunpack.c.h.b16 %v2824
    %v4047 = vunpack.c.l.b16 %v2825
    %v4048 = vunpack.c.l.b16 %v2826
    %v4049 = vunpack.c.h.b16 %v2826
    %v4050 = vunpack.c.l.b16 %v2827
    %v4051 = vunpack.c.h.b16 %v2827
    %v4052 = vunpack.c.l.b16 %v2828
    %v4053 = vunpack.c.h.b16 %v2828
    %v4054 = vunpack.c.l.b16 %v2829
    %v4055 = vunpack.c.l.b16 %v2830
    %v4056 = vunpack.c.h.b16 %v2830
    %v4057 = vunpack.c.l.b16 %v2831
    %v4058 = vunpack.c.h.b16 %v2831
    %v4059 = vunpack.c.l.b16 %v2832
    %v4060 = vunpack.c.h.b16 %v2832
    %v4061 = vunpack.c.l.b16 %v2833
    %v4062 = vunpack.c.l.b16 %v2834
    %v4063 = vunpack.c.h.b16 %v2834
    %v4064 = vunpack.c.l.b16 %v2835
    %v4065 = vunpack.c.h.b16 %v2835
    %v4066 = vunpack.c.l.b16 %v2836
    %v4067 = vunpack.c.h.b16 %v2836
    %v4068 = vunpack.c.l.b16 %v2837
    %v4069 = vunpack.c.l.b16 %v2838
    %v4070 = vunpack.c.h.b16 %v2838
    %v4071 = vunpack.c.l.b16 %v2839
    %v4072 = vunpack.c.h.b16 %v2839
    %v4073 = vunpack.c.l.b16 %v2840
    %v4074 = vunpack.c.h.b16 %v2840
    %v4075 = vunpack.c.l.b16 %v2841
    %v4076 = vunpack.c.l.b16 %v2842
    %v4077 = vunpack.c.h.b16 %v2842
    %v4078 = vunpack.c.l.b16 %v2843
    %v4079 = vunpack.c.h.b16 %v2843
    %v4080 = vunpack.c.l.b16 %v2844
    %v4081 = vunpack.c.h.b16 %v2844
    %v4082 = vunpack.c.l.b16 %v2845
    %v4083 = vunpack.c.l.b16 %v2846
    %v4084 = vunpack.c.h.b16 %v2846
    %v4085 = vunpack.c.l.b16 %v2847
    %v4086 = vunpack.c.h.b16 %v2847
    %v4087 = vunpack.c.l.b16 %v2848
    %v4088 = vunpack.c.h.b16 %v2848
    %v4089 = vunpack.c.l.b16 %v2849
    %v4090 = vunpack.c.l.b16 %v2850
    %v4091 = vunpack.c.h.b16 %v2850
    %v4092 = vunpack.c.l.b16 %v2851
    %v4093 = vunpack.c.h.b16 %v2851
    %v4094 = vunpack.c.l.b16 %v2852
    %v4095 = vunpack.c.h.b16 %v2852
    %v4096 = vunpack.c.l.b16 %v2853
    %v4097 = vunpack.c.l.b16 %v2854
    %v4098 = vunpack.c.h.b16 %v2854
    %v4099 = vunpack.c.l.b16 %v2855
    %v4100 = vunpack.c.h.b16 %v2855
    %v4101 = vunpack.c.l.b16 %v2856
    %v4102 = vunpack.c.h.b16 %v2856
    %v4103 = vunpack.c.l.b16 %v2857
    %v4104 = vunpack.c.l.b16 %v2858
    %v4105 = vunpack.c.h.b16 %v2858
    %v4106 = vunpack.c.l.b16 %v2859
    %v4107 = vunpack.c.h.b16 %v2859
    %v4108 = vunpack.c.l.b16 %v2860
    %v4109 = vunpack.c.h.b16 %v2860
    %v4110 = vunpack.c.l.b16 %v2861
    %v4111 = vunpack.c.l.b16 %v2862
    %v4112 = vunpack.c.h.b16 %v2862
    %v4113 = vunpack.c.l.b16 %v2863
    %v4114 = vunpack.c.h.b16 %v2863
    %v4115 = vunpack.c.l.b16 %v2864
    %v4116 = vunpack.c.h.b16 %v2864
    %v4117 = vunpack.c.l.b16 %v2865
    %v4118 = vunpack.c.l.b16 %v2866
    %v4119 = vunpack.c.h.b16 %v2866
    %v4120 = vunpack.c.l.b16 %v2867
    %v4121 = vunpack.c.h.b16 %v2867
    %v4122 = vunpack.c.l.b16 %v2868
    %v4123 = vunpack.c.h.b16 %v2868
    %v4124 = vunpack.c.l.b16 %v2869
    %v4125 = vunpack.c.l.b16 %v2870
    %v4126 = vunpack.c.h.b16 %v2870
    %v4127 = vunpack.c.l.b16 %v2871
    %v4128 = vunpack.c.h.b16 %v2871
    %v4129 = vunpack.c.l.b16 %v2872
    %v4130 = vunpack.c.h.b16 %v2872
    %v4131 = vunpack.c.l.b16 %v2873
    %v4132 = vunpack.c.l.b16 %v2874
    %v4133 = vunpack.c.h.b16 %v2874
    %v4134 = vunpack.c.l.b16 %v2875
    %v4135 = vunpack.c.h.b16 %v2875
    %v4136 = vunpack.c.l.b16 %v2876
    %v4137 = vunpack.c.h.b16 %v2876
    %v4138 = vunpack.c.l.b16 %v2877
    %v4139 = vunpack.c.l.b16 %v2878
    %v4140 = vunpack.c.h.b16 %v2878
    %v4141 = vunpack.c.l.b16 %v2879
    %v4142 = vunpack.c.h.b16 %v2879
    %v4143 = vunpack.c.l.b16 %v2880
    %v4144 = vunpack.c.h.b16 %v2880
    %v4145 = vunpack.c.l.b16 %v2881
    %v4146 = vunpack.c.l.b16 %v2882
    %v4147 = vunpack.c.h.b16 %v2882
    %v4148 = vunpack.c.l.b16 %v2883
    %v4149 = vunpack.c.h.b16 %v2883
    %v4150 = vunpack.c.l.b16 %v2884
    %v4151 = vunpack.c.h.b16 %v2884
    %v4152 = vunpack.c.l.b16 %v2885
    %v4153 = vunpack.c.l.b16 %v2886
    %v4154 = vunpack.c.h.b16 %v2886
    %v4155 = vunpack.c.l.b16 %v2887
    %v4156 = vunpack.c.h.b16 %v2887
    %v4157 = vunpack.c.l.b16 %v2888
    %v4158 = vunpack.c.h.b16 %v2888
    %v4159 = vunpack.c.l.b16 %v2889
    %v4160 = vunpack.c.l.b16 %v2890
    %v4161 = vunpack.c.h.b16 %v2890
    %v4162 = vunpack.c.l.b16 %v2891
    %v4163 = vunpack.c.h.b16 %v2891
    %v4164 = vunpack.c.l.b16 %v2892
    %v4165 = vunpack.c.h.b16 %v2892
    %v4166 = vunpack.c.l.b16 %v2893
    %v4167 = vunpack.c.l.b16 %v2894
    %v4168 = vunpack.c.h.b16 %v2894
    %v4169 = vunpack.c.l.b16 %v2895
    %v4170 = vunpack.c.h.b16 %v2895
    %v4171 = vunpack.c.l.b16 %v2896
    %v4172 = vunpack.c.h.b16 %v2896
    %v4173 = vunpack.c.l.b16 %v2897
    %v4174 = vunpack.c.l.b16 %v2898
    %v4175 = vunpack.c.h.b16 %v2898
    %v4176 = vunpack.c.l.b16 %v2899
    %v4177 = vunpack.c.h.b16 %v2899
    %v4178 = vunpack.c.l.b16 %v2900
    %v4179 = vunpack.c.h.b16 %v2900
    %v4180 = vunpack.c.l.b16 %v2901
    %v4181 = vunpack.c.l.b16 %v2902
    %v4182 = vunpack.c.h.b16 %v2902
    %v4183 = vunpack.c.l.b16 %v2903
    %v4184 = vunpack.c.h.b16 %v2903
    %v4185 = vunpack.c.l.b16 %v2904
    %v4186 = vunpack.c.h.b16 %v2904
    %v4187 = vunpack.c.l.b16 %v2905
    %v4188 = vunpack.c.l.b16 %v2906
    %v4189 = vunpack.c.h.b16 %v2906
    %v4190 = vunpack.c.l.b16 %v2907
    %v4191 = vunpack.c.h.b16 %v2907
    %v4192 = vunpack.c.l.b16 %v2908
    %v4193 = vunpack.c.h.b16 %v2908
    %v4194 = vunpack.c.l.b16 %v2909
    %v4195 = vunpack.c.l.b16 %v2910
    %v4196 = vunpack.c.h.b16 %v2910
    %v4197 = vunpack.c.l.b16 %v2911
    %v4198 = vunpack.c.h.b16 %v2911
    %v4199 = vunpack.c.l.b16 %v2912
    %v4200 = vunpack.c.h.b16 %v2912
    %v4201 = vunpack.c.l.b16 %v2913
    %v4202 = vunpack.c.l.b16 %v2914
    %v4203 = vunpack.c.h.b16 %v2914
    %v4204 = vunpack.c.l.b16 %v2915
    %v4205 = vunpack.c.h.b16 %v2915
    %v4206 = vunpack.c.l.b16 %v2916
    %v4207 = vunpack.c.h.b16 %v2916
    %v4208 = vunpack.c.l.b16 %v2917
    %v4209 = vunpack.c.l.b16 %v2918
    %v4210 = vunpack.c.h.b16 %v2918
    %v4211 = vunpack.c.l.b16 %v2919
    %v4212 = vunpack.c.h.b16 %v2919
    %v4213 = vunpack.c.l.b16 %v2920
    %v4214 = vunpack.c.h.b16 %v2920
    %v4215 = vunpack.c.l.b16 %v2921
    %v4216 = vunpack.c.l.b16 %v2922
    %v4217 = vunpack.c.h.b16 %v2922
    %v4218 = vunpack.c.l.b16 %v2923
    %v4219 = vunpack.c.h.b16 %v2923
    %v4220 = vunpack.c.l.b16 %v2924
    %v4221 = vunpack.c.h.b16 %v2924
    %v4222 = vunpack.c.l.b16 %v2925
    %v4223 = vunpack.c.l.b16 %v2926
    %v4224 = vunpack.c.h.b16 %v2926
    %v4225 = vunpack.c.l.b16 %v2927
    %v4226 = vunpack.c.h.b16 %v2927
    %v4227 = vunpack.c.l.b16 %v2928
    %v4228 = vunpack.c.h.b16 %v2928
    %v4229 = vunpack.c.l.b16 %v2929
    %v4230 = vunpack.c.l.b16 %v2930
    %v4231 = vunpack.c.h.b16 %v2930
    %v4232 = vunpack.c.l.b16 %v2931
    %v4233 = vunpack.c.h.b16 %v2931
    %v4234 = vunpack.c.l.b16 %v2932
    %v4235 = vunpack.c.h.b16 %v2932
    %v4236 = vunpack.c.l.b16 %v2933
    %v4237 = vunpack.c.l.b16 %v2934
    %v4238 = vunpack.c.h.b16 %v2934
    %v4239 = vunpack.c.l.b16 %v2935
    %v4240 = vunpack.c.h.b16 %v2935
    %v4241 = vunpack.c.l.b16 %v2936
    %v4242 = vunpack.c.h.b16 %v2936
    %v4243 = vunpack.c.l.b16 %v2937
    %v4244 = vunpack.c.l.b16 %v2938
    %v4245 = vunpack.c.h.b16 %v2938
    %v4246 = vunpack.c.l.b16 %v2939
    %v4247 = vunpack.c.h.b16 %v2939
    %v4248 = vunpack.c.l.b16 %v2940
    %v4249 = vunpack.c.h.b16 %v2940
    %v4250 = vunpack.c.l.b16 %v2941
    %v4251 = vunpack.c.l.b16 %v2942
    %v4252 = vunpack.c.h.b16 %v2942
    %v4253 = vunpack.c.l.b16 %v2943
    %v4254 = vunpack.c.h.b16 %v2943
    %v4255 = vunpack.c.l.b16 %v2944
    %v4256 = vunpack.c.h.b16 %v2944
    %v4257 = vunpack.c.l.b16 %v2945
    %v4258 = vunpack.c.l.b16 %v2946
    %v4259 = vunpack.c.h.b16 %v2946
    %v4260 = vunpack.c.l.b16 %v2947
    %v4261 = vunpack.c.h.b16 %v2947
    %v4262 = vunpack.c.l.b16 %v2948
    %v4263 = vunpack.c.h.b16 %v2948
    %v4264 = vunpack.c.l.b16 %v2949
    %v4265 = vunpack.c.l.b16 %v2950
    %v4266 = vunpack.c.h.b16 %v2950
    %v4267 = vunpack.c.l.b16 %v2951
    %v4268 = vunpack.c.h.b16 %v2951
    %v4269 = vunpack.c.l.b16 %v2952
    %v4270 = vunpack.c.h.b16 %v2952
    %v4271 = vunpack.c.l.b16 %v2953
    %v4272 = vpack.c.b16 %v3607, %v3600
    %v4273 = vpack.c.b16 %v3608, %v3601
    %v4274 = vpack.c.b16 %v3609, %v3602
    %v4275 = vpack.c.b16 %v3610, %v3603
    %v4276 = vpack.c.b16 %v3611, %v3604
    %v4277 = vpack.c.b16 %v3612, %v3605
    %v4278 = vpack.c.b16 %v3613, %v3606
    %v4279 = vpack.c.b16 %v3621, %v3614
    %v4280 = vpack.c.b16 %v3622, %v3615
    %v4281 = vpack.c.b16 %v3623, %v3616
    %v4282 = vpack.c.b16 %v3624, %v3617
    %v4283 = vpack.c.b16 %v3625, %v3618
    %v4284 = vpack.c.b16 %v3626, %v3619
    %v4285 = vpack.c.b16 %v3627, %v3620
    %v4286 = vpack.c.b16 %v3635, %v3628
    %v4287 = vpack.c.b16 %v3636, %v3629
    %v4288 = vpack.c.b16 %v3637, %v3630
    %v4289 = vpack.c.b16 %v3638, %v3631
    %v4290 = vpack.c.b16 %v3639, %v3632
    %v4291 = vpack.c.b16 %v3640, %v3633
    %v4292 = vpack.c.b16 %v3641, %v3634
    %v4293 = vpack.c.b16 %v3649, %v3642
    %v4294 = vpack.c.b16 %v3650, %v3643
    %v4295 = vpack.c.b16 %v3651, %v3644
    %v4296 = vpack.c.b16 %v3652, %v3645
    %v4297 = vpack.c.b16 %v3653, %v3646
    %v4298 = vpack.c.b16 %v3654, %v3647
    %v4299 = vpack.c.b16 %v3655, %v3648
    %v4300 = vpack.c.b16 %v3663, %v3656
    %v4301 = vpack.c.b16 %v3664, %v3657
    %v4302 = vpack.c.b16 %v3665, %v3658
    %v4303 = vpack.c.b16 %v3666, %v3659
    %v4304 = vpack.c.b16 %v3667, %v3660
    %v4305 = vpack.c.b16 %v3668, %v3661
    %v4306 = vpack.c.b16 %v3669, %v3662
    %v4307 = vpack.c.b16 %v3677, %v3670
    %v4308 = vpack.c.b16 %v3678, %v3671
    %v4309 = vpack.c.b16 %v3679, %v3672
    %v4310 = vpack.c.b16 %v3680, %v3673
    %v4311 = vpack.c.b16 %v3681, %v3674
    %v4312 = vpack.c.b16 %v3682, %v3675
    %v4313 = vpack.c.b16 %v3683, %v3676
    %v4314 = vpack.c.b16 %v3691, %v3684
    %v4315 = vpack.c.b16 %v3692, %v3685
    %v4316 = vpack.c.b16 %v3693, %v3686
    %v4317 = vpack.c.b16 %v3694, %v3687
    %v4318 = vpack.c.b16 %v3695, %v3688
    %v4319 = vpack.c.b16 %v3696, %v3689
    %v4320 = vpack.c.b16 %v3697, %v3690
    %v4321 = vpack.c.b16 %v3705, %v3698
    %v4322 = vpack.c.b16 %v3706, %v3699
    %v4323 = vpack.c.b16 %v3707, %v3700
    %v4324 = vpack.c.b16 %v3708, %v3701
    %v4325 = vpack.c.b16 %v3709, %v3702
    %v4326 = vpack.c.b16 %v3710, %v3703
    %v4327 = vpack.c.b16 %v3711, %v3704
    %v4328 = vpack.c.b16 %v3719, %v3712
    %v4329 = vpack.c.b16 %v3720, %v3713
    %v4330 = vpack.c.b16 %v3721, %v3714
    %v4331 = vpack.c.b16 %v3722, %v3715
    %v4332 = vpack.c.b16 %v3723, %v3716
    %v4333 = vpack.c.b16 %v3724, %v3717
    %v4334 = vpack.c.b16 %v3725, %v3718
    %v4335 = vpack.c.b16 %v3733, %v3726
    %v4336 = vpack.c.b16 %v3734, %v3727
    %v4337 = vpack.c.b16 %v3735, %v3728
    %v4338 = vpack.c.b16 %v3736, %v3729
    %v4339 = vpack.c.b16 %v3737, %v3730
    %v4340 = vpack.c.b16 %v3738, %v3731
    %v4341 = vpack.c.b16 %v3739, %v3732
    %v4342 = vpack.c.b16 %v3747, %v3740
    %v4343 = vpack.c.b16 %v3748, %v3741
    %v4344 = vpack.c.b16 %v3749, %v3742
    %v4345 = vpack.c.b16 %v3750, %v3743
    %v4346 = vpack.c.b16 %v3751, %v3744
    %v4347 = vpack.c.b16 %v3752, %v3745
    %v4348 = vpack.c.b16 %v3753, %v3746
    %v4349 = vpack.c.b16 %v3761, %v3754
    %v4350 = vpack.c.b16 %v3762, %v3755
    %v4351 = vpack.c.b16 %v3763, %v3756
    %v4352 = vpack.c.b16 %v3764, %v3757
    %v4353 = vpack.c.b16 %v3765, %v3758
    %v4354 = vpack.c.b16 %v3766, %v3759
    %v4355 = vpack.c.b16 %v3767, %v3760
    %v4356 = vpack.c.b16 %v3775, %v3768
    %v4357 = vpack.c.b16 %v3776, %v3769
    %v4358 = vpack.c.b16 %v3777, %v3770
    %v4359 = vpack.c.b16 %v3778, %v3771
    %v4360 = vpack.c.b16 %v3779, %v3772
    %v4361 = vpack.c.b16 %v3780, %v3773
    %v4362 = vpack.c.b16 %v3781, %v3774
    %v4363 = vpack.c.b16 %v3789, %v3782
    %v4364 = vpack.c.b16 %v3790, %v3783
    %v4365 = vpack.c.b16 %v3791, %v3784
    %v4366 = vpack.c.b16 %v3792, %v3785
    %v4367 = vpack.c.b16 %v3793, %v3786
    %v4368 = vpack.c.b16 %v3794, %v3787
    %v4369 = vpack.c.b16 %v3795, %v3788
    %v4370 = vpack.c.b16 %v3803, %v3796
    %v4371 = vpack.c.b16 %v3804, %v3797
    %v4372 = vpack.c.b16 %v3805, %v3798
    %v4373 = vpack.c.b16 %v3806, %v3799
    %v4374 = vpack.c.b16 %v3807, %v3800
    %v4375 = vpack.c.b16 %v3808, %v3801
    %v4376 = vpack.c.b16 %v3809, %v3802
    %v4377 = vpack.c.b16 %v3817, %v3810
    %v4378 = vpack.c.b16 %v3818, %v3811
    %v4379 = vpack.c.b16 %v3819, %v3812
    %v4380 = vpack.c.b16 %v3820, %v3813
    %v4381 = vpack.c.b16 %v3821, %v3814
    %v4382 = vpack.c.b16 %v3822, %v3815
    %v4383 = vpack.c.b16 %v3823, %v3816
    %v4384 = vpack.c.b16 %v3831, %v3824
    %v4385 = vpack.c.b16 %v3832, %v3825
    %v4386 = vpack.c.b16 %v3833, %v3826
    %v4387 = vpack.c.b16 %v3834, %v3827
    %v4388 = vpack.c.b16 %v3835, %v3828
    %v4389 = vpack.c.b16 %v3836, %v3829
    %v4390 = vpack.c.b16 %v3837, %v3830
    %v4391 = vpack.c.b16 %v3845, %v3838
    %v4392 = vpack.c.b16 %v3846, %v3839
    %v4393 = vpack.c.b16 %v3847, %v3840
    %v4394 = vpack.c.b16 %v3848, %v3841
    %v4395 = vpack.c.b16 %v3849, %v3842
    %v4396 = vpack.c.b16 %v3850, %v3843
    %v4397 = vpack.c.b16 %v3851, %v3844
    %v4398 = vpack.c.b16 %v3859, %v3852
    %v4399 = vpack.c.b16 %v3860, %v3853
    %v4400 = vpack.c.b16 %v3861, %v3854
    %v4401 = vpack.c.b16 %v3862, %v3855
    %v4402 = vpack.c.b16 %v3863, %v3856
    %v4403 = vpack.c.b16 %v3864, %v3857
    %v4404 = vpack.c.b16 %v3865, %v3858
    %v4405 = vpack.c.b16 %v3873, %v3866
    %v4406 = vpack.c.b16 %v3874, %v3867
    %v4407 = vpack.c.b16 %v3875, %v3868
    %v4408 = vpack.c.b16 %v3876, %v3869
    %v4409 = vpack.c.b16 %v3877, %v3870
    %v4410 = vpack.c.b16 %v3878, %v3871
    %v4411 = vpack.c.b16 %v3879, %v3872
    %v4412 = vpack.c.b16 %v3887, %v3880
    %v4413 = vpack.c.b16 %v3888, %v3881
    %v4414 = vpack.c.b16 %v3889, %v3882
    %v4415 = vpack.c.b16 %v3890, %v3883
    %v4416 = vpack.c.b16 %v3891, %v3884
    %v4417 = vpack.c.b16 %v3892, %v3885
    %v4418 = vpack.c.b16 %v3893, %v3886
    %v4419 = vpack.c.b16 %v3901, %v3894
    %v4420 = vpack.c.b16 %v3902, %v3895
    %v4421 = vpack.c.b16 %v3903, %v3896
    %v4422 = vpack.c.b16 %v3904, %v3897
    %v4423 = vpack.c.b16 %v3905, %v3898
    %v4424 = vpack.c.b16 %v3906, %v3899
    %v4425 = vpack.c.b16 %v3907, %v3900
    %v4426 = vpack.c.b16 %v3915, %v3908
    %v4427 = vpack.c.b16 %v3916, %v3909
    %v4428 = vpack.c.b16 %v3917, %v3910
    %v4429 = vpack.c.b16 %v3918, %v3911
    %v4430 = vpack.c.b16 %v3919, %v3912
    %v4431 = vpack.c.b16 %v3920, %v3913
    %v4432 = vpack.c.b16 %v3921, %v3914
    %v4433 = vpack.c.b16 %v3929, %v3922
    %v4434 = vpack.c.b16 %v3930, %v3923
    %v4435 = vpack.c.b16 %v3931, %v3924
    %v4436 = vpack.c.b16 %v3932, %v3925
    %v4437 = vpack.c.b16 %v3933, %v3926
    %v4438 = vpack.c.b16 %v3934, %v3927
    %v4439 = vpack.c.b16 %v3935, %v3928
    %v4440 = vpack.c.b16 %v3943, %v3936
    %v4441 = vpack.c.b16 %v3944, %v3937
    %v4442 = vpack.c.b16 %v3945, %v3938
    %v4443 = vpack.c.b16 %v3946, %v3939
    %v4444 = vpack.c.b16 %v3947, %v3940
    %v4445 = vpack.c.b16 %v3948, %v3941
    %v4446 = vpack.c.b16 %v3949, %v3942
    %v4447 = vpack.c.b16 %v3957, %v3950
    %v4448 = vpack.c.b16 %v3958, %v3951
    %v4449 = vpack.c.b16 %v3959, %v3952
    %v4450 = vpack.c.b16 %v3960, %v3953
    %v4451 = vpack.c.b16 %v3961, %v3954
    %v4452 = vpack.c.b16 %v3962, %v3955
    %v4453 = vpack.c.b16 %v3963, %v3956
    %v4454 = vpack.c.b16 %v3971, %v3964
    %v4455 = vpack.c.b16 %v3972, %v3965
    %v4456 = vpack.c.b16 %v3973, %v3966
    %v4457 = vpack.c.b16 %v3974, %v3967
    %v4458 = vpack.c.b16 %v3975, %v3968
    %v4459 = vpack.c.b16 %v3976, %v3969
    %v4460 = vpack.c.b16 %v3977, %v3970
    %v4461 = vpack.c.b16 %v3985, %v3978
    %v4462 = vpack.c.b16 %v3986, %v3979
    %v4463 = vpack.c.b16 %v3987, %v3980
    %v4464 = vpack.c.b16 %v3988, %v3981
    %v4465 = vpack.c.b16 %v3989, %v3982
    %v4466 = vpack.c.b16 %v3990, %v3983
    %v4467 = vpack.c.b16 %v3991, %v3984
    %v4468 = vpack.c.b16 %v3999, %v3992
    %v4469 = vpack.c.b16 %v4000, %v3993
    %v4470 = vpack.c.b16 %v4001, %v3994
    %v4471 = vpack.c.b16 %v4002, %v3995
    %v4472 = vpack.c.b16 %v4003, %v3996
    %v4473 = vpack.c.b16 %v4004, %v3997
    %v4474 = vpack.c.b16 %v4005, %v3998
    %v4475 = vpack.c.b16 %v4013, %v4006
    %v4476 = vpack.c.b16 %v4014, %v4007
    %v4477 = vpack.c.b16 %v4015, %v4008
    %v4478 = vpack.c.b16 %v4016, %v4009
    %v4479 = vpack.c.b16 %v4017, %v4010
    %v4480 = vpack.c.b16 %v4018, %v4011
    %v4481 = vpack.c.b16 %v4019, %v4012
    %v4482 = vpack.c.b16 %v4027, %v4020
    %v4483 = vpack.c.b16 %v4028, %v4021
    %v4484 = vpack.c.b16 %v4029, %v4022
    %v4485 = vpack.c.b16 %v4030, %v4023
    %v4486 = vpack.c.b16 %v4031, %v4024
    %v4487 = vpack.c.b16 %v4032, %v4025
    %v4488 = vpack.c.b16 %v4033, %v4026
    %v4489 = vpack.c.b16 %v4041, %v4034
    %v4490 = vpack.c.b16 %v4042, %v4035
    %v4491 = vpack.c.b16 %v4043, %v4036
    %v4492 = vpack.c.b16 %v4044, %v4037
    %v4493 = vpack.c.b16 %v4045, %v4038
    %v4494 = vpack.c.b16 %v4046, %v4039
    %v4495 = vpack.c.b16 %v4047, %v4040
    %v4496 = vpack.c.b16 %v4055, %v4048
    %v4497 = vpack.c.b16 %v4056, %v4049
    %v4498 = vpack.c.b16 %v4057, %v4050
    %v4499 = vpack.c.b16 %v4058, %v4051
    %v4500 = vpack.c.b16 %v4059, %v4052
    %v4501 = vpack.c.b16 %v4060, %v4053
    %v4502 = vpack.c.b16 %v4061, %v4054
    %v4503 = vpack.c.b16 %v4069, %v4062
    %v4504 = vpack.c.b16 %v4070, %v4063
    %v4505 = vpack.c.b16 %v4071, %v4064
    %v4506 = vpack.c.b16 %v4072, %v4065
    %v4507 = vpack.c.b16 %v4073, %v4066
    %v4508 = vpack.c.b16 %v4074, %v4067
    %v4509 = vpack.c.b16 %v4075, %v4068
    %v4510 = vpack.c.b16 %v4083, %v4076
    %v4511 = vpack.c.b16 %v4084, %v4077
    %v4512 = vpack.c.b16 %v4085, %v4078
    %v4513 = vpack.c.b16 %v4086, %v4079
    %v4514 = vpack.c.b16 %v4087, %v4080
    %v4515 = vpack.c.b16 %v4088, %v4081
    %v4516 = vpack.c.b16 %v4089, %v4082
    %v4517 = vpack.c.b16 %v4097, %v4090
    %v4518 = vpack.c.b16 %v4098, %v4091
    %v4519 = vpack.c.b16 %v4099, %v4092
    %v4520 = vpack.c.b16 %v4100, %v4093
    %v4521 = vpack.c.b16 %v4101, %v4094
    %v4522 = vpack.c.b16 %v4102, %v4095
    %v4523 = vpack.c.b16 %v4103, %v4096
    %v4524 = vpack.c.b16 %v4111, %v4104
    %v4525 = vpack.c.b16 %v4112, %v4105
    %v4526 = vpack.c.b16 %v4113, %v4106
    %v4527 = vpack.c.b16 %v4114, %v4107
    %v4528 = vpack.c.b16 %v4115, %v4108
    %v4529 = vpack.c.b16 %v4116, %v4109
    %v4530 = vpack.c.b16 %v4117, %v4110
    %v4531 = vpack.c.b16 %v4125, %v4118
    %v4532 = vpack.c.b16 %v4126, %v4119
    %v4533 = vpack.c.b16 %v4127, %v4120
    %v4534 = vpack.c.b16 %v4128, %v4121
    %v4535 = vpack.c.b16 %v4129, %v4122
    %v4536 = vpack.c.b16 %v4130, %v4123
    %v4537 = vpack.c.b16 %v4131, %v4124
    %v4538 = vpack.c.b16 %v4139, %v4132
    %v4539 = vpack.c.b16 %v4140, %v4133
    %v4540 = vpack.c.b16 %v4141, %v4134
    %v4541 = vpack.c.b16 %v4142, %v4135
    %v4542 = vpack.c.b16 %v4143, %v4136
    %v4543 = vpack.c.b16 %v4144, %v4137
    %v4544 = vpack.c.b16 %v4145, %v4138
    %v4545 = vpack.c.b16 %v4153, %v4146
    %v4546 = vpack.c.b16 %v4154, %v4147
    %v4547 = vpack.c.b16 %v4155, %v4148
    %v4548 = vpack.c.b16 %v4156, %v4149
    %v4549 = vpack.c.b16 %v4157, %v4150
    %v4550 = vpack.c.b16 %v4158, %v4151
    %v4551 = vpack.c.b16 %v4159, %v4152
    %v4552 = vpack.c.b16 %v4167, %v4160
    %v4553 = vpack.c.b16 %v4168, %v4161
    %v4554 = vpack.c.b16 %v4169, %v4162
    %v4555 = vpack.c.b16 %v4170, %v4163
    %v4556 = vpack.c.b16 %v4171, %v4164
    %v4557 = vpack.c.b16 %v4172, %v4165
    %v4558 = vpack.c.b16 %v4173, %v4166
    %v4559 = vpack.c.b16 %v4181, %v4174
    %v4560 = vpack.c.b16 %v4182, %v4175
    %v4561 = vpack.c.b16 %v4183, %v4176
    %v4562 = vpack.c.b16 %v4184, %v4177
    %v4563 = vpack.c.b16 %v4185, %v4178
    %v4564 = vpack.c.b16 %v4186, %v4179
    %v4565 = vpack.c.b16 %v4187, %v4180
    %v4566 = vpack.c.b16 %v4195, %v4188
    %v4567 = vpack.c.b16 %v4196, %v4189
    %v4568 = vpack.c.b16 %v4197, %v4190
    %v4569 = vpack.c.b16 %v4198, %v4191
    %v4570 = vpack.c.b16 %v4199, %v4192
    %v4571 = vpack.c.b16 %v4200, %v4193
    %v4572 = vpack.c.b16 %v4201, %v4194
    %v4573 = vpack.c.b16 %v4209, %v4202
    %v4574 = vpack.c.b16 %v4210, %v4203
    %v4575 = vpack.c.b16 %v4211, %v4204
    %v4576 = vpack.c.b16 %v4212, %v4205
    %v4577 = vpack.c.b16 %v4213, %v4206
    %v4578 = vpack.c.b16 %v4214, %v4207
    %v4579 = vpack.c.b16 %v4215, %v4208
    %v4580 = vpack.c.b16 %v4223, %v4216
    %v4581 = vpack.c.b16 %v4224, %v4217
    %v4582 = vpack.c.b16 %v4225, %v4218
    %v4583 = vpack.c.b16 %v4226, %v4219
    %v4584 = vpack.c.b16 %v4227, %v4220
    %v4585 = vpack.c.b16 %v4228, %v4221
    %v4586 = vpack.c.b16 %v4229, %v4222
    %v4587 = vpack.c.b16 %v4237, %v4230
    %v4588 = vpack.c.b16 %v4238, %v4231
    %v4589 = vpack.c.b16 %v4239, %v4232
    %v4590 = vpack.c.b16 %v4240, %v4233
    %v4591 = vpack.c.b16 %v4241, %v4234
    %v4592 = vpack.c.b16 %v4242, %v4235
    %v4593 = vpack.c.b16 %v4243, %v4236
    %v4594 = vpack.c.b16 %v4251, %v4244
    %v4595 = vpack.c.b16 %v4252, %v4245
    %v4596 = vpack.c.b16 %v4253, %v4246
    %v4597 = vpack.c.b16 %v4254, %v4247
    %v4598 = vpack.c.b16 %v4255, %v4248
    %v4599 = vpack.c.b16 %v4256, %v4249
    %v4600 = vpack.c.b16 %v4257, %v4250
    %v4601 = vpack.c.b16 %v4265, %v4258
    %v4602 = vpack.c.b16 %v4266, %v4259
    %v4603 = vpack.c.b16 %v4267, %v4260
    %v4604 = vpack.c.b16 %v4268, %v4261
    %v4605 = vpack.c.b16 %v4269, %v4262
    %v4606 = vpack.c.b16 %v4270, %v4263
    %v4607 = vpack.c.b16 %v4271, %v4264
    %4944 = vmatprep.subr.bf16.mxu0 %v4322
    %4945 = vmatpush1.bf16.msra.mxu0 %v4321
    %4946 = vmatprep.subr.bf16.mxu0 %v4315
    %4947 = vmatpush1.bf16.msra.mxu0 %v4314
    %4948 = vmatprep.subr.bf16.mxu0 %v4308
    %4949 = vmatpush1.bf16.msra.mxu0 %v4307
    %4950 = vmatprep.subr.bf16.mxu0 %v4301
    %4951 = vmatpush1.bf16.msra.mxu0 %v4300
    %4952 = vmatprep.subr.bf16.mxu0 %v4294
    %4953 = vmatpush1.bf16.msra.mxu0 %v4293
    %4954 = vmatprep.subr.bf16.mxu0 %v4287
    %4955 = vmatpush1.bf16.msra.mxu0 %v4286
    %4956 = vmatprep.subr.bf16.mxu0 %v4280
    %4957 = vmatpush1.bf16.msra.mxu0 %v4279
    %4958 = vmatprep.subr.bf16.mxu0 %v4273
    %4959 = vmatpush1.bf16.msra.mxu0 %v4272
    %4960 = vmatprep.subr.bf16.mxu0 %v4378
    %4961 = vmatpush2.bf16.msra.mxu0 %v4377
    %4962 = vmatprep.subr.bf16.mxu0 %v4371
    %4963 = vmatpush2.bf16.msra.mxu0 %v4370
    %4964 = vmatprep.subr.bf16.mxu0 %v4364
    %4965 = vmatpush2.bf16.msra.mxu0 %v4363
    %4966 = vmatprep.subr.bf16.mxu0 %v4357
    %4967 = vmatpush2.bf16.msra.mxu0 %v4356
    %4968 = vmatprep.subr.bf16.mxu0 %v4350
    %4969 = vmatpush2.bf16.msra.mxu0 %v4349
    %4970 = vmatprep.subr.bf16.mxu0 %v4343
    %4971 = vmatpush2.bf16.msra.mxu0 %v4342
    %4972 = vmatprep.subr.bf16.mxu0 %v4336
    %4973 = vmatpush2.bf16.msra.mxu0 %v4335
    %4974 = vmatprep.subr.bf16.mxu0 %v4329
    %4975 = vmatpush2.bf16.msra.mxu0 %v4328
    %4976 = vmatprep.mubr.bf16.mxu0 %v2412
    %4977 = vmatmul.mubr.bf16.gmra.mxu0 %v2411
    %v4978 = vpop.f32.mrf.mxu0
    %v4979 = vadd.f32 %v3081, %v4978
    %v4980 = vpop.f32.mrf.mxu0
    %v4981 = vadd.f32 %v3083, %v4980
    %v4982 = vpop.f32.mrf.mxu0
    %v4983 = vadd.f32 %v3085, %v4982
    %v4984 = vpop.f32.mrf.mxu0
    %v4985 = vadd.f32 %v3087, %v4984
    %4986 = vdwg.mxu0
    %4987 = vmatprep.subr.bf16.mxu0 %v4434
    %4988 = vmatpush1.bf16.msra.mxu0 %v4433
    %4989 = vmatprep.subr.bf16.mxu0 %v4427
    %4990 = vmatpush1.bf16.msra.mxu0 %v4426
    %4991 = vmatprep.subr.bf16.mxu0 %v4420
    %4992 = vmatpush1.bf16.msra.mxu0 %v4419
    %4993 = vmatprep.subr.bf16.mxu0 %v4413
    %4994 = vmatpush1.bf16.msra.mxu0 %v4412
    %4995 = vmatprep.subr.bf16.mxu0 %v4406
    %4996 = vmatpush1.bf16.msra.mxu0 %v4405
    %4997 = vmatprep.subr.bf16.mxu0 %v4399
    %4998 = vmatpush1.bf16.msra.mxu0 %v4398
    %4999 = vmatprep.subr.bf16.mxu0 %v4392
    %5000 = vmatpush1.bf16.msra.mxu0 %v4391
    %5001 = vmatprep.subr.bf16.mxu0 %v4385
    %5002 = vmatpush1.bf16.msra.mxu0 %v4384
    %5003 = vmatprep.subr.bf16.mxu0 %v4490
    %5004 = vmatpush2.bf16.msra.mxu0 %v4489
    %5005 = vmatprep.subr.bf16.mxu0 %v4483
    %5006 = vmatpush2.bf16.msra.mxu0 %v4482
    %5007 = vmatprep.subr.bf16.mxu0 %v4476
    %5008 = vmatpush2.bf16.msra.mxu0 %v4475
    %5009 = vmatprep.subr.bf16.mxu0 %v4469
    %5010 = vmatpush2.bf16.msra.mxu0 %v4468
    %5011 = vmatprep.subr.bf16.mxu0 %v4462
    %5012 = vmatpush2.bf16.msra.mxu0 %v4461
    %5013 = vmatprep.subr.bf16.mxu0 %v4455
    %5014 = vmatpush2.bf16.msra.mxu0 %v4454
    %5015 = vmatprep.subr.bf16.mxu0 %v4448
    %5016 = vmatpush2.bf16.msra.mxu0 %v4447
    %5017 = vmatprep.subr.bf16.mxu0 %v4441
    %5018 = vmatpush2.bf16.msra.mxu0 %v4440
    %5019 = vmatprep.mubr.bf16.mxu0 %v2414
    %5020 = vmatmul.mubr.bf16.gmra.mxu0 %v2413
    %v5021 = vpop.f32.mrf.mxu0
    %v5022 = vadd.f32 %v4979, %v5021
    %v5023 = vpop.f32.mrf.mxu0
    %v5024 = vadd.f32 %v4981, %v5023
    %v5025 = vpop.f32.mrf.mxu0
    %v5026 = vadd.f32 %v4983, %v5025
    %v5027 = vpop.f32.mrf.mxu0
    %v5028 = vadd.f32 %v4985, %v5027
    %5029 = vdwg.mxu0
    %5030 = vmatprep.subr.bf16.mxu0 %v4546
    %5031 = vmatpush1.bf16.msra.mxu0 %v4545
    %5032 = vmatprep.subr.bf16.mxu0 %v4539
    %5033 = vmatpush1.bf16.msra.mxu0 %v4538
    %5034 = vmatprep.subr.bf16.mxu0 %v4532
    %5035 = vmatpush1.bf16.msra.mxu0 %v4531
    %5036 = vmatprep.subr.bf16.mxu0 %v4525
    %5037 = vmatpush1.bf16.msra.mxu0 %v4524
    %5038 = vmatprep.subr.bf16.mxu0 %v4518
    %5039 = vmatpush1.bf16.msra.mxu0 %v4517
    %5040 = vmatprep.subr.bf16.mxu0 %v4511
    %5041 = vmatpush1.bf16.msra.mxu0 %v4510
    %5042 = vmatprep.subr.bf16.mxu0 %v4504
    %5043 = vmatpush1.bf16.msra.mxu0 %v4503
    %5044 = vmatprep.subr.bf16.mxu0 %v4497
    %5045 = vmatpush1.bf16.msra.mxu0 %v4496
    %5046 = vmatprep.subr.bf16.mxu0 %v4602
    %5047 = vmatpush2.bf16.msra.mxu0 %v4601
    %5048 = vmatprep.subr.bf16.mxu0 %v4595
    %5049 = vmatpush2.bf16.msra.mxu0 %v4594
    %5050 = vmatprep.subr.bf16.mxu0 %v4588
    %5051 = vmatpush2.bf16.msra.mxu0 %v4587
    %5052 = vmatprep.subr.bf16.mxu0 %v4581
    %5053 = vmatpush2.bf16.msra.mxu0 %v4580
    %5054 = vmatprep.subr.bf16.mxu0 %v4574
    %5055 = vmatpush2.bf16.msra.mxu0 %v4573
    %5056 = vmatprep.subr.bf16.mxu0 %v4567
    %5057 = vmatpush2.bf16.msra.mxu0 %v4566
    %5058 = vmatprep.subr.bf16.mxu0 %v4560
    %5059 = vmatpush2.bf16.msra.mxu0 %v4559
    %5060 = vmatprep.subr.bf16.mxu0 %v4553
    %5061 = vmatpush2.bf16.msra.mxu0 %v4552
    %5062 = vmatprep.mubr.bf16.mxu0 %v2416
    %5063 = vmatmul.mubr.bf16.gmra.mxu0 %v2415
    %v5064 = vpop.f32.mrf.mxu0
    %v5065 = vadd.f32 %v5022, %v5064
    %v5066 = vpop.f32.mrf.mxu0
    %v5067 = vadd.f32 %v5024, %v5066
    %v5068 = vpop.f32.mrf.mxu0
    %v5069 = vadd.f32 %v5026, %v5068
    %v5070 = vpop.f32.mrf.mxu0
    %v5071 = vadd.f32 %v5028, %v5070
    %5072 = vdwg.mxu0
    %5073 = vmatprep.subr.bf16.mxu0 %v4324
    %5074 = vmatpush1.bf16.msra.mxu0 %v4323
    %5075 = vmatprep.subr.bf16.mxu0 %v4317
    %5076 = vmatpush1.bf16.msra.mxu0 %v4316
    %5077 = vmatprep.subr.bf16.mxu0 %v4310
    %5078 = vmatpush1.bf16.msra.mxu0 %v4309
    %5079 = vmatprep.subr.bf16.mxu0 %v4303
    %5080 = vmatpush1.bf16.msra.mxu0 %v4302
    %5081 = vmatprep.subr.bf16.mxu0 %v4296
    %5082 = vmatpush1.bf16.msra.mxu0 %v4295
    %5083 = vmatprep.subr.bf16.mxu0 %v4289
    %5084 = vmatpush1.bf16.msra.mxu0 %v4288
    %5085 = vmatprep.subr.bf16.mxu0 %v4282
    %5086 = vmatpush1.bf16.msra.mxu0 %v4281
    %5087 = vmatprep.subr.bf16.mxu0 %v4275
    %5088 = vmatpush1.bf16.msra.mxu0 %v4274
    %5089 = vmatprep.subr.bf16.mxu0 %v4380
    %5090 = vmatpush2.bf16.msra.mxu0 %v4379
    %5091 = vmatprep.subr.bf16.mxu0 %v4373
    %5092 = vmatpush2.bf16.msra.mxu0 %v4372
    %5093 = vmatprep.subr.bf16.mxu0 %v4366
    %5094 = vmatpush2.bf16.msra.mxu0 %v4365
    %5095 = vmatprep.subr.bf16.mxu0 %v4359
    %5096 = vmatpush2.bf16.msra.mxu0 %v4358
    %5097 = vmatprep.subr.bf16.mxu0 %v4352
    %5098 = vmatpush2.bf16.msra.mxu0 %v4351
    %5099 = vmatprep.subr.bf16.mxu0 %v4345
    %5100 = vmatpush2.bf16.msra.mxu0 %v4344
    %5101 = vmatprep.subr.bf16.mxu0 %v4338
    %5102 = vmatpush2.bf16.msra.mxu0 %v4337
    %5103 = vmatprep.subr.bf16.mxu0 %v4331
    %5104 = vmatpush2.bf16.msra.mxu0 %v4330
    %5105 = vmatprep.mubr.bf16.mxu0 %v2412
    %5106 = vmatmul.mubr.bf16.gmra.mxu0 %v2411
    %v5107 = vpop.f32.mrf.mxu0
    %v5108 = vadd.f32 %v3124, %v5107
    %v5109 = vpop.f32.mrf.mxu0
    %v5110 = vadd.f32 %v3126, %v5109
    %v5111 = vpop.f32.mrf.mxu0
    %v5112 = vadd.f32 %v3128, %v5111
    %v5113 = vpop.f32.mrf.mxu0
    %v5114 = vadd.f32 %v3130, %v5113
    %5115 = vdwg.mxu0
    %5116 = vmatprep.subr.bf16.mxu0 %v4436
    %5117 = vmatpush1.bf16.msra.mxu0 %v4435
    %5118 = vmatprep.subr.bf16.mxu0 %v4429
    %5119 = vmatpush1.bf16.msra.mxu0 %v4428
    %5120 = vmatprep.subr.bf16.mxu0 %v4422
    %5121 = vmatpush1.bf16.msra.mxu0 %v4421
    %5122 = vmatprep.subr.bf16.mxu0 %v4415
    %5123 = vmatpush1.bf16.msra.mxu0 %v4414
    %5124 = vmatprep.subr.bf16.mxu0 %v4408
    %5125 = vmatpush1.bf16.msra.mxu0 %v4407
    %5126 = vmatprep.subr.bf16.mxu0 %v4401
    %5127 = vmatpush1.bf16.msra.mxu0 %v4400
    %5128 = vmatprep.subr.bf16.mxu0 %v4394
    %5129 = vmatpush1.bf16.msra.mxu0 %v4393
    %5130 = vmatprep.subr.bf16.mxu0 %v4387
    %5131 = vmatpush1.bf16.msra.mxu0 %v4386
    %5132 = vmatprep.subr.bf16.mxu0 %v4492
    %5133 = vmatpush2.bf16.msra.mxu0 %v4491
    %5134 = vmatprep.subr.bf16.mxu0 %v4485
    %5135 = vmatpush2.bf16.msra.mxu0 %v4484
    %5136 = vmatprep.subr.bf16.mxu0 %v4478
    %5137 = vmatpush2.bf16.msra.mxu0 %v4477
    %5138 = vmatprep.subr.bf16.mxu0 %v4471
    %5139 = vmatpush2.bf16.msra.mxu0 %v4470
    %5140 = vmatprep.subr.bf16.mxu0 %v4464
    %5141 = vmatpush2.bf16.msra.mxu0 %v4463
    %5142 = vmatprep.subr.bf16.mxu0 %v4457
    %5143 = vmatpush2.bf16.msra.mxu0 %v4456
    %5144 = vmatprep.subr.bf16.mxu0 %v4450
    %5145 = vmatpush2.bf16.msra.mxu0 %v4449
    %5146 = vmatprep.subr.bf16.mxu0 %v4443
    %5147 = vmatpush2.bf16.msra.mxu0 %v4442
    %5148 = vmatprep.mubr.bf16.mxu0 %v2414
    %5149 = vmatmul.mubr.bf16.gmra.mxu0 %v2413
    %v5150 = vpop.f32.mrf.mxu0
    %v5151 = vadd.f32 %v5108, %v5150
    %v5152 = vpop.f32.mrf.mxu0
    %v5153 = vadd.f32 %v5110, %v5152
    %v5154 = vpop.f32.mrf.mxu0
    %v5155 = vadd.f32 %v5112, %v5154
    %v5156 = vpop.f32.mrf.mxu0
    %v5157 = vadd.f32 %v5114, %v5156
    %5158 = vdwg.mxu0
    %5159 = vmatprep.subr.bf16.mxu0 %v4548
    %5160 = vmatpush1.bf16.msra.mxu0 %v4547
    %5161 = vmatprep.subr.bf16.mxu0 %v4541
    %5162 = vmatpush1.bf16.msra.mxu0 %v4540
    %5163 = vmatprep.subr.bf16.mxu0 %v4534
    %5164 = vmatpush1.bf16.msra.mxu0 %v4533
    %5165 = vmatprep.subr.bf16.mxu0 %v4527
    %5166 = vmatpush1.bf16.msra.mxu0 %v4526
    %5167 = vmatprep.subr.bf16.mxu0 %v4520
    %5168 = vmatpush1.bf16.msra.mxu0 %v4519
    %5169 = vmatprep.subr.bf16.mxu0 %v4513
    %5170 = vmatpush1.bf16.msra.mxu0 %v4512
    %5171 = vmatprep.subr.bf16.mxu0 %v4506
    %5172 = vmatpush1.bf16.msra.mxu0 %v4505
    %5173 = vmatprep.subr.bf16.mxu0 %v4499
    %5174 = vmatpush1.bf16.msra.mxu0 %v4498
    %5175 = vmatprep.subr.bf16.mxu0 %v4604
    %5176 = vmatpush2.bf16.msra.mxu0 %v4603
    %5177 = vmatprep.subr.bf16.mxu0 %v4597
    %5178 = vmatpush2.bf16.msra.mxu0 %v4596
    %5179 = vmatprep.subr.bf16.mxu0 %v4590
    %5180 = vmatpush2.bf16.msra.mxu0 %v4589
    %5181 = vmatprep.subr.bf16.mxu0 %v4583
    %5182 = vmatpush2.bf16.msra.mxu0 %v4582
    %5183 = vmatprep.subr.bf16.mxu0 %v4576
    %5184 = vmatpush2.bf16.msra.mxu0 %v4575
    %5185 = vmatprep.subr.bf16.mxu0 %v4569
    %5186 = vmatpush2.bf16.msra.mxu0 %v4568
    %5187 = vmatprep.subr.bf16.mxu0 %v4562
    %5188 = vmatpush2.bf16.msra.mxu0 %v4561
    %5189 = vmatprep.subr.bf16.mxu0 %v4555
    %5190 = vmatpush2.bf16.msra.mxu0 %v4554
    %5191 = vmatprep.mubr.bf16.mxu0 %v2416
    %5192 = vmatmul.mubr.bf16.gmra.mxu0 %v2415
    %v5193 = vpop.f32.mrf.mxu0
    %v5194 = vadd.f32 %v5151, %v5193
    %v5195 = vpop.f32.mrf.mxu0
    %v5196 = vadd.f32 %v5153, %v5195
    %v5197 = vpop.f32.mrf.mxu0
    %v5198 = vadd.f32 %v5155, %v5197
    %v5199 = vpop.f32.mrf.mxu0
    %v5200 = vadd.f32 %v5157, %v5199
    %5201 = vdwg.mxu0
    %5202 = vmatprep.subr.bf16.mxu0 %v4326
    %5203 = vmatpush1.bf16.msra.mxu0 %v4325
    %5204 = vmatprep.subr.bf16.mxu0 %v4319
    %5205 = vmatpush1.bf16.msra.mxu0 %v4318
    %5206 = vmatprep.subr.bf16.mxu0 %v4312
    %5207 = vmatpush1.bf16.msra.mxu0 %v4311
    %5208 = vmatprep.subr.bf16.mxu0 %v4305
    %5209 = vmatpush1.bf16.msra.mxu0 %v4304
    %5210 = vmatprep.subr.bf16.mxu0 %v4298
    %5211 = vmatpush1.bf16.msra.mxu0 %v4297
    %5212 = vmatprep.subr.bf16.mxu0 %v4291
    %5213 = vmatpush1.bf16.msra.mxu0 %v4290
    %5214 = vmatprep.subr.bf16.mxu0 %v4284
    %5215 = vmatpush1.bf16.msra.mxu0 %v4283
    %5216 = vmatprep.subr.bf16.mxu0 %v4277
    %5217 = vmatpush1.bf16.msra.mxu0 %v4276
    %5218 = vmatprep.subr.bf16.mxu0 %v4382
    %5219 = vmatpush2.bf16.msra.mxu0 %v4381
    %5220 = vmatprep.subr.bf16.mxu0 %v4375
    %5221 = vmatpush2.bf16.msra.mxu0 %v4374
    %5222 = vmatprep.subr.bf16.mxu0 %v4368
    %5223 = vmatpush2.bf16.msra.mxu0 %v4367
    %5224 = vmatprep.subr.bf16.mxu0 %v4361
    %5225 = vmatpush2.bf16.msra.mxu0 %v4360
    %5226 = vmatprep.subr.bf16.mxu0 %v4354
    %5227 = vmatpush2.bf16.msra.mxu0 %v4353
    %5228 = vmatprep.subr.bf16.mxu0 %v4347
    %5229 = vmatpush2.bf16.msra.mxu0 %v4346
    %5230 = vmatprep.subr.bf16.mxu0 %v4340
    %5231 = vmatpush2.bf16.msra.mxu0 %v4339
    %5232 = vmatprep.subr.bf16.mxu0 %v4333
    %5233 = vmatpush2.bf16.msra.mxu0 %v4332
    %5234 = vmatprep.mubr.bf16.mxu0 %v2412
    %5235 = vmatmul.mubr.bf16.gmra.mxu0 %v2411
    %v5236 = vpop.f32.mrf.mxu0
    %v5237 = vadd.f32 %v3167, %v5236
    %v5238 = vpop.f32.mrf.mxu0
    %v5239 = vadd.f32 %v3169, %v5238
    %v5240 = vpop.f32.mrf.mxu0
    %v5241 = vadd.f32 %v3171, %v5240
    %v5242 = vpop.f32.mrf.mxu0
    %v5243 = vadd.f32 %v3173, %v5242
    %5244 = vdwg.mxu0
    %5245 = vmatprep.subr.bf16.mxu0 %v4438
    %5246 = vmatpush1.bf16.msra.mxu0 %v4437
    %5247 = vmatprep.subr.bf16.mxu0 %v4431
    %5248 = vmatpush1.bf16.msra.mxu0 %v4430
    %5249 = vmatprep.subr.bf16.mxu0 %v4424
    %5250 = vmatpush1.bf16.msra.mxu0 %v4423
    %5251 = vmatprep.subr.bf16.mxu0 %v4417
    %5252 = vmatpush1.bf16.msra.mxu0 %v4416
    %5253 = vmatprep.subr.bf16.mxu0 %v4410
    %5254 = vmatpush1.bf16.msra.mxu0 %v4409
    %5255 = vmatprep.subr.bf16.mxu0 %v4403
    %5256 = vmatpush1.bf16.msra.mxu0 %v4402
    %5257 = vmatprep.subr.bf16.mxu0 %v4396
    %5258 = vmatpush1.bf16.msra.mxu0 %v4395
    %5259 = vmatprep.subr.bf16.mxu0 %v4389
    %5260 = vmatpush1.bf16.msra.mxu0 %v4388
    %5261 = vmatprep.subr.bf16.mxu0 %v4494
    %5262 = vmatpush2.bf16.msra.mxu0 %v4493
    %5263 = vmatprep.subr.bf16.mxu0 %v4487
    %5264 = vmatpush2.bf16.msra.mxu0 %v4486
    %5265 = vmatprep.subr.bf16.mxu0 %v4480
    %5266 = vmatpush2.bf16.msra.mxu0 %v4479
    %5267 = vmatprep.subr.bf16.mxu0 %v4473
    %5268 = vmatpush2.bf16.msra.mxu0 %v4472
    %5269 = vmatprep.subr.bf16.mxu0 %v4466
    %5270 = vmatpush2.bf16.msra.mxu0 %v4465
    %5271 = vmatprep.subr.bf16.mxu0 %v4459
    %5272 = vmatpush2.bf16.msra.mxu0 %v4458
    %5273 = vmatprep.subr.bf16.mxu0 %v4452
    %5274 = vmatpush2.bf16.msra.mxu0 %v4451
    %5275 = vmatprep.subr.bf16.mxu0 %v4445
    %5276 = vmatpush2.bf16.msra.mxu0 %v4444
    %5277 = vmatprep.mubr.bf16.mxu0 %v2414
    %5278 = vmatmul.mubr.bf16.gmra.mxu0 %v2413
    %v5279 = vpop.f32.mrf.mxu0
    %v5280 = vadd.f32 %v5237, %v5279
    %v5281 = vpop.f32.mrf.mxu0
    %v5282 = vadd.f32 %v5239, %v5281
    %v5283 = vpop.f32.mrf.mxu0
    %v5284 = vadd.f32 %v5241, %v5283
    %v5285 = vpop.f32.mrf.mxu0
    %v5286 = vadd.f32 %v5243, %v5285
    %5287 = vdwg.mxu0
    %5288 = vmatprep.subr.bf16.mxu0 %v4550
    %5289 = vmatpush1.bf16.msra.mxu0 %v4549
    %5290 = vmatprep.subr.bf16.mxu0 %v4543
    %5291 = vmatpush1.bf16.msra.mxu0 %v4542
    %5292 = vmatprep.subr.bf16.mxu0 %v4536
    %5293 = vmatpush1.bf16.msra.mxu0 %v4535
    %5294 = vmatprep.subr.bf16.mxu0 %v4529
    %5295 = vmatpush1.bf16.msra.mxu0 %v4528
    %5296 = vmatprep.subr.bf16.mxu0 %v4522
    %5297 = vmatpush1.bf16.msra.mxu0 %v4521
    %5298 = vmatprep.subr.bf16.mxu0 %v4515
    %5299 = vmatpush1.bf16.msra.mxu0 %v4514
    %5300 = vmatprep.subr.bf16.mxu0 %v4508
    %5301 = vmatpush1.bf16.msra.mxu0 %v4507
    %5302 = vmatprep.subr.bf16.mxu0 %v4501
    %5303 = vmatpush1.bf16.msra.mxu0 %v4500
    %5304 = vmatprep.subr.bf16.mxu0 %v4606
    %5305 = vmatpush2.bf16.msra.mxu0 %v4605
    %5306 = vmatprep.subr.bf16.mxu0 %v4599
    %5307 = vmatpush2.bf16.msra.mxu0 %v4598
    %5308 = vmatprep.subr.bf16.mxu0 %v4592
    %5309 = vmatpush2.bf16.msra.mxu0 %v4591
    %5310 = vmatprep.subr.bf16.mxu0 %v4585
    %5311 = vmatpush2.bf16.msra.mxu0 %v4584
    %5312 = vmatprep.subr.bf16.mxu0 %v4578
    %5313 = vmatpush2.bf16.msra.mxu0 %v4577
    %5314 = vmatprep.subr.bf16.mxu0 %v4571
    %5315 = vmatpush2.bf16.msra.mxu0 %v4570
    %5316 = vmatprep.subr.bf16.mxu0 %v4564
    %5317 = vmatpush2.bf16.msra.mxu0 %v4563
    %5318 = vmatprep.subr.bf16.mxu0 %v4557
    %5319 = vmatpush2.bf16.msra.mxu0 %v4556
    %5320 = vmatprep.mubr.bf16.mxu0 %v2416
    %5321 = vmatmul.mubr.bf16.gmra.mxu0 %v2415
    %v5322 = vpop.f32.mrf.mxu0
    %v5323 = vadd.f32 %v5280, %v5322
    %v5324 = vpop.f32.mrf.mxu0
    %v5325 = vadd.f32 %v5282, %v5324
    %v5326 = vpop.f32.mrf.mxu0
    %v5327 = vadd.f32 %v5284, %v5326
    %v5328 = vpop.f32.mrf.mxu0
    %v5329 = vadd.f32 %v5286, %v5328
    %5330 = vdwg.mxu0
    %5331 = vmatprep.subr.bf16.mxu0 0
    %5332 = vmatpush1.bf16.msra.mxu0 %v4327
    %5333 = vmatprep.subr.bf16.mxu0 0
    %5334 = vmatpush1.bf16.msra.mxu0 %v4320
    %5335 = vmatprep.subr.bf16.mxu0 0
    %5336 = vmatpush1.bf16.msra.mxu0 %v4313
    %5337 = vmatprep.subr.bf16.mxu0 0
    %5338 = vmatpush1.bf16.msra.mxu0 %v4306
    %5339 = vmatprep.subr.bf16.mxu0 0
    %5340 = vmatpush1.bf16.msra.mxu0 %v4299
    %5341 = vmatprep.subr.bf16.mxu0 0
    %5342 = vmatpush1.bf16.msra.mxu0 %v4292
    %5343 = vmatprep.subr.bf16.mxu0 0
    %5344 = vmatpush1.bf16.msra.mxu0 %v4285
    %5345 = vmatprep.subr.bf16.mxu0 0
    %5346 = vmatpush1.bf16.msra.mxu0 %v4278
    %5347 = vmatprep.subr.bf16.mxu0 0
    %5348 = vmatpush2.bf16.msra.mxu0 %v4383
    %5349 = vmatprep.subr.bf16.mxu0 0
    %5350 = vmatpush2.bf16.msra.mxu0 %v4376
    %5351 = vmatprep.subr.bf16.mxu0 0
    %5352 = vmatpush2.bf16.msra.mxu0 %v4369
    %5353 = vmatprep.subr.bf16.mxu0 0
    %5354 = vmatpush2.bf16.msra.mxu0 %v4362
    %5355 = vmatprep.subr.bf16.mxu0 0
    %5356 = vmatpush2.bf16.msra.mxu0 %v4355
    %5357 = vmatprep.subr.bf16.mxu0 0
    %5358 = vmatpush2.bf16.msra.mxu0 %v4348
    %5359 = vmatprep.subr.bf16.mxu0 0
    %5360 = vmatpush2.bf16.msra.mxu0 %v4341
    %5361 = vmatprep.subr.bf16.mxu0 0
    %5362 = vmatpush2.bf16.msra.mxu0 %v4334
    %5363 = vmatprep.mubr.bf16.mxu0 %v2412
    %5364 = vmatmul.mubr.bf16.gmra.mxu0 %v2411
    %v5365 = vpop.f32.mrf.mxu0
    %v5366 = vadd.f32 %v3210, %v5365
    %v5367 = vpop.f32.mrf.mxu0
    %v5368 = vpop.f32.mrf.mxu0
    %v5369 = vadd.f32 %v3213, %v5368
    %v5370 = vpop.f32.mrf.mxu0
    %5371 = vdwg.mxu0
    %5372 = vmatprep.subr.bf16.mxu0 0
    %5373 = vmatpush1.bf16.msra.mxu0 %v4439
    %5374 = vmatprep.subr.bf16.mxu0 0
    %5375 = vmatpush1.bf16.msra.mxu0 %v4432
    %5376 = vmatprep.subr.bf16.mxu0 0
    %5377 = vmatpush1.bf16.msra.mxu0 %v4425
    %5378 = vmatprep.subr.bf16.mxu0 0
    %5379 = vmatpush1.bf16.msra.mxu0 %v4418
    %5380 = vmatprep.subr.bf16.mxu0 0
    %5381 = vmatpush1.bf16.msra.mxu0 %v4411
    %5382 = vmatprep.subr.bf16.mxu0 0
    %5383 = vmatpush1.bf16.msra.mxu0 %v4404
    %5384 = vmatprep.subr.bf16.mxu0 0
    %5385 = vmatpush1.bf16.msra.mxu0 %v4397
    %5386 = vmatprep.subr.bf16.mxu0 0
    %5387 = vmatpush1.bf16.msra.mxu0 %v4390
    %5388 = vmatprep.subr.bf16.mxu0 0
    %5389 = vmatpush2.bf16.msra.mxu0 %v4495
    %5390 = vmatprep.subr.bf16.mxu0 0
    %5391 = vmatpush2.bf16.msra.mxu0 %v4488
    %5392 = vmatprep.subr.bf16.mxu0 0
    %5393 = vmatpush2.bf16.msra.mxu0 %v4481
    %5394 = vmatprep.subr.bf16.mxu0 0
    %5395 = vmatpush2.bf16.msra.mxu0 %v4474
    %5396 = vmatprep.subr.bf16.mxu0 0
    %5397 = vmatpush2.bf16.msra.mxu0 %v4467
    %5398 = vmatprep.subr.bf16.mxu0 0
    %5399 = vmatpush2.bf16.msra.mxu0 %v4460
    %5400 = vmatprep.subr.bf16.mxu0 0
    %5401 = vmatpush2.bf16.msra.mxu0 %v4453
    %5402 = vmatprep.subr.bf16.mxu0 0
    %5403 = vmatpush2.bf16.msra.mxu0 %v4446
    %5404 = vmatprep.mubr.bf16.mxu0 %v2414
    %5405 = vmatmul.mubr.bf16.gmra.mxu0 %v2413
    %v5406 = vpop.f32.mrf.mxu0
    %v5407 = vadd.f32 %v5366, %v5406
    %v5408 = vpop.f32.mrf.mxu0
    %v5409 = vpop.f32.mrf.mxu0
    %v5410 = vadd.f32 %v5369, %v5409
    %v5411 = vpop.f32.mrf.mxu0
    %5412 = vdwg.mxu0
    %5413 = vmatprep.subr.bf16.mxu0 0
    %5414 = vmatpush1.bf16.msra.mxu0 %v4551
    %5415 = vmatprep.subr.bf16.mxu0 0
    %5416 = vmatpush1.bf16.msra.mxu0 %v4544
    %5417 = vmatprep.subr.bf16.mxu0 0
    %5418 = vmatpush1.bf16.msra.mxu0 %v4537
    %5419 = vmatprep.subr.bf16.mxu0 0
    %5420 = vmatpush1.bf16.msra.mxu0 %v4530
    %5421 = vmatprep.subr.bf16.mxu0 0
    %5422 = vmatpush1.bf16.msra.mxu0 %v4523
    %5423 = vmatprep.subr.bf16.mxu0 0
    %5424 = vmatpush1.bf16.msra.mxu0 %v4516
    %5425 = vmatprep.subr.bf16.mxu0 0
    %5426 = vmatpush1.bf16.msra.mxu0 %v4509
    %5427 = vmatprep.subr.bf16.mxu0 0
    %5428 = vmatpush1.bf16.msra.mxu0 %v4502
    %5429 = vmatprep.subr.bf16.mxu0 0
    %5430 = vmatpush2.bf16.msra.mxu0 %v4607
    %5431 = vmatprep.subr.bf16.mxu0 0
    %5432 = vmatpush2.bf16.msra.mxu0 %v4600
    %5433 = vmatprep.subr.bf16.mxu0 0
    %5434 = vmatpush2.bf16.msra.mxu0 %v4593
    %5435 = vmatprep.subr.bf16.mxu0 0
    %5436 = vmatpush2.bf16.msra.mxu0 %v4586
    %5437 = vmatprep.subr.bf16.mxu0 0
    %5438 = vmatpush2.bf16.msra.mxu0 %v4579
    %5439 = vmatprep.subr.bf16.mxu0 0
    %5440 = vmatpush2.bf16.msra.mxu0 %v4572
    %5441 = vmatprep.subr.bf16.mxu0 0
    %5442 = vmatpush2.bf16.msra.mxu0 %v4565
    %5443 = vmatprep.subr.bf16.mxu0 0
    %5444 = vmatpush2.bf16.msra.mxu0 %v4558
    %5445 = vmatprep.mubr.bf16.mxu0 %v2416
    %5446 = vmatmul.mubr.bf16.gmra.mxu0 %v2415
    %v5447 = vpop.f32.mrf.mxu0
    %v5448 = vadd.f32 %v5407, %v5447
    %v5449 = vpop.f32.mrf.mxu0
    %v5450 = vpop.f32.mrf.mxu0
    %v5451 = vadd.f32 %v5410, %v5450
    %v5452 = vpop.f32.mrf.mxu0
    %5453 = vdwg.mxu0
    %v5454 = vld [vmem:[#allocation17] sm:$0xff]
    %v5456 = vlaneseq
    %v5457 = vshrl.u32 %v5456, 7
    %v5458 = vsub.s32 0, %v5457
    %v5459 = vrot.slane %v5454, %v5458
    %v5460 = vlaneseq
    %v5461 = vshrl.u32 %v5460, 7
    %v5462 = vsub.s32 1, %v5461
    %v5463 = vrot.slane %v5454, %v5462
    %v5464 = vlaneseq
    %v5465 = vshrl.u32 %v5464, 7
    %v5466 = vsub.s32 2, %v5465
    %v5467 = vrot.slane %v5454, %v5466
    %v5468 = vlaneseq
    %v5469 = vshrl.u32 %v5468, 7
    %v5470 = vsub.s32 3, %v5469
    %v5471 = vrot.slane %v5454, %v5470
    %v5472 = vlaneseq
    %v5473 = vshrl.u32 %v5472, 7
    %v5474 = vsub.s32 4, %v5473
    %v5475 = vrot.slane %v5454, %v5474
    %v5476 = vlaneseq
    %v5477 = vshrl.u32 %v5476, 7
    %v5478 = vsub.s32 5, %v5477
    %v5479 = vrot.slane %v5454, %v5478
    %v5480 = vlaneseq
    %v5481 = vshrl.u32 %v5480, 7
    %v5482 = vsub.s32 6, %v5481
    %v5483 = vrot.slane %v5454, %v5482
    %v5491 = vadd.f32 %v5065, %v5459
    %v5492 = vadd.f32 %v5067, %v5463
    %v5493 = vadd.f32 %v5194, %v5467
    %v5494 = vadd.f32 %v5196, %v5471
    %v5495 = vadd.f32 %v5323, %v5475
    %v5496 = vadd.f32 %v5325, %v5479
    %v5497 = vadd.f32 %v5448, %v5483
    %v5498 = vadd.f32 %v5069, %v5459
    %v5499 = vadd.f32 %v5071, %v5463
    %v5500 = vadd.f32 %v5198, %v5467
    %v5501 = vadd.f32 %v5200, %v5471
    %v5502 = vadd.f32 %v5327, %v5475
    %v5503 = vadd.f32 %v5329, %v5479
    %v5504 = vadd.f32 %v5451, %v5483
    %v5505 = vmax.f32 %v5491, 0.0
    %v5506 = vmax.f32 %v5492, 0.0
    %v5507 = vmax.f32 %v5493, 0.0
    %v5508 = vmax.f32 %v5494, 0.0
    %v5509 = vmax.f32 %v5495, 0.0
    %v5510 = vmax.f32 %v5496, 0.0
    %v5511 = vmax.f32 %v5497, 0.0
    %v5512 = vmax.f32 %v5498, 0.0
    %v5513 = vmax.f32 %v5499, 0.0
    %v5514 = vmax.f32 %v5500, 0.0
    %v5515 = vmax.f32 %v5501, 0.0
    %v5516 = vmax.f32 %v5502, 0.0
    %v5517 = vmax.f32 %v5503, 0.0
    %v5518 = vmax.f32 %v5504, 0.0
    %v5519 = vpack.c.bf16 %v5512, %v5505
    %v5520 = vpack.c.bf16 %v5513, %v5506
    %v5521 = vpack.c.bf16 %v5514, %v5507
    %v5522 = vpack.c.bf16 %v5515, %v5508
    %v5523 = vpack.c.bf16 %v5516, %v5509
    %v5524 = vpack.c.bf16 %v5517, %v5510
    %v5525 = vpack.c.bf16 %v5518, %v5511
    %v5526 = vld [vmem:[#allocation19] sm:$0xff]
    %v5527 = vld [vmem:[#allocation19 + $0x8] sm:$0xff]
    %v5528 = vld [vmem:[#allocation19 + $0x10] sm:$0xff]
    %v5529 = vld [vmem:[#allocation19 + $0x18] sm:$0xff]
    %v5530 = vld [vmem:[#allocation19 + $0x20] sm:$0xff]
    %v5531 = vld [vmem:[#allocation19 + $0x28] sm:$0xff]
    %v5532 = vld [vmem:[#allocation19 + $0x30] sm:$0xff]
    %v5533 = vld [vmem:[#allocation19 + $0x38] sm:$0xff]
    %v5534 = vld [vmem:[#allocation19 + $0x40] sm:$0xff]
    %v5535 = vld [vmem:[#allocation19 + $0x48] sm:$0xff]
    %v5536 = vld [vmem:[#allocation19 + $0x50] sm:$0xff]
    %v5537 = vld [vmem:[#allocation19 + $0x58] sm:$0xff]
    %v5538 = vld [vmem:[#allocation19 + $0x60] sm:$0xff]
    %v5539 = vld [vmem:[#allocation19 + $0x68] sm:$0xff]
    %v5540 = vld [vmem:[#allocation19 + $0x70] sm:$0xff]
    %v5541 = vld [vmem:[#allocation19 + $0x78] sm:$0xff]
    %v5542 = vld [vmem:[#allocation19 + $0x80] sm:$0xff]
    %v5543 = vld [vmem:[#allocation19 + $0x88] sm:$0xff]
    %v5544 = vld [vmem:[#allocation19 + $0x90] sm:$0xff]
    %v5545 = vld [vmem:[#allocation19 + $0x98] sm:$0xff]
    %v5546 = vld [vmem:[#allocation19 + $0xa0] sm:$0xff]
    %v5547 = vld [vmem:[#allocation19 + $0xa8] sm:$0xff]
    %v5548 = vld [vmem:[#allocation19 + $0xb0] sm:$0xff]
    %v5549 = vld [vmem:[#allocation19 + $0xb8] sm:$0xff]
    %v5550 = vld [vmem:[#allocation19 + $0xc0] sm:$0xff]
    %v5551 = vld [vmem:[#allocation19 + $0xc8] sm:$0xff]
    %v5552 = vld [vmem:[#allocation19 + $0xd0] sm:$0xff]
    %v5553 = vld [vmem:[#allocation19 + $0xd8] sm:$0xff]
    %v5554 = vld [vmem:[#allocation19 + $0xe0] sm:$0xff]
    %v5555 = vld [vmem:[#allocation19 + $0xe8] sm:$0xff]
    %v5556 = vld [vmem:[#allocation19 + $0xf0] sm:$0xff]
    %v5557 = vld [vmem:[#allocation19 + $0xf8] sm:$0xff]
    %v5558 = vld [vmem:[#allocation19 + $0x100] sm:$0xff]
    %v5559 = vld [vmem:[#allocation19 + $0x108] sm:$0xff]
    %v5560 = vld [vmem:[#allocation19 + $0x110] sm:$0xff]
    %v5561 = vld [vmem:[#allocation19 + $0x118] sm:$0xff]
    %v5562 = vld [vmem:[#allocation19 + $0x120] sm:$0xff]
    %v5563 = vld [vmem:[#allocation19 + $0x128] sm:$0xff]
    %v5564 = vld [vmem:[#allocation19 + $0x130] sm:$0xff]
    %v5565 = vld [vmem:[#allocation19 + $0x138] sm:$0xff]
    %v5566 = vld [vmem:[#allocation19 + $0x140] sm:$0xff]
    %v5567 = vld [vmem:[#allocation19 + $0x148] sm:$0xff]
    %v5568 = vld [vmem:[#allocation19 + $0x150] sm:$0xff]
    %v5569 = vld [vmem:[#allocation19 + $0x158] sm:$0xff]
    %v5570 = vld [vmem:[#allocation19 + $0x160] sm:$0xff]
    %v5571 = vld [vmem:[#allocation19 + $0x168] sm:$0xff]
    %v5572 = vld [vmem:[#allocation19 + $0x170] sm:$0xff]
    %v5573 = vld [vmem:[#allocation19 + $0x178] sm:$0xff]
    %v5574 = vld [vmem:[#allocation19 + $0x180] sm:$0xff]
    %v5575 = vld [vmem:[#allocation19 + $0x188] sm:$0xff]
    %v5576 = vld [vmem:[#allocation19 + $0x190] sm:$0xff]
    %v5577 = vld [vmem:[#allocation19 + $0x198] sm:$0xff]
    %v5578 = vld [vmem:[#allocation19 + $0x1a0] sm:$0xff]
    %v5579 = vld [vmem:[#allocation19 + $0x1a8] sm:$0xff]
    %v5580 = vld [vmem:[#allocation19 + $0x1b0] sm:$0xff]
    %v5581 = vld [vmem:[#allocation19 + $0x1b8] sm:$0xff]
    %v5582 = vld [vmem:[#allocation19 + $0x1c0] sm:$0xff]
    %v5583 = vld [vmem:[#allocation19 + $0x1c8] sm:$0xff]
    %v5584 = vld [vmem:[#allocation19 + $0x1d0] sm:$0xff]
    %v5585 = vld [vmem:[#allocation19 + $0x1d8] sm:$0xff]
    %v5586 = vld [vmem:[#allocation19 + $0x1e0] sm:$0xff]
    %v5587 = vld [vmem:[#allocation19 + $0x1e8] sm:$0xff]
    %v5588 = vld [vmem:[#allocation19 + $0x1f0] sm:$0xff]
    %v5589 = vld [vmem:[#allocation19 + $0x1f8] sm:$0xff]
    %v5590 = vld [vmem:[#allocation19 + $0x200] sm:$0xff]
    %v5591 = vld [vmem:[#allocation19 + $0x208] sm:$0xff]
    %v5592 = vld [vmem:[#allocation19 + $0x210] sm:$0xff]
    %v5593 = vld [vmem:[#allocation19 + $0x218] sm:$0xff]
    %v5594 = vld [vmem:[#allocation19 + $0x220] sm:$0xff]
    %v5595 = vld [vmem:[#allocation19 + $0x228] sm:$0xff]
    %v5596 = vld [vmem:[#allocation19 + $0x230] sm:$0xff]
    %v5597 = vld [vmem:[#allocation19 + $0x238] sm:$0xff]
    %v5598 = vld [vmem:[#allocation19 + $0x240] sm:$0xff]
    %v5599 = vld [vmem:[#allocation19 + $0x248] sm:$0xff]
    %v5600 = vld [vmem:[#allocation19 + $0x250] sm:$0xff]
    %v5601 = vld [vmem:[#allocation19 + $0x258] sm:$0xff]
    %v5602 = vld [vmem:[#allocation19 + $0x260] sm:$0xff]
    %v5603 = vld [vmem:[#allocation19 + $0x268] sm:$0xff]
    %v5604 = vld [vmem:[#allocation19 + $0x270] sm:$0xff]
    %v5605 = vld [vmem:[#allocation19 + $0x278] sm:$0xff]
    %v5606 = vld [vmem:[#allocation19 + $0x280] sm:$0xff]
    %v5607 = vld [vmem:[#allocation19 + $0x288] sm:$0xff]
    %v5608 = vld [vmem:[#allocation19 + $0x290] sm:$0xff]
    %v5609 = vld [vmem:[#allocation19 + $0x298] sm:$0xff]
    %v5610 = vld [vmem:[#allocation19 + $0x2a0] sm:$0xff]
    %v5611 = vld [vmem:[#allocation19 + $0x2a8] sm:$0xff]
    %v5612 = vld [vmem:[#allocation19 + $0x2b0] sm:$0xff]
    %v5613 = vld [vmem:[#allocation19 + $0x2b8] sm:$0xff]
    %v5614 = vld [vmem:[#allocation19 + $0x2c0] sm:$0xff]
    %v5615 = vld [vmem:[#allocation19 + $0x2c8] sm:$0xff]
    %v5616 = vld [vmem:[#allocation19 + $0x2d0] sm:$0xff]
    %v5617 = vld [vmem:[#allocation19 + $0x2d8] sm:$0xff]
    %v5618 = vld [vmem:[#allocation19 + $0x2e0] sm:$0xff]
    %v5619 = vld [vmem:[#allocation19 + $0x2e8] sm:$0xff]
    %v5620 = vld [vmem:[#allocation19 + $0x2f0] sm:$0xff]
    %v5621 = vld [vmem:[#allocation19 + $0x2f8] sm:$0xff]
    %v5622 = vld [vmem:[#allocation19 + $0x300] sm:$0xff]
    %v5623 = vld [vmem:[#allocation19 + $0x308] sm:$0xff]
    %v5624 = vld [vmem:[#allocation19 + $0x310] sm:$0xff]
    %v5625 = vld [vmem:[#allocation19 + $0x318] sm:$0xff]
    %v5626 = vld [vmem:[#allocation19 + $0x320] sm:$0xff]
    %v5627 = vld [vmem:[#allocation19 + $0x328] sm:$0xff]
    %v5628 = vld [vmem:[#allocation19 + $0x330] sm:$0xff]
    %v5629 = vld [vmem:[#allocation19 + $0x338] sm:$0xff]
    %v5630 = vld [vmem:[#allocation19 + $0x340] sm:$0xff]
    %v5631 = vld [vmem:[#allocation19 + $0x348] sm:$0xff]
    %v5632 = vld [vmem:[#allocation19 + $0x350] sm:$0xff]
    %v5633 = vld [vmem:[#allocation19 + $0x358] sm:$0xff]
    %v5634 = vld [vmem:[#allocation19 + $0x360] sm:$0xff]
    %v5635 = vld [vmem:[#allocation19 + $0x368] sm:$0xff]
    %v5636 = vld [vmem:[#allocation19 + $0x370] sm:$0xff]
    %v5637 = vld [vmem:[#allocation19 + $0x378] sm:$0xff]
    %v5638 = vld [vmem:[#allocation19 + $0x380] sm:$0xff]
    %v5639 = vld [vmem:[#allocation19 + $0x388] sm:$0xff]
    %v5640 = vld [vmem:[#allocation19 + $0x390] sm:$0xff]
    %v5641 = vld [vmem:[#allocation19 + $0x398] sm:$0xff]
    %v5642 = vld [vmem:[#allocation19 + $0x3a0] sm:$0xff]
    %v5643 = vld [vmem:[#allocation19 + $0x3a8] sm:$0xff]
    %v5644 = vld [vmem:[#allocation19 + $0x3b0] sm:$0xff]
    %v5645 = vld [vmem:[#allocation19 + $0x3b8] sm:$0xff]
    %v5646 = vld [vmem:[#allocation19 + $0x3c0] sm:$0xff]
    %v5647 = vld [vmem:[#allocation19 + $0x3c8] sm:$0xff]
    %v5648 = vld [vmem:[#allocation19 + $0x3d0] sm:$0xff]
    %v5649 = vld [vmem:[#allocation19 + $0x3d8] sm:$0xff]
    %v5650 = vld [vmem:[#allocation19 + $0x3e0] sm:$0xff]
    %v5651 = vld [vmem:[#allocation19 + $0x3e8] sm:$0xff]
    %v5652 = vld [vmem:[#allocation19 + $0x3f0] sm:$0xff]
    %v5653 = vld [vmem:[#allocation19 + $0x3f8] sm:$0xff]
    %v5654 = vld [vmem:[#allocation19 + $0x400] sm:$0xff]
    %v5655 = vld [vmem:[#allocation19 + $0x408] sm:$0xff]
    %v5656 = vld [vmem:[#allocation19 + $0x410] sm:$0xff]
    %v5657 = vld [vmem:[#allocation19 + $0x418] sm:$0xff]
    %v5658 = vld [vmem:[#allocation19 + $0x420] sm:$0xff]
    %v5659 = vld [vmem:[#allocation19 + $0x428] sm:$0xff]
    %v5660 = vld [vmem:[#allocation19 + $0x430] sm:$0xff]
    %v5661 = vld [vmem:[#allocation19 + $0x438] sm:$0xff]
    %v5662 = vld [vmem:[#allocation19 + $0x440] sm:$0xff]
    %v5663 = vld [vmem:[#allocation19 + $0x448] sm:$0xff]
    %v5664 = vld [vmem:[#allocation19 + $0x450] sm:$0xff]
    %v5665 = vld [vmem:[#allocation19 + $0x458] sm:$0xff]
    %v5666 = vld [vmem:[#allocation19 + $0x460] sm:$0xff]
    %v5667 = vld [vmem:[#allocation19 + $0x468] sm:$0xff]
    %v5668 = vld [vmem:[#allocation19 + $0x470] sm:$0xff]
    %v5669 = vld [vmem:[#allocation19 + $0x478] sm:$0xff]
    %v5670 = vld [vmem:[#allocation19 + $0x480] sm:$0xff]
    %v5671 = vld [vmem:[#allocation19 + $0x488] sm:$0xff]
    %v5672 = vld [vmem:[#allocation19 + $0x490] sm:$0xff]
    %v5673 = vld [vmem:[#allocation19 + $0x498] sm:$0xff]
    %v5674 = vld [vmem:[#allocation19 + $0x4a0] sm:$0xff]
    %v5675 = vld [vmem:[#allocation19 + $0x4a8] sm:$0xff]
    %v5676 = vld [vmem:[#allocation19 + $0x4b0] sm:$0xff]
    %v5677 = vld [vmem:[#allocation19 + $0x4b8] sm:$0xff]
    %v5678 = vld [vmem:[#allocation19 + $0x4c0] sm:$0xff]
    %v5679 = vld [vmem:[#allocation19 + $0x4c8] sm:$0xff]
    %v5680 = vld [vmem:[#allocation19 + $0x4d0] sm:$0xff]
    %v5681 = vld [vmem:[#allocation19 + $0x4d8] sm:$0xff]
    %v5682 = vld [vmem:[#allocation19 + $0x4e0] sm:$0xff]
    %v5683 = vld [vmem:[#allocation19 + $0x4e8] sm:$0xff]
    %v5684 = vld [vmem:[#allocation19 + $0x4f0] sm:$0xff]
    %v5685 = vld [vmem:[#allocation19 + $0x4f8] sm:$0xff]
    %v5686 = vld [vmem:[#allocation19 + $0x500] sm:$0xff]
    %v5687 = vld [vmem:[#allocation19 + $0x508] sm:$0xff]
    %v5688 = vld [vmem:[#allocation19 + $0x510] sm:$0xff]
    %v5689 = vld [vmem:[#allocation19 + $0x518] sm:$0xff]
    %v5690 = vld [vmem:[#allocation19 + $0x520] sm:$0xff]
    %v5691 = vld [vmem:[#allocation19 + $0x528] sm:$0xff]
    %v5692 = vld [vmem:[#allocation19 + $0x530] sm:$0xff]
    %v5693 = vld [vmem:[#allocation19 + $0x538] sm:$0xff]
    %v5694 = vld [vmem:[#allocation19 + $0x540] sm:$0xff]
    %v5695 = vld [vmem:[#allocation19 + $0x548] sm:$0xff]
    %v5696 = vld [vmem:[#allocation19 + $0x550] sm:$0xff]
    %v5697 = vld [vmem:[#allocation19 + $0x558] sm:$0xff]
    %v5698 = vld [vmem:[#allocation19 + $0x560] sm:$0xff]
    %v5699 = vld [vmem:[#allocation19 + $0x568] sm:$0xff]
    %v5700 = vld [vmem:[#allocation19 + $0x570] sm:$0xff]
    %v5701 = vld [vmem:[#allocation19 + $0x578] sm:$0xff]
    %v5702 = vld [vmem:[#allocation19 + $0x580] sm:$0xff]
    %v5703 = vld [vmem:[#allocation19 + $0x588] sm:$0xff]
    %v5704 = vld [vmem:[#allocation19 + $0x590] sm:$0xff]
    %v5705 = vld [vmem:[#allocation19 + $0x598] sm:$0xff]
    %v5706 = vld [vmem:[#allocation19 + $0x5a0] sm:$0xff]
    %v5707 = vld [vmem:[#allocation19 + $0x5a8] sm:$0xff]
    %v5708 = vld [vmem:[#allocation19 + $0x5b0] sm:$0xff]
    %v5709 = vld [vmem:[#allocation19 + $0x5b8] sm:$0xff]
    %v5710 = vld [vmem:[#allocation19 + $0x5c0] sm:$0xff]
    %v5711 = vld [vmem:[#allocation19 + $0x5c8] sm:$0xff]
    %v5712 = vld [vmem:[#allocation19 + $0x5d0] sm:$0xff]
    %v5713 = vld [vmem:[#allocation19 + $0x5d8] sm:$0xff]
    %v5714 = vld [vmem:[#allocation19 + $0x5e0] sm:$0xff]
    %v5715 = vld [vmem:[#allocation19 + $0x5e8] sm:$0xff]
    %v5716 = vld [vmem:[#allocation19 + $0x5f0] sm:$0xff]
    %v5717 = vld [vmem:[#allocation19 + $0x5f8] sm:$0xff]
    %v5718 = vld [vmem:[#allocation19 + $0x600] sm:$0xff]
    %v5719 = vld [vmem:[#allocation19 + $0x608] sm:$0xff]
    %v5720 = vld [vmem:[#allocation19 + $0x610] sm:$0xff]
    %v5721 = vld [vmem:[#allocation19 + $0x618] sm:$0xff]
    %v5722 = vld [vmem:[#allocation19 + $0x620] sm:$0xff]
    %v5723 = vld [vmem:[#allocation19 + $0x628] sm:$0xff]
    %v5724 = vld [vmem:[#allocation19 + $0x630] sm:$0xff]
    %v5725 = vld [vmem:[#allocation19 + $0x638] sm:$0xff]
    %v5726 = vld [vmem:[#allocation19 + $0x640] sm:$0xff]
    %v5727 = vld [vmem:[#allocation19 + $0x648] sm:$0xff]
    %v5728 = vld [vmem:[#allocation19 + $0x650] sm:$0xff]
    %v5729 = vld [vmem:[#allocation19 + $0x658] sm:$0xff]
    %v5730 = vld [vmem:[#allocation19 + $0x660] sm:$0xff]
    %v5731 = vld [vmem:[#allocation19 + $0x668] sm:$0xff]
    %v5732 = vld [vmem:[#allocation19 + $0x670] sm:$0xff]
    %v5733 = vld [vmem:[#allocation19 + $0x678] sm:$0xff]
    %v5734 = vld [vmem:[#allocation19 + $0x680] sm:$0xff]
    %v5735 = vld [vmem:[#allocation19 + $0x688] sm:$0xff]
    %v5736 = vld [vmem:[#allocation19 + $0x690] sm:$0xff]
    %v5737 = vld [vmem:[#allocation19 + $0x698] sm:$0xff]
    %v5738 = vld [vmem:[#allocation19 + $0x6a0] sm:$0xff]
    %v5739 = vld [vmem:[#allocation19 + $0x6a8] sm:$0xff]
    %v5740 = vld [vmem:[#allocation19 + $0x6b0] sm:$0xff]
    %v5741 = vld [vmem:[#allocation19 + $0x6b8] sm:$0xff]
    %v5742 = vld [vmem:[#allocation19 + $0x6c0] sm:$0xff]
    %v5743 = vld [vmem:[#allocation19 + $0x6c8] sm:$0xff]
    %v5744 = vld [vmem:[#allocation19 + $0x6d0] sm:$0xff]
    %v5745 = vld [vmem:[#allocation19 + $0x6d8] sm:$0xff]
    %v5746 = vld [vmem:[#allocation19 + $0x6e0] sm:$0xff]
    %v5747 = vld [vmem:[#allocation19 + $0x6e8] sm:$0xff]
    %v5748 = vld [vmem:[#allocation19 + $0x6f0] sm:$0xff]
    %v5749 = vld [vmem:[#allocation19 + $0x6f8] sm:$0xff]
    %v5750 = vld [vmem:[#allocation20] sm:$0xf]
    %v5752 = vlaneseq
    %v5753 = vshrl.u32 %v5752, 7
    %v5754 = vsub.s32 0, %v5753
    %v5755 = vrot.slane %v5750, %v5754
    %v5756 = vlaneseq
    %v5757 = vshrl.u32 %v5756, 7
    %v5758 = vsub.s32 1, %v5757
    %v5759 = vrot.slane %v5750, %v5758
    %v5760 = vlaneseq
    %v5761 = vshrl.u32 %v5760, 7
    %v5762 = vsub.s32 2, %v5761
    %v5763 = vrot.slane %v5750, %v5762
    %v5764 = vlaneseq
    %v5765 = vshrl.u32 %v5764, 7
    %v5766 = vsub.s32 3, %v5765
    %v5767 = vrot.slane %v5750, %v5766
    %v5996 = vunpack.c.l.b16 %v5526
    %v5997 = vunpack.c.h.b16 %v5526
    %v5998 = vunpack.c.l.b16 %v5527
    %v5999 = vunpack.c.h.b16 %v5527
    %v6000 = vunpack.c.l.b16 %v5528
    %v6001 = vunpack.c.h.b16 %v5528
    %v6002 = vunpack.c.l.b16 %v5529
    %v6003 = vunpack.c.h.b16 %v5529
    %v6004 = vunpack.c.l.b16 %v5530
    %v6005 = vunpack.c.h.b16 %v5530
    %v6006 = vunpack.c.l.b16 %v5531
    %v6007 = vunpack.c.h.b16 %v5531
    %v6008 = vunpack.c.l.b16 %v5532
    %v6009 = vunpack.c.h.b16 %v5532
    %v6010 = vunpack.c.l.b16 %v5533
    %v6011 = vunpack.c.h.b16 %v5533
    %v6012 = vunpack.c.l.b16 %v5534
    %v6013 = vunpack.c.h.b16 %v5534
    %v6014 = vunpack.c.l.b16 %v5535
    %v6015 = vunpack.c.h.b16 %v5535
    %v6016 = vunpack.c.l.b16 %v5536
    %v6017 = vunpack.c.h.b16 %v5536
    %v6018 = vunpack.c.l.b16 %v5537
    %v6019 = vunpack.c.h.b16 %v5537
    %v6020 = vunpack.c.l.b16 %v5538
    %v6021 = vunpack.c.h.b16 %v5538
    %v6022 = vunpack.c.l.b16 %v5539
    %v6023 = vunpack.c.h.b16 %v5539
    %v6024 = vunpack.c.l.b16 %v5540
    %v6025 = vunpack.c.h.b16 %v5540
    %v6026 = vunpack.c.l.b16 %v5541
    %v6027 = vunpack.c.h.b16 %v5541
    %v6028 = vunpack.c.l.b16 %v5542
    %v6029 = vunpack.c.h.b16 %v5542
    %v6030 = vunpack.c.l.b16 %v5543
    %v6031 = vunpack.c.h.b16 %v5543
    %v6032 = vunpack.c.l.b16 %v5544
    %v6033 = vunpack.c.h.b16 %v5544
    %v6034 = vunpack.c.l.b16 %v5545
    %v6035 = vunpack.c.h.b16 %v5545
    %v6036 = vunpack.c.l.b16 %v5546
    %v6037 = vunpack.c.h.b16 %v5546
    %v6038 = vunpack.c.l.b16 %v5547
    %v6039 = vunpack.c.h.b16 %v5547
    %v6040 = vunpack.c.l.b16 %v5548
    %v6041 = vunpack.c.h.b16 %v5548
    %v6042 = vunpack.c.l.b16 %v5549
    %v6043 = vunpack.c.h.b16 %v5549
    %v6044 = vunpack.c.l.b16 %v5550
    %v6045 = vunpack.c.h.b16 %v5550
    %v6046 = vunpack.c.l.b16 %v5551
    %v6047 = vunpack.c.h.b16 %v5551
    %v6048 = vunpack.c.l.b16 %v5552
    %v6049 = vunpack.c.h.b16 %v5552
    %v6050 = vunpack.c.l.b16 %v5553
    %v6051 = vunpack.c.h.b16 %v5553
    %v6052 = vunpack.c.l.b16 %v5554
    %v6053 = vunpack.c.h.b16 %v5554
    %v6054 = vunpack.c.l.b16 %v5555
    %v6055 = vunpack.c.h.b16 %v5555
    %v6056 = vunpack.c.l.b16 %v5556
    %v6057 = vunpack.c.h.b16 %v5556
    %v6058 = vunpack.c.l.b16 %v5557
    %v6059 = vunpack.c.h.b16 %v5557
    %v6060 = vunpack.c.l.b16 %v5558
    %v6061 = vunpack.c.h.b16 %v5558
    %v6062 = vunpack.c.l.b16 %v5559
    %v6063 = vunpack.c.h.b16 %v5559
    %v6064 = vunpack.c.l.b16 %v5560
    %v6065 = vunpack.c.h.b16 %v5560
    %v6066 = vunpack.c.l.b16 %v5561
    %v6067 = vunpack.c.h.b16 %v5561
    %v6068 = vunpack.c.l.b16 %v5562
    %v6069 = vunpack.c.h.b16 %v5562
    %v6070 = vunpack.c.l.b16 %v5563
    %v6071 = vunpack.c.h.b16 %v5563
    %v6072 = vunpack.c.l.b16 %v5564
    %v6073 = vunpack.c.h.b16 %v5564
    %v6074 = vunpack.c.l.b16 %v5565
    %v6075 = vunpack.c.h.b16 %v5565
    %v6076 = vunpack.c.l.b16 %v5566
    %v6077 = vunpack.c.h.b16 %v5566
    %v6078 = vunpack.c.l.b16 %v5567
    %v6079 = vunpack.c.h.b16 %v5567
    %v6080 = vunpack.c.l.b16 %v5568
    %v6081 = vunpack.c.h.b16 %v5568
    %v6082 = vunpack.c.l.b16 %v5569
    %v6083 = vunpack.c.h.b16 %v5569
    %v6084 = vunpack.c.l.b16 %v5570
    %v6085 = vunpack.c.h.b16 %v5570
    %v6086 = vunpack.c.l.b16 %v5571
    %v6087 = vunpack.c.h.b16 %v5571
    %v6088 = vunpack.c.l.b16 %v5572
    %v6089 = vunpack.c.h.b16 %v5572
    %v6090 = vunpack.c.l.b16 %v5573
    %v6091 = vunpack.c.h.b16 %v5573
    %v6092 = vunpack.c.l.b16 %v5574
    %v6093 = vunpack.c.h.b16 %v5574
    %v6094 = vunpack.c.l.b16 %v5575
    %v6095 = vunpack.c.h.b16 %v5575
    %v6096 = vunpack.c.l.b16 %v5576
    %v6097 = vunpack.c.h.b16 %v5576
    %v6098 = vunpack.c.l.b16 %v5577
    %v6099 = vunpack.c.h.b16 %v5577
    %v6100 = vunpack.c.l.b16 %v5578
    %v6101 = vunpack.c.h.b16 %v5578
    %v6102 = vunpack.c.l.b16 %v5579
    %v6103 = vunpack.c.h.b16 %v5579
    %v6104 = vunpack.c.l.b16 %v5580
    %v6105 = vunpack.c.h.b16 %v5580
    %v6106 = vunpack.c.l.b16 %v5581
    %v6107 = vunpack.c.h.b16 %v5581
    %v6108 = vunpack.c.l.b16 %v5582
    %v6109 = vunpack.c.h.b16 %v5582
    %v6110 = vunpack.c.l.b16 %v5583
    %v6111 = vunpack.c.h.b16 %v5583
    %v6112 = vunpack.c.l.b16 %v5584
    %v6113 = vunpack.c.h.b16 %v5584
    %v6114 = vunpack.c.l.b16 %v5585
    %v6115 = vunpack.c.h.b16 %v5585
    %v6116 = vunpack.c.l.b16 %v5586
    %v6117 = vunpack.c.h.b16 %v5586
    %v6118 = vunpack.c.l.b16 %v5587
    %v6119 = vunpack.c.h.b16 %v5587
    %v6120 = vunpack.c.l.b16 %v5588
    %v6121 = vunpack.c.h.b16 %v5588
    %v6122 = vunpack.c.l.b16 %v5589
    %v6123 = vunpack.c.h.b16 %v5589
    %v6124 = vunpack.c.l.b16 %v5590
    %v6125 = vunpack.c.h.b16 %v5590
    %v6126 = vunpack.c.l.b16 %v5591
    %v6127 = vunpack.c.h.b16 %v5591
    %v6128 = vunpack.c.l.b16 %v5592
    %v6129 = vunpack.c.h.b16 %v5592
    %v6130 = vunpack.c.l.b16 %v5593
    %v6131 = vunpack.c.h.b16 %v5593
    %v6132 = vunpack.c.l.b16 %v5594
    %v6133 = vunpack.c.h.b16 %v5594
    %v6134 = vunpack.c.l.b16 %v5595
    %v6135 = vunpack.c.h.b16 %v5595
    %v6136 = vunpack.c.l.b16 %v5596
    %v6137 = vunpack.c.h.b16 %v5596
    %v6138 = vunpack.c.l.b16 %v5597
    %v6139 = vunpack.c.h.b16 %v5597
    %v6140 = vunpack.c.l.b16 %v5598
    %v6141 = vunpack.c.h.b16 %v5598
    %v6142 = vunpack.c.l.b16 %v5599
    %v6143 = vunpack.c.h.b16 %v5599
    %v6144 = vunpack.c.l.b16 %v5600
    %v6145 = vunpack.c.h.b16 %v5600
    %v6146 = vunpack.c.l.b16 %v5601
    %v6147 = vunpack.c.h.b16 %v5601
    %v6148 = vunpack.c.l.b16 %v5602
    %v6149 = vunpack.c.h.b16 %v5602
    %v6150 = vunpack.c.l.b16 %v5603
    %v6151 = vunpack.c.h.b16 %v5603
    %v6152 = vunpack.c.l.b16 %v5604
    %v6153 = vunpack.c.h.b16 %v5604
    %v6154 = vunpack.c.l.b16 %v5605
    %v6155 = vunpack.c.h.b16 %v5605
    %v6156 = vunpack.c.l.b16 %v5606
    %v6157 = vunpack.c.h.b16 %v5606
    %v6158 = vunpack.c.l.b16 %v5607
    %v6159 = vunpack.c.h.b16 %v5607
    %v6160 = vunpack.c.l.b16 %v5608
    %v6161 = vunpack.c.h.b16 %v5608
    %v6162 = vunpack.c.l.b16 %v5609
    %v6163 = vunpack.c.h.b16 %v5609
    %v6164 = vunpack.c.l.b16 %v5610
    %v6165 = vunpack.c.h.b16 %v5610
    %v6166 = vunpack.c.l.b16 %v5611
    %v6167 = vunpack.c.h.b16 %v5611
    %v6168 = vunpack.c.l.b16 %v5612
    %v6169 = vunpack.c.h.b16 %v5612
    %v6170 = vunpack.c.l.b16 %v5613
    %v6171 = vunpack.c.h.b16 %v5613
    %v6172 = vunpack.c.l.b16 %v5614
    %v6173 = vunpack.c.h.b16 %v5614
    %v6174 = vunpack.c.l.b16 %v5615
    %v6175 = vunpack.c.h.b16 %v5615
    %v6176 = vunpack.c.l.b16 %v5616
    %v6177 = vunpack.c.h.b16 %v5616
    %v6178 = vunpack.c.l.b16 %v5617
    %v6179 = vunpack.c.h.b16 %v5617
    %v6180 = vunpack.c.l.b16 %v5618
    %v6181 = vunpack.c.h.b16 %v5618
    %v6182 = vunpack.c.l.b16 %v5619
    %v6183 = vunpack.c.h.b16 %v5619
    %v6184 = vunpack.c.l.b16 %v5620
    %v6185 = vunpack.c.h.b16 %v5620
    %v6186 = vunpack.c.l.b16 %v5621
    %v6187 = vunpack.c.h.b16 %v5621
    %v6188 = vunpack.c.l.b16 %v5622
    %v6189 = vunpack.c.h.b16 %v5622
    %v6190 = vunpack.c.l.b16 %v5623
    %v6191 = vunpack.c.h.b16 %v5623
    %v6192 = vunpack.c.l.b16 %v5624
    %v6193 = vunpack.c.h.b16 %v5624
    %v6194 = vunpack.c.l.b16 %v5625
    %v6195 = vunpack.c.h.b16 %v5625
    %v6196 = vunpack.c.l.b16 %v5626
    %v6197 = vunpack.c.h.b16 %v5626
    %v6198 = vunpack.c.l.b16 %v5627
    %v6199 = vunpack.c.h.b16 %v5627
    %v6200 = vunpack.c.l.b16 %v5628
    %v6201 = vunpack.c.h.b16 %v5628
    %v6202 = vunpack.c.l.b16 %v5629
    %v6203 = vunpack.c.h.b16 %v5629
    %v6204 = vunpack.c.l.b16 %v5630
    %v6205 = vunpack.c.h.b16 %v5630
    %v6206 = vunpack.c.l.b16 %v5631
    %v6207 = vunpack.c.h.b16 %v5631
    %v6208 = vunpack.c.l.b16 %v5632
    %v6209 = vunpack.c.h.b16 %v5632
    %v6210 = vunpack.c.l.b16 %v5633
    %v6211 = vunpack.c.h.b16 %v5633
    %v6212 = vunpack.c.l.b16 %v5634
    %v6213 = vunpack.c.h.b16 %v5634
    %v6214 = vunpack.c.l.b16 %v5635
    %v6215 = vunpack.c.h.b16 %v5635
    %v6216 = vunpack.c.l.b16 %v5636
    %v6217 = vunpack.c.h.b16 %v5636
    %v6218 = vunpack.c.l.b16 %v5637
    %v6219 = vunpack.c.h.b16 %v5637
    %v6220 = vunpack.c.l.b16 %v5638
    %v6221 = vunpack.c.h.b16 %v5638
    %v6222 = vunpack.c.l.b16 %v5639
    %v6223 = vunpack.c.h.b16 %v5639
    %v6224 = vunpack.c.l.b16 %v5640
    %v6225 = vunpack.c.h.b16 %v5640
    %v6226 = vunpack.c.l.b16 %v5641
    %v6227 = vunpack.c.h.b16 %v5641
    %v6228 = vunpack.c.l.b16 %v5642
    %v6229 = vunpack.c.h.b16 %v5642
    %v6230 = vunpack.c.l.b16 %v5643
    %v6231 = vunpack.c.h.b16 %v5643
    %v6232 = vunpack.c.l.b16 %v5644
    %v6233 = vunpack.c.h.b16 %v5644
    %v6234 = vunpack.c.l.b16 %v5645
    %v6235 = vunpack.c.h.b16 %v5645
    %v6236 = vunpack.c.l.b16 %v5646
    %v6237 = vunpack.c.h.b16 %v5646
    %v6238 = vunpack.c.l.b16 %v5647
    %v6239 = vunpack.c.h.b16 %v5647
    %v6240 = vunpack.c.l.b16 %v5648
    %v6241 = vunpack.c.h.b16 %v5648
    %v6242 = vunpack.c.l.b16 %v5649
    %v6243 = vunpack.c.h.b16 %v5649
    %v6244 = vunpack.c.l.b16 %v5650
    %v6245 = vunpack.c.h.b16 %v5650
    %v6246 = vunpack.c.l.b16 %v5651
    %v6247 = vunpack.c.h.b16 %v5651
    %v6248 = vunpack.c.l.b16 %v5652
    %v6249 = vunpack.c.h.b16 %v5652
    %v6250 = vunpack.c.l.b16 %v5653
    %v6251 = vunpack.c.h.b16 %v5653
    %v6252 = vunpack.c.l.b16 %v5654
    %v6253 = vunpack.c.h.b16 %v5654
    %v6254 = vunpack.c.l.b16 %v5655
    %v6255 = vunpack.c.h.b16 %v5655
    %v6256 = vunpack.c.l.b16 %v5656
    %v6257 = vunpack.c.h.b16 %v5656
    %v6258 = vunpack.c.l.b16 %v5657
    %v6259 = vunpack.c.h.b16 %v5657
    %v6260 = vunpack.c.l.b16 %v5658
    %v6261 = vunpack.c.h.b16 %v5658
    %v6262 = vunpack.c.l.b16 %v5659
    %v6263 = vunpack.c.h.b16 %v5659
    %v6264 = vunpack.c.l.b16 %v5660
    %v6265 = vunpack.c.h.b16 %v5660
    %v6266 = vunpack.c.l.b16 %v5661
    %v6267 = vunpack.c.h.b16 %v5661
    %v6268 = vunpack.c.l.b16 %v5662
    %v6269 = vunpack.c.h.b16 %v5662
    %v6270 = vunpack.c.l.b16 %v5663
    %v6271 = vunpack.c.h.b16 %v5663
    %v6272 = vunpack.c.l.b16 %v5664
    %v6273 = vunpack.c.h.b16 %v5664
    %v6274 = vunpack.c.l.b16 %v5665
    %v6275 = vunpack.c.h.b16 %v5665
    %v6276 = vunpack.c.l.b16 %v5666
    %v6277 = vunpack.c.h.b16 %v5666
    %v6278 = vunpack.c.l.b16 %v5667
    %v6279 = vunpack.c.h.b16 %v5667
    %v6280 = vunpack.c.l.b16 %v5668
    %v6281 = vunpack.c.h.b16 %v5668
    %v6282 = vunpack.c.l.b16 %v5669
    %v6283 = vunpack.c.h.b16 %v5669
    %v6284 = vunpack.c.l.b16 %v5670
    %v6285 = vunpack.c.h.b16 %v5670
    %v6286 = vunpack.c.l.b16 %v5671
    %v6287 = vunpack.c.h.b16 %v5671
    %v6288 = vunpack.c.l.b16 %v5672
    %v6289 = vunpack.c.h.b16 %v5672
    %v6290 = vunpack.c.l.b16 %v5673
    %v6291 = vunpack.c.h.b16 %v5673
    %v6292 = vunpack.c.l.b16 %v5674
    %v6293 = vunpack.c.h.b16 %v5674
    %v6294 = vunpack.c.l.b16 %v5675
    %v6295 = vunpack.c.h.b16 %v5675
    %v6296 = vunpack.c.l.b16 %v5676
    %v6297 = vunpack.c.h.b16 %v5676
    %v6298 = vunpack.c.l.b16 %v5677
    %v6299 = vunpack.c.h.b16 %v5677
    %v6300 = vunpack.c.l.b16 %v5678
    %v6301 = vunpack.c.h.b16 %v5678
    %v6302 = vunpack.c.l.b16 %v5679
    %v6303 = vunpack.c.h.b16 %v5679
    %v6304 = vunpack.c.l.b16 %v5680
    %v6305 = vunpack.c.h.b16 %v5680
    %v6306 = vunpack.c.l.b16 %v5681
    %v6307 = vunpack.c.h.b16 %v5681
    %v6308 = vunpack.c.l.b16 %v5682
    %v6309 = vunpack.c.h.b16 %v5682
    %v6310 = vunpack.c.l.b16 %v5683
    %v6311 = vunpack.c.h.b16 %v5683
    %v6312 = vunpack.c.l.b16 %v5684
    %v6313 = vunpack.c.h.b16 %v5684
    %v6314 = vunpack.c.l.b16 %v5685
    %v6315 = vunpack.c.h.b16 %v5685
    %v6316 = vunpack.c.l.b16 %v5686
    %v6317 = vunpack.c.h.b16 %v5686
    %v6318 = vunpack.c.l.b16 %v5687
    %v6319 = vunpack.c.h.b16 %v5687
    %v6320 = vunpack.c.l.b16 %v5688
    %v6321 = vunpack.c.h.b16 %v5688
    %v6322 = vunpack.c.l.b16 %v5689
    %v6323 = vunpack.c.h.b16 %v5689
    %v6324 = vunpack.c.l.b16 %v5690
    %v6325 = vunpack.c.h.b16 %v5690
    %v6326 = vunpack.c.l.b16 %v5691
    %v6327 = vunpack.c.h.b16 %v5691
    %v6328 = vunpack.c.l.b16 %v5692
    %v6329 = vunpack.c.h.b16 %v5692
    %v6330 = vunpack.c.l.b16 %v5693
    %v6331 = vunpack.c.h.b16 %v5693
    %v6332 = vunpack.c.l.b16 %v5694
    %v6333 = vunpack.c.h.b16 %v5694
    %v6334 = vunpack.c.l.b16 %v5695
    %v6335 = vunpack.c.h.b16 %v5695
    %v6336 = vunpack.c.l.b16 %v5696
    %v6337 = vunpack.c.h.b16 %v5696
    %v6338 = vunpack.c.l.b16 %v5697
    %v6339 = vunpack.c.h.b16 %v5697
    %v6340 = vunpack.c.l.b16 %v5698
    %v6341 = vunpack.c.h.b16 %v5698
    %v6342 = vunpack.c.l.b16 %v5699
    %v6343 = vunpack.c.h.b16 %v5699
    %v6344 = vunpack.c.l.b16 %v5700
    %v6345 = vunpack.c.h.b16 %v5700
    %v6346 = vunpack.c.l.b16 %v5701
    %v6347 = vunpack.c.h.b16 %v5701
    %v6348 = vunpack.c.l.b16 %v5702
    %v6349 = vunpack.c.h.b16 %v5702
    %v6350 = vunpack.c.l.b16 %v5703
    %v6351 = vunpack.c.h.b16 %v5703
    %v6352 = vunpack.c.l.b16 %v5704
    %v6353 = vunpack.c.h.b16 %v5704
    %v6354 = vunpack.c.l.b16 %v5705
    %v6355 = vunpack.c.h.b16 %v5705
    %v6356 = vunpack.c.l.b16 %v5706
    %v6357 = vunpack.c.h.b16 %v5706
    %v6358 = vunpack.c.l.b16 %v5707
    %v6359 = vunpack.c.h.b16 %v5707
    %v6360 = vunpack.c.l.b16 %v5708
    %v6361 = vunpack.c.h.b16 %v5708
    %v6362 = vunpack.c.l.b16 %v5709
    %v6363 = vunpack.c.h.b16 %v5709
    %v6364 = vunpack.c.l.b16 %v5710
    %v6365 = vunpack.c.h.b16 %v5710
    %v6366 = vunpack.c.l.b16 %v5711
    %v6367 = vunpack.c.h.b16 %v5711
    %v6368 = vunpack.c.l.b16 %v5712
    %v6369 = vunpack.c.h.b16 %v5712
    %v6370 = vunpack.c.l.b16 %v5713
    %v6371 = vunpack.c.h.b16 %v5713
    %v6372 = vunpack.c.l.b16 %v5714
    %v6373 = vunpack.c.h.b16 %v5714
    %v6374 = vunpack.c.l.b16 %v5715
    %v6375 = vunpack.c.h.b16 %v5715
    %v6376 = vunpack.c.l.b16 %v5716
    %v6377 = vunpack.c.h.b16 %v5716
    %v6378 = vunpack.c.l.b16 %v5717
    %v6379 = vunpack.c.h.b16 %v5717
    %v6380 = vunpack.c.l.b16 %v5718
    %v6381 = vunpack.c.h.b16 %v5718
    %v6382 = vunpack.c.l.b16 %v5719
    %v6383 = vunpack.c.h.b16 %v5719
    %v6384 = vunpack.c.l.b16 %v5720
    %v6385 = vunpack.c.h.b16 %v5720
    %v6386 = vunpack.c.l.b16 %v5721
    %v6387 = vunpack.c.h.b16 %v5721
    %v6388 = vunpack.c.l.b16 %v5722
    %v6389 = vunpack.c.h.b16 %v5722
    %v6390 = vunpack.c.l.b16 %v5723
    %v6391 = vunpack.c.h.b16 %v5723
    %v6392 = vunpack.c.l.b16 %v5724
    %v6393 = vunpack.c.h.b16 %v5724
    %v6394 = vunpack.c.l.b16 %v5725
    %v6395 = vunpack.c.h.b16 %v5725
    %v6396 = vunpack.c.l.b16 %v5726
    %v6397 = vunpack.c.h.b16 %v5726
    %v6398 = vunpack.c.l.b16 %v5727
    %v6399 = vunpack.c.h.b16 %v5727
    %v6400 = vunpack.c.l.b16 %v5728
    %v6401 = vunpack.c.h.b16 %v5728
    %v6402 = vunpack.c.l.b16 %v5729
    %v6403 = vunpack.c.h.b16 %v5729
    %v6404 = vunpack.c.l.b16 %v5730
    %v6405 = vunpack.c.h.b16 %v5730
    %v6406 = vunpack.c.l.b16 %v5731
    %v6407 = vunpack.c.h.b16 %v5731
    %v6408 = vunpack.c.l.b16 %v5732
    %v6409 = vunpack.c.h.b16 %v5732
    %v6410 = vunpack.c.l.b16 %v5733
    %v6411 = vunpack.c.h.b16 %v5733
    %v6412 = vunpack.c.l.b16 %v5734
    %v6413 = vunpack.c.h.b16 %v5734
    %v6414 = vunpack.c.l.b16 %v5735
    %v6415 = vunpack.c.h.b16 %v5735
    %v6416 = vunpack.c.l.b16 %v5736
    %v6417 = vunpack.c.h.b16 %v5736
    %v6418 = vunpack.c.l.b16 %v5737
    %v6419 = vunpack.c.h.b16 %v5737
    %v6420 = vunpack.c.l.b16 %v5738
    %v6421 = vunpack.c.h.b16 %v5738
    %v6422 = vunpack.c.l.b16 %v5739
    %v6423 = vunpack.c.h.b16 %v5739
    %v6424 = vunpack.c.l.b16 %v5740
    %v6425 = vunpack.c.h.b16 %v5740
    %v6426 = vunpack.c.l.b16 %v5741
    %v6427 = vunpack.c.h.b16 %v5741
    %v6428 = vunpack.c.l.b16 %v5742
    %v6429 = vunpack.c.h.b16 %v5742
    %v6430 = vunpack.c.l.b16 %v5743
    %v6431 = vunpack.c.h.b16 %v5743
    %v6432 = vunpack.c.l.b16 %v5744
    %v6433 = vunpack.c.h.b16 %v5744
    %v6434 = vunpack.c.l.b16 %v5745
    %v6435 = vunpack.c.h.b16 %v5745
    %v6436 = vunpack.c.l.b16 %v5746
    %v6437 = vunpack.c.h.b16 %v5746
    %v6438 = vunpack.c.l.b16 %v5747
    %v6439 = vunpack.c.h.b16 %v5747
    %v6440 = vunpack.c.l.b16 %v5748
    %v6441 = vunpack.c.h.b16 %v5748
    %v6442 = vunpack.c.l.b16 %v5749
    %v6443 = vunpack.c.h.b16 %v5749
    %v6444 = vpack.c.b16 %v6000, %v5996
    %v6445 = vpack.c.b16 %v6001, %v5997
    %v6446 = vpack.c.b16 %v6002, %v5998
    %v6447 = vpack.c.b16 %v6003, %v5999
    %v6448 = vpack.c.b16 %v6008, %v6004
    %v6449 = vpack.c.b16 %v6009, %v6005
    %v6450 = vpack.c.b16 %v6010, %v6006
    %v6451 = vpack.c.b16 %v6011, %v6007
    %v6452 = vpack.c.b16 %v6016, %v6012
    %v6453 = vpack.c.b16 %v6017, %v6013
    %v6454 = vpack.c.b16 %v6018, %v6014
    %v6455 = vpack.c.b16 %v6019, %v6015
    %v6456 = vpack.c.b16 %v6024, %v6020
    %v6457 = vpack.c.b16 %v6025, %v6021
    %v6458 = vpack.c.b16 %v6026, %v6022
    %v6459 = vpack.c.b16 %v6027, %v6023
    %v6460 = vpack.c.b16 %v6032, %v6028
    %v6461 = vpack.c.b16 %v6033, %v6029
    %v6462 = vpack.c.b16 %v6034, %v6030
    %v6463 = vpack.c.b16 %v6035, %v6031
    %v6464 = vpack.c.b16 %v6040, %v6036
    %v6465 = vpack.c.b16 %v6041, %v6037
    %v6466 = vpack.c.b16 %v6042, %v6038
    %v6467 = vpack.c.b16 %v6043, %v6039
    %v6468 = vpack.c.b16 %v6048, %v6044
    %v6469 = vpack.c.b16 %v6049, %v6045
    %v6470 = vpack.c.b16 %v6050, %v6046
    %v6471 = vpack.c.b16 %v6051, %v6047
    %v6472 = vpack.c.b16 %v6056, %v6052
    %v6473 = vpack.c.b16 %v6057, %v6053
    %v6474 = vpack.c.b16 %v6058, %v6054
    %v6475 = vpack.c.b16 %v6059, %v6055
    %v6476 = vpack.c.b16 %v6064, %v6060
    %v6477 = vpack.c.b16 %v6065, %v6061
    %v6478 = vpack.c.b16 %v6066, %v6062
    %v6479 = vpack.c.b16 %v6067, %v6063
    %v6480 = vpack.c.b16 %v6072, %v6068
    %v6481 = vpack.c.b16 %v6073, %v6069
    %v6482 = vpack.c.b16 %v6074, %v6070
    %v6483 = vpack.c.b16 %v6075, %v6071
    %v6484 = vpack.c.b16 %v6080, %v6076
    %v6485 = vpack.c.b16 %v6081, %v6077
    %v6486 = vpack.c.b16 %v6082, %v6078
    %v6487 = vpack.c.b16 %v6083, %v6079
    %v6488 = vpack.c.b16 %v6088, %v6084
    %v6489 = vpack.c.b16 %v6089, %v6085
    %v6490 = vpack.c.b16 %v6090, %v6086
    %v6491 = vpack.c.b16 %v6091, %v6087
    %v6492 = vpack.c.b16 %v6096, %v6092
    %v6493 = vpack.c.b16 %v6097, %v6093
    %v6494 = vpack.c.b16 %v6098, %v6094
    %v6495 = vpack.c.b16 %v6099, %v6095
    %v6496 = vpack.c.b16 %v6104, %v6100
    %v6497 = vpack.c.b16 %v6105, %v6101
    %v6498 = vpack.c.b16 %v6106, %v6102
    %v6499 = vpack.c.b16 %v6107, %v6103
    %v6500 = vpack.c.b16 %v6112, %v6108
    %v6501 = vpack.c.b16 %v6113, %v6109
    %v6502 = vpack.c.b16 %v6114, %v6110
    %v6503 = vpack.c.b16 %v6115, %v6111
    %v6504 = vpack.c.b16 %v6120, %v6116
    %v6505 = vpack.c.b16 %v6121, %v6117
    %v6506 = vpack.c.b16 %v6122, %v6118
    %v6507 = vpack.c.b16 %v6123, %v6119
    %v6508 = vpack.c.b16 %v6128, %v6124
    %v6509 = vpack.c.b16 %v6129, %v6125
    %v6510 = vpack.c.b16 %v6130, %v6126
    %v6511 = vpack.c.b16 %v6131, %v6127
    %v6512 = vpack.c.b16 %v6136, %v6132
    %v6513 = vpack.c.b16 %v6137, %v6133
    %v6514 = vpack.c.b16 %v6138, %v6134
    %v6515 = vpack.c.b16 %v6139, %v6135
    %v6516 = vpack.c.b16 %v6144, %v6140
    %v6517 = vpack.c.b16 %v6145, %v6141
    %v6518 = vpack.c.b16 %v6146, %v6142
    %v6519 = vpack.c.b16 %v6147, %v6143
    %v6520 = vpack.c.b16 %v6152, %v6148
    %v6521 = vpack.c.b16 %v6153, %v6149
    %v6522 = vpack.c.b16 %v6154, %v6150
    %v6523 = vpack.c.b16 %v6155, %v6151
    %v6524 = vpack.c.b16 %v6160, %v6156
    %v6525 = vpack.c.b16 %v6161, %v6157
    %v6526 = vpack.c.b16 %v6162, %v6158
    %v6527 = vpack.c.b16 %v6163, %v6159
    %v6528 = vpack.c.b16 %v6168, %v6164
    %v6529 = vpack.c.b16 %v6169, %v6165
    %v6530 = vpack.c.b16 %v6170, %v6166
    %v6531 = vpack.c.b16 %v6171, %v6167
    %v6532 = vpack.c.b16 %v6176, %v6172
    %v6533 = vpack.c.b16 %v6177, %v6173
    %v6534 = vpack.c.b16 %v6178, %v6174
    %v6535 = vpack.c.b16 %v6179, %v6175
    %v6536 = vpack.c.b16 %v6184, %v6180
    %v6537 = vpack.c.b16 %v6185, %v6181
    %v6538 = vpack.c.b16 %v6186, %v6182
    %v6539 = vpack.c.b16 %v6187, %v6183
    %v6540 = vpack.c.b16 %v6192, %v6188
    %v6541 = vpack.c.b16 %v6193, %v6189
    %v6542 = vpack.c.b16 %v6194, %v6190
    %v6543 = vpack.c.b16 %v6195, %v6191
    %v6544 = vpack.c.b16 %v6200, %v6196
    %v6545 = vpack.c.b16 %v6201, %v6197
    %v6546 = vpack.c.b16 %v6202, %v6198
    %v6547 = vpack.c.b16 %v6203, %v6199
    %v6548 = vpack.c.b16 %v6208, %v6204
    %v6549 = vpack.c.b16 %v6209, %v6205
    %v6550 = vpack.c.b16 %v6210, %v6206
    %v6551 = vpack.c.b16 %v6211, %v6207
    %v6552 = vpack.c.b16 %v6216, %v6212
    %v6553 = vpack.c.b16 %v6217, %v6213
    %v6554 = vpack.c.b16 %v6218, %v6214
    %v6555 = vpack.c.b16 %v6219, %v6215
    %v6556 = vpack.c.b16 %v6224, %v6220
    %v6557 = vpack.c.b16 %v6225, %v6221
    %v6558 = vpack.c.b16 %v6226, %v6222
    %v6559 = vpack.c.b16 %v6227, %v6223
    %v6560 = vpack.c.b16 %v6232, %v6228
    %v6561 = vpack.c.b16 %v6233, %v6229
    %v6562 = vpack.c.b16 %v6234, %v6230
    %v6563 = vpack.c.b16 %v6235, %v6231
    %v6564 = vpack.c.b16 %v6240, %v6236
    %v6565 = vpack.c.b16 %v6241, %v6237
    %v6566 = vpack.c.b16 %v6242, %v6238
    %v6567 = vpack.c.b16 %v6243, %v6239
    %v6568 = vpack.c.b16 %v6248, %v6244
    %v6569 = vpack.c.b16 %v6249, %v6245
    %v6570 = vpack.c.b16 %v6250, %v6246
    %v6571 = vpack.c.b16 %v6251, %v6247
    %v6572 = vpack.c.b16 %v6256, %v6252
    %v6573 = vpack.c.b16 %v6257, %v6253
    %v6574 = vpack.c.b16 %v6258, %v6254
    %v6575 = vpack.c.b16 %v6259, %v6255
    %v6576 = vpack.c.b16 %v6264, %v6260
    %v6577 = vpack.c.b16 %v6265, %v6261
    %v6578 = vpack.c.b16 %v6266, %v6262
    %v6579 = vpack.c.b16 %v6267, %v6263
    %v6580 = vpack.c.b16 %v6272, %v6268
    %v6581 = vpack.c.b16 %v6273, %v6269
    %v6582 = vpack.c.b16 %v6274, %v6270
    %v6583 = vpack.c.b16 %v6275, %v6271
    %v6584 = vpack.c.b16 %v6280, %v6276
    %v6585 = vpack.c.b16 %v6281, %v6277
    %v6586 = vpack.c.b16 %v6282, %v6278
    %v6587 = vpack.c.b16 %v6283, %v6279
    %v6588 = vpack.c.b16 %v6288, %v6284
    %v6589 = vpack.c.b16 %v6289, %v6285
    %v6590 = vpack.c.b16 %v6290, %v6286
    %v6591 = vpack.c.b16 %v6291, %v6287
    %v6592 = vpack.c.b16 %v6296, %v6292
    %v6593 = vpack.c.b16 %v6297, %v6293
    %v6594 = vpack.c.b16 %v6298, %v6294
    %v6595 = vpack.c.b16 %v6299, %v6295
    %v6596 = vpack.c.b16 %v6304, %v6300
    %v6597 = vpack.c.b16 %v6305, %v6301
    %v6598 = vpack.c.b16 %v6306, %v6302
    %v6599 = vpack.c.b16 %v6307, %v6303
    %v6600 = vpack.c.b16 %v6312, %v6308
    %v6601 = vpack.c.b16 %v6313, %v6309
    %v6602 = vpack.c.b16 %v6314, %v6310
    %v6603 = vpack.c.b16 %v6315, %v6311
    %v6604 = vpack.c.b16 %v6320, %v6316
    %v6605 = vpack.c.b16 %v6321, %v6317
    %v6606 = vpack.c.b16 %v6322, %v6318
    %v6607 = vpack.c.b16 %v6323, %v6319
    %v6608 = vpack.c.b16 %v6328, %v6324
    %v6609 = vpack.c.b16 %v6329, %v6325
    %v6610 = vpack.c.b16 %v6330, %v6326
    %v6611 = vpack.c.b16 %v6331, %v6327
    %v6612 = vpack.c.b16 %v6336, %v6332
    %v6613 = vpack.c.b16 %v6337, %v6333
    %v6614 = vpack.c.b16 %v6338, %v6334
    %v6615 = vpack.c.b16 %v6339, %v6335
    %v6616 = vpack.c.b16 %v6344, %v6340
    %v6617 = vpack.c.b16 %v6345, %v6341
    %v6618 = vpack.c.b16 %v6346, %v6342
    %v6619 = vpack.c.b16 %v6347, %v6343
    %v6620 = vpack.c.b16 %v6352, %v6348
    %v6621 = vpack.c.b16 %v6353, %v6349
    %v6622 = vpack.c.b16 %v6354, %v6350
    %v6623 = vpack.c.b16 %v6355, %v6351
    %v6624 = vpack.c.b16 %v6360, %v6356
    %v6625 = vpack.c.b16 %v6361, %v6357
    %v6626 = vpack.c.b16 %v6362, %v6358
    %v6627 = vpack.c.b16 %v6363, %v6359
    %v6628 = vpack.c.b16 %v6368, %v6364
    %v6629 = vpack.c.b16 %v6369, %v6365
    %v6630 = vpack.c.b16 %v6370, %v6366
    %v6631 = vpack.c.b16 %v6371, %v6367
    %v6632 = vpack.c.b16 %v6376, %v6372
    %v6633 = vpack.c.b16 %v6377, %v6373
    %v6634 = vpack.c.b16 %v6378, %v6374
    %v6635 = vpack.c.b16 %v6379, %v6375
    %v6636 = vpack.c.b16 %v6384, %v6380
    %v6637 = vpack.c.b16 %v6385, %v6381
    %v6638 = vpack.c.b16 %v6386, %v6382
    %v6639 = vpack.c.b16 %v6387, %v6383
    %v6640 = vpack.c.b16 %v6392, %v6388
    %v6641 = vpack.c.b16 %v6393, %v6389
    %v6642 = vpack.c.b16 %v6394, %v6390
    %v6643 = vpack.c.b16 %v6395, %v6391
    %v6644 = vpack.c.b16 %v6400, %v6396
    %v6645 = vpack.c.b16 %v6401, %v6397
    %v6646 = vpack.c.b16 %v6402, %v6398
    %v6647 = vpack.c.b16 %v6403, %v6399
    %v6648 = vpack.c.b16 %v6408, %v6404
    %v6649 = vpack.c.b16 %v6409, %v6405
    %v6650 = vpack.c.b16 %v6410, %v6406
    %v6651 = vpack.c.b16 %v6411, %v6407
    %v6652 = vpack.c.b16 %v6416, %v6412
    %v6653 = vpack.c.b16 %v6417, %v6413
    %v6654 = vpack.c.b16 %v6418, %v6414
    %v6655 = vpack.c.b16 %v6419, %v6415
    %v6656 = vpack.c.b16 %v6424, %v6420
    %v6657 = vpack.c.b16 %v6425, %v6421
    %v6658 = vpack.c.b16 %v6426, %v6422
    %v6659 = vpack.c.b16 %v6427, %v6423
    %v6660 = vpack.c.b16 %v6432, %v6428
    %v6661 = vpack.c.b16 %v6433, %v6429
    %v6662 = vpack.c.b16 %v6434, %v6430
    %v6663 = vpack.c.b16 %v6435, %v6431
    %v6664 = vpack.c.b16 %v6440, %v6436
    %v6665 = vpack.c.b16 %v6441, %v6437
    %v6666 = vpack.c.b16 %v6442, %v6438
    %v6667 = vpack.c.b16 %v6443, %v6439
    %6892 = vmatprep.subr.bf16.mxu0 %v6473
    %6893 = vmatpush1.bf16.msra.mxu0 %v6472
    %6894 = vmatprep.subr.bf16.mxu0 %v6469
    %6895 = vmatpush1.bf16.msra.mxu0 %v6468
    %6896 = vmatprep.subr.bf16.mxu0 %v6465
    %6897 = vmatpush1.bf16.msra.mxu0 %v6464
    %6898 = vmatprep.subr.bf16.mxu0 %v6461
    %6899 = vmatpush1.bf16.msra.mxu0 %v6460
    %6900 = vmatprep.subr.bf16.mxu0 %v6457
    %6901 = vmatpush1.bf16.msra.mxu0 %v6456
    %6902 = vmatprep.subr.bf16.mxu0 %v6453
    %6903 = vmatpush1.bf16.msra.mxu0 %v6452
    %6904 = vmatprep.subr.bf16.mxu0 %v6449
    %6905 = vmatpush1.bf16.msra.mxu0 %v6448
    %6906 = vmatprep.subr.bf16.mxu0 %v6445
    %6907 = vmatpush1.bf16.msra.mxu0 %v6444
    %6908 = vmatprep.subr.bf16.mxu0 %v6505
    %6909 = vmatpush2.bf16.msra.mxu0 %v6504
    %6910 = vmatprep.subr.bf16.mxu0 %v6501
    %6911 = vmatpush2.bf16.msra.mxu0 %v6500
    %6912 = vmatprep.subr.bf16.mxu0 %v6497
    %6913 = vmatpush2.bf16.msra.mxu0 %v6496
    %6914 = vmatprep.subr.bf16.mxu0 %v6493
    %6915 = vmatpush2.bf16.msra.mxu0 %v6492
    %6916 = vmatprep.subr.bf16.mxu0 %v6489
    %6917 = vmatpush2.bf16.msra.mxu0 %v6488
    %6918 = vmatprep.subr.bf16.mxu0 %v6485
    %6919 = vmatpush2.bf16.msra.mxu0 %v6484
    %6920 = vmatprep.subr.bf16.mxu0 %v6481
    %6921 = vmatpush2.bf16.msra.mxu0 %v6480
    %6922 = vmatprep.subr.bf16.mxu0 %v6477
    %6923 = vmatpush2.bf16.msra.mxu0 %v6476
    %6924 = vmatprep.mubr.bf16.mxu0 %v5520
    %6925 = vmatmul.mubr.bf16.gmra.mxu0 %v5519
    %v6926 = vpop.f32.mrf.mxu0
    %v6927 = vadd.f32 %v5755, %v6926
    %v6928 = vpop.f32.mrf.mxu0
    %v6929 = vadd.f32 %v5759, %v6928
    %v6930 = vpop.f32.mrf.mxu0
    %v6931 = vadd.f32 %v5755, %v6930
    %v6932 = vpop.f32.mrf.mxu0
    %v6933 = vadd.f32 %v5759, %v6932
    %6934 = vdwg.mxu0
    %6935 = vmatprep.subr.bf16.mxu0 %v6537
    %6936 = vmatpush1.bf16.msra.mxu0 %v6536
    %6937 = vmatprep.subr.bf16.mxu0 %v6533
    %6938 = vmatpush1.bf16.msra.mxu0 %v6532
    %6939 = vmatprep.subr.bf16.mxu0 %v6529
    %6940 = vmatpush1.bf16.msra.mxu0 %v6528
    %6941 = vmatprep.subr.bf16.mxu0 %v6525
    %6942 = vmatpush1.bf16.msra.mxu0 %v6524
    %6943 = vmatprep.subr.bf16.mxu0 %v6521
    %6944 = vmatpush1.bf16.msra.mxu0 %v6520
    %6945 = vmatprep.subr.bf16.mxu0 %v6517
    %6946 = vmatpush1.bf16.msra.mxu0 %v6516
    %6947 = vmatprep.subr.bf16.mxu0 %v6513
    %6948 = vmatpush1.bf16.msra.mxu0 %v6512
    %6949 = vmatprep.subr.bf16.mxu0 %v6509
    %6950 = vmatpush1.bf16.msra.mxu0 %v6508
    %6951 = vmatprep.subr.bf16.mxu0 %v6569
    %6952 = vmatpush2.bf16.msra.mxu0 %v6568
    %6953 = vmatprep.subr.bf16.mxu0 %v6565
    %6954 = vmatpush2.bf16.msra.mxu0 %v6564
    %6955 = vmatprep.subr.bf16.mxu0 %v6561
    %6956 = vmatpush2.bf16.msra.mxu0 %v6560
    %6957 = vmatprep.subr.bf16.mxu0 %v6557
    %6958 = vmatpush2.bf16.msra.mxu0 %v6556
    %6959 = vmatprep.subr.bf16.mxu0 %v6553
    %6960 = vmatpush2.bf16.msra.mxu0 %v6552
    %6961 = vmatprep.subr.bf16.mxu0 %v6549
    %6962 = vmatpush2.bf16.msra.mxu0 %v6548
    %6963 = vmatprep.subr.bf16.mxu0 %v6545
    %6964 = vmatpush2.bf16.msra.mxu0 %v6544
    %6965 = vmatprep.subr.bf16.mxu0 %v6541
    %6966 = vmatpush2.bf16.msra.mxu0 %v6540
    %6967 = vmatprep.mubr.bf16.mxu0 %v5522
    %6968 = vmatmul.mubr.bf16.gmra.mxu0 %v5521
    %v6969 = vpop.f32.mrf.mxu0
    %v6970 = vadd.f32 %v6927, %v6969
    %v6971 = vpop.f32.mrf.mxu0
    %v6972 = vadd.f32 %v6929, %v6971
    %v6973 = vpop.f32.mrf.mxu0
    %v6974 = vadd.f32 %v6931, %v6973
    %v6975 = vpop.f32.mrf.mxu0
    %v6976 = vadd.f32 %v6933, %v6975
    %6977 = vdwg.mxu0
    %6978 = vmatprep.subr.bf16.mxu0 %v6601
    %6979 = vmatpush1.bf16.msra.mxu0 %v6600
    %6980 = vmatprep.subr.bf16.mxu0 %v6597
    %6981 = vmatpush1.bf16.msra.mxu0 %v6596
    %6982 = vmatprep.subr.bf16.mxu0 %v6593
    %6983 = vmatpush1.bf16.msra.mxu0 %v6592
    %6984 = vmatprep.subr.bf16.mxu0 %v6589
    %6985 = vmatpush1.bf16.msra.mxu0 %v6588
    %6986 = vmatprep.subr.bf16.mxu0 %v6585
    %6987 = vmatpush1.bf16.msra.mxu0 %v6584
    %6988 = vmatprep.subr.bf16.mxu0 %v6581
    %6989 = vmatpush1.bf16.msra.mxu0 %v6580
    %6990 = vmatprep.subr.bf16.mxu0 %v6577
    %6991 = vmatpush1.bf16.msra.mxu0 %v6576
    %6992 = vmatprep.subr.bf16.mxu0 %v6573
    %6993 = vmatpush1.bf16.msra.mxu0 %v6572
    %6994 = vmatprep.subr.bf16.mxu0 %v6633
    %6995 = vmatpush2.bf16.msra.mxu0 %v6632
    %6996 = vmatprep.subr.bf16.mxu0 %v6629
    %6997 = vmatpush2.bf16.msra.mxu0 %v6628
    %6998 = vmatprep.subr.bf16.mxu0 %v6625
    %6999 = vmatpush2.bf16.msra.mxu0 %v6624
    %7000 = vmatprep.subr.bf16.mxu0 %v6621
    %7001 = vmatpush2.bf16.msra.mxu0 %v6620
    %7002 = vmatprep.subr.bf16.mxu0 %v6617
    %7003 = vmatpush2.bf16.msra.mxu0 %v6616
    %7004 = vmatprep.subr.bf16.mxu0 %v6613
    %7005 = vmatpush2.bf16.msra.mxu0 %v6612
    %7006 = vmatprep.subr.bf16.mxu0 %v6609
    %7007 = vmatpush2.bf16.msra.mxu0 %v6608
    %7008 = vmatprep.subr.bf16.mxu0 %v6605
    %7009 = vmatpush2.bf16.msra.mxu0 %v6604
    %7010 = vmatprep.mubr.bf16.mxu0 %v5524
    %7011 = vmatmul.mubr.bf16.gmra.mxu0 %v5523
    %v7012 = vpop.f32.mrf.mxu0
    %v7013 = vadd.f32 %v6970, %v7012
    %v7014 = vpop.f32.mrf.mxu0
    %v7015 = vadd.f32 %v6972, %v7014
    %v7016 = vpop.f32.mrf.mxu0
    %v7017 = vadd.f32 %v6974, %v7016
    %v7018 = vpop.f32.mrf.mxu0
    %v7019 = vadd.f32 %v6976, %v7018
    %7020 = vdwg.mxu0
    %7021 = vmatprep.subr.bf16.mxu0 %v6665
    %7022 = vmatpush1.bf16.msra.mxu0 %v6664
    %7023 = vmatprep.subr.bf16.mxu0 %v6661
    %7024 = vmatpush1.bf16.msra.mxu0 %v6660
    %7025 = vmatprep.subr.bf16.mxu0 %v6657
    %7026 = vmatpush1.bf16.msra.mxu0 %v6656
    %7027 = vmatprep.subr.bf16.mxu0 %v6653
    %7028 = vmatpush1.bf16.msra.mxu0 %v6652
    %7029 = vmatprep.subr.bf16.mxu0 %v6649
    %7030 = vmatpush1.bf16.msra.mxu0 %v6648
    %7031 = vmatprep.subr.bf16.mxu0 %v6645
    %7032 = vmatpush1.bf16.msra.mxu0 %v6644
    %7033 = vmatprep.subr.bf16.mxu0 %v6641
    %7034 = vmatpush1.bf16.msra.mxu0 %v6640
    %7035 = vmatprep.subr.bf16.mxu0 %v6637
    %7036 = vmatpush1.bf16.msra.mxu0 %v6636
    %7037 = vmatprep.subr.bf16.mxu0 0
    %7038 = vmatpush2.bf16.msra.mxu0 0
    %7039 = vmatprep.subr.bf16.mxu0 0
    %7040 = vmatpush2.bf16.msra.mxu0 0
    %7041 = vmatprep.subr.bf16.mxu0 0
    %7042 = vmatpush2.bf16.msra.mxu0 0
    %7043 = vmatprep.subr.bf16.mxu0 0
    %7044 = vmatpush2.bf16.msra.mxu0 0
    %7045 = vmatprep.subr.bf16.mxu0 0
    %7046 = vmatpush2.bf16.msra.mxu0 0
    %7047 = vmatprep.subr.bf16.mxu0 0
    %7048 = vmatpush2.bf16.msra.mxu0 0
    %7049 = vmatprep.subr.bf16.mxu0 0
    %7050 = vmatpush2.bf16.msra.mxu0 0
    %7051 = vmatprep.subr.bf16.mxu0 0
    %7052 = vmatpush2.bf16.msra.mxu0 0
    %7053 = vmatprep.mubr.bf16.mxu0 0
    %7054 = vmatmul.mubr.bf16.gmra.mxu0 %v5525
    %v7055 = vpop.f32.mrf.mxu0
    %v7056 = vadd.f32 %v7013, %v7055
    %v7057 = vpop.f32.mrf.mxu0
    %v7058 = vadd.f32 %v7015, %v7057
    %v7059 = vpop.f32.mrf.mxu0
    %v7060 = vadd.f32 %v7017, %v7059
    %v7061 = vpop.f32.mrf.mxu0
    %v7062 = vadd.f32 %v7019, %v7061
    %7063 = vdwg.mxu0
    %7064 = vmatprep.subr.bf16.mxu0 %v6475
    %7065 = vmatpush1.bf16.msra.mxu0 %v6474
    %7066 = vmatprep.subr.bf16.mxu0 %v6471
    %7067 = vmatpush1.bf16.msra.mxu0 %v6470
    %7068 = vmatprep.subr.bf16.mxu0 %v6467
    %7069 = vmatpush1.bf16.msra.mxu0 %v6466
    %7070 = vmatprep.subr.bf16.mxu0 %v6463
    %7071 = vmatpush1.bf16.msra.mxu0 %v6462
    %7072 = vmatprep.subr.bf16.mxu0 %v6459
    %7073 = vmatpush1.bf16.msra.mxu0 %v6458
    %7074 = vmatprep.subr.bf16.mxu0 %v6455
    %7075 = vmatpush1.bf16.msra.mxu0 %v6454
    %7076 = vmatprep.subr.bf16.mxu0 %v6451
    %7077 = vmatpush1.bf16.msra.mxu0 %v6450
    %7078 = vmatprep.subr.bf16.mxu0 %v6447
    %7079 = vmatpush1.bf16.msra.mxu0 %v6446
    %7080 = vmatprep.subr.bf16.mxu0 %v6507
    %7081 = vmatpush2.bf16.msra.mxu0 %v6506
    %7082 = vmatprep.subr.bf16.mxu0 %v6503
    %7083 = vmatpush2.bf16.msra.mxu0 %v6502
    %7084 = vmatprep.subr.bf16.mxu0 %v6499
    %7085 = vmatpush2.bf16.msra.mxu0 %v6498
    %7086 = vmatprep.subr.bf16.mxu0 %v6495
    %7087 = vmatpush2.bf16.msra.mxu0 %v6494
    %7088 = vmatprep.subr.bf16.mxu0 %v6491
    %7089 = vmatpush2.bf16.msra.mxu0 %v6490
    %7090 = vmatprep.subr.bf16.mxu0 %v6487
    %7091 = vmatpush2.bf16.msra.mxu0 %v6486
    %7092 = vmatprep.subr.bf16.mxu0 %v6483
    %7093 = vmatpush2.bf16.msra.mxu0 %v6482
    %7094 = vmatprep.subr.bf16.mxu0 %v6479
    %7095 = vmatpush2.bf16.msra.mxu0 %v6478
    %7096 = vmatprep.mubr.bf16.mxu0 %v5520
    %7097 = vmatmul.mubr.bf16.gmra.mxu0 %v5519
    %v7098 = vpop.f32.mrf.mxu0
    %v7099 = vadd.f32 %v5763, %v7098
    %v7100 = vpop.f32.mrf.mxu0
    %v7101 = vadd.f32 %v5767, %v7100
    %v7102 = vpop.f32.mrf.mxu0
    %v7103 = vadd.f32 %v5763, %v7102
    %v7104 = vpop.f32.mrf.mxu0
    %v7105 = vadd.f32 %v5767, %v7104
    %7106 = vdwg.mxu0
    %7107 = vmatprep.subr.bf16.mxu0 %v6539
    %7108 = vmatpush1.bf16.msra.mxu0 %v6538
    %7109 = vmatprep.subr.bf16.mxu0 %v6535
    %7110 = vmatpush1.bf16.msra.mxu0 %v6534
    %7111 = vmatprep.subr.bf16.mxu0 %v6531
    %7112 = vmatpush1.bf16.msra.mxu0 %v6530
    %7113 = vmatprep.subr.bf16.mxu0 %v6527
    %7114 = vmatpush1.bf16.msra.mxu0 %v6526
    %7115 = vmatprep.subr.bf16.mxu0 %v6523
    %7116 = vmatpush1.bf16.msra.mxu0 %v6522
    %7117 = vmatprep.subr.bf16.mxu0 %v6519
    %7118 = vmatpush1.bf16.msra.mxu0 %v6518
    %7119 = vmatprep.subr.bf16.mxu0 %v6515
    %7120 = vmatpush1.bf16.msra.mxu0 %v6514
    %7121 = vmatprep.subr.bf16.mxu0 %v6511
    %7122 = vmatpush1.bf16.msra.mxu0 %v6510
    %7123 = vmatprep.subr.bf16.mxu0 %v6571
    %7124 = vmatpush2.bf16.msra.mxu0 %v6570
    %7125 = vmatprep.subr.bf16.mxu0 %v6567
    %7126 = vmatpush2.bf16.msra.mxu0 %v6566
    %7127 = vmatprep.subr.bf16.mxu0 %v6563
    %7128 = vmatpush2.bf16.msra.mxu0 %v6562
    %7129 = vmatprep.subr.bf16.mxu0 %v6559
    %7130 = vmatpush2.bf16.msra.mxu0 %v6558
    %7131 = vmatprep.subr.bf16.mxu0 %v6555
    %7132 = vmatpush2.bf16.msra.mxu0 %v6554
    %7133 = vmatprep.subr.bf16.mxu0 %v6551
    %7134 = vmatpush2.bf16.msra.mxu0 %v6550
    %7135 = vmatprep.subr.bf16.mxu0 %v6547
    %7136 = vmatpush2.bf16.msra.mxu0 %v6546
    %7137 = vmatprep.subr.bf16.mxu0 %v6543
    %7138 = vmatpush2.bf16.msra.mxu0 %v6542
    %7139 = vmatprep.mubr.bf16.mxu0 %v5522
    %7140 = vmatmul.mubr.bf16.gmra.mxu0 %v5521
    %v7141 = vpop.f32.mrf.mxu0
    %v7142 = vadd.f32 %v7099, %v7141
    %v7143 = vpop.f32.mrf.mxu0
    %v7144 = vadd.f32 %v7101, %v7143
    %v7145 = vpop.f32.mrf.mxu0
    %v7146 = vadd.f32 %v7103, %v7145
    %v7147 = vpop.f32.mrf.mxu0
    %v7148 = vadd.f32 %v7105, %v7147
    %7149 = vdwg.mxu0
    %7150 = vmatprep.subr.bf16.mxu0 %v6603
    %7151 = vmatpush1.bf16.msra.mxu0 %v6602
    %7152 = vmatprep.subr.bf16.mxu0 %v6599
    %7153 = vmatpush1.bf16.msra.mxu0 %v6598
    %7154 = vmatprep.subr.bf16.mxu0 %v6595
    %7155 = vmatpush1.bf16.msra.mxu0 %v6594
    %7156 = vmatprep.subr.bf16.mxu0 %v6591
    %7157 = vmatpush1.bf16.msra.mxu0 %v6590
    %7158 = vmatprep.subr.bf16.mxu0 %v6587
    %7159 = vmatpush1.bf16.msra.mxu0 %v6586
    %7160 = vmatprep.subr.bf16.mxu0 %v6583
    %7161 = vmatpush1.bf16.msra.mxu0 %v6582
    %7162 = vmatprep.subr.bf16.mxu0 %v6579
    %7163 = vmatpush1.bf16.msra.mxu0 %v6578
    %7164 = vmatprep.subr.bf16.mxu0 %v6575
    %7165 = vmatpush1.bf16.msra.mxu0 %v6574
    %7166 = vmatprep.subr.bf16.mxu0 %v6635
    %7167 = vmatpush2.bf16.msra.mxu0 %v6634
    %7168 = vmatprep.subr.bf16.mxu0 %v6631
    %7169 = vmatpush2.bf16.msra.mxu0 %v6630
    %7170 = vmatprep.subr.bf16.mxu0 %v6627
    %7171 = vmatpush2.bf16.msra.mxu0 %v6626
    %7172 = vmatprep.subr.bf16.mxu0 %v6623
    %7173 = vmatpush2.bf16.msra.mxu0 %v6622
    %7174 = vmatprep.subr.bf16.mxu0 %v6619
    %7175 = vmatpush2.bf16.msra.mxu0 %v6618
    %7176 = vmatprep.subr.bf16.mxu0 %v6615
    %7177 = vmatpush2.bf16.msra.mxu0 %v6614
    %7178 = vmatprep.subr.bf16.mxu0 %v6611
    %7179 = vmatpush2.bf16.msra.mxu0 %v6610
    %7180 = vmatprep.subr.bf16.mxu0 %v6607
    %7181 = vmatpush2.bf16.msra.mxu0 %v6606
    %7182 = vmatprep.mubr.bf16.mxu0 %v5524
    %7183 = vmatmul.mubr.bf16.gmra.mxu0 %v5523
    %v7184 = vpop.f32.mrf.mxu0
    %v7185 = vadd.f32 %v7142, %v7184
    %v7186 = vpop.f32.mrf.mxu0
    %v7187 = vadd.f32 %v7144, %v7186
    %v7188 = vpop.f32.mrf.mxu0
    %v7189 = vadd.f32 %v7146, %v7188
    %v7190 = vpop.f32.mrf.mxu0
    %v7191 = vadd.f32 %v7148, %v7190
    %7192 = vdwg.mxu0
    %7193 = vmatprep.subr.bf16.mxu0 %v6667
    %7194 = vmatpush1.bf16.msra.mxu0 %v6666
    %7195 = vmatprep.subr.bf16.mxu0 %v6663
    %7196 = vmatpush1.bf16.msra.mxu0 %v6662
    %7197 = vmatprep.subr.bf16.mxu0 %v6659
    %7198 = vmatpush1.bf16.msra.mxu0 %v6658
    %7199 = vmatprep.subr.bf16.mxu0 %v6655
    %7200 = vmatpush1.bf16.msra.mxu0 %v6654
    %7201 = vmatprep.subr.bf16.mxu0 %v6651
    %7202 = vmatpush1.bf16.msra.mxu0 %v6650
    %7203 = vmatprep.subr.bf16.mxu0 %v6647
    %7204 = vmatpush1.bf16.msra.mxu0 %v6646
    %7205 = vmatprep.subr.bf16.mxu0 %v6643
    %7206 = vmatpush1.bf16.msra.mxu0 %v6642
    %7207 = vmatprep.subr.bf16.mxu0 %v6639
    %7208 = vmatpush1.bf16.msra.mxu0 %v6638
    %7209 = vmatprep.subr.bf16.mxu0 0
    %7210 = vmatpush2.bf16.msra.mxu0 0
    %7211 = vmatprep.subr.bf16.mxu0 0
    %7212 = vmatpush2.bf16.msra.mxu0 0
    %7213 = vmatprep.subr.bf16.mxu0 0
    %7214 = vmatpush2.bf16.msra.mxu0 0
    %7215 = vmatprep.subr.bf16.mxu0 0
    %7216 = vmatpush2.bf16.msra.mxu0 0
    %7217 = vmatprep.subr.bf16.mxu0 0
    %7218 = vmatpush2.bf16.msra.mxu0 0
    %7219 = vmatprep.subr.bf16.mxu0 0
    %7220 = vmatpush2.bf16.msra.mxu0 0
    %7221 = vmatprep.subr.bf16.mxu0 0
    %7222 = vmatpush2.bf16.msra.mxu0 0
    %7223 = vmatprep.subr.bf16.mxu0 0
    %7224 = vmatpush2.bf16.msra.mxu0 0
    %7225 = vmatprep.mubr.bf16.mxu0 0
    %7226 = vmatmul.mubr.bf16.gmra.mxu0 %v5525
    %v7227 = vpop.f32.mrf.mxu0
    %v7228 = vadd.f32 %v7185, %v7227
    %v7229 = vpop.f32.mrf.mxu0
    %v7230 = vadd.f32 %v7187, %v7229
    %v7231 = vpop.f32.mrf.mxu0
    %v7232 = vadd.f32 %v7189, %v7231
    %v7233 = vpop.f32.mrf.mxu0
    %v7234 = vadd.f32 %v7191, %v7233
    %7235 = vdwg.mxu0
    %v7236 = vmax.f32 %v7056, 0.0
    %v7237 = vmax.f32 %v7058, 0.0
    %v7238 = vmax.f32 %v7228, 0.0
    %v7239 = vmax.f32 %v7230, 0.0
    %v7240 = vmax.f32 %v7060, 0.0
    %v7241 = vmax.f32 %v7062, 0.0
    %v7242 = vmax.f32 %v7232, 0.0
    %v7243 = vmax.f32 %v7234, 0.0
    %v7244 = vld [vmem:[#allocation22] sm:$0xf]
    %v7245 = vunpack.c.l.bf16 %v7244
    %v7247 = vlaneseq
    %v7248 = vshrl.u32 %v7247, 7
    %v7249 = vsub.s32 0, %v7248
    %v7250 = vrot.slane %v7245, %v7249
    %v7251 = vlaneseq
    %v7252 = vshrl.u32 %v7251, 7
    %v7253 = vsub.s32 2, %v7252
    %v7254 = vrot.slane %v7245, %v7253
    %v7255 = vlaneseq
    %v7256 = vshrl.u32 %v7255, 7
    %v7257 = vsub.s32 4, %v7256
    %v7258 = vrot.slane %v7245, %v7257
    %v7259 = vlaneseq
    %v7260 = vshrl.u32 %v7259, 7
    %v7261 = vsub.s32 6, %v7260
    %v7262 = vrot.slane %v7245, %v7261
    %v7267 = vlaneseq
    %v7268 = vshrl.u32 %v7267, 7
    %v7269 = vsub.s32 0, %v7268
    %v7270 = vrot.slane %v7250, %v7269
    %v7271 = vlaneseq
    %v7272 = vshrl.u32 %v7271, 7
    %v7273 = vsub.s32 0, %v7272
    %v7274 = vrot.slane %v7254, %v7273
    %v7275 = vlaneseq
    %v7276 = vshrl.u32 %v7275, 7
    %v7277 = vsub.s32 0, %v7276
    %v7278 = vrot.slane %v7258, %v7277
    %v7279 = vlaneseq
    %v7280 = vshrl.u32 %v7279, 7
    %v7281 = vsub.s32 0, %v7280
    %v7282 = vrot.slane %v7262, %v7281
    %v7283 = vmul.f32 %v7236, %v7270
    %v7284 = vmul.f32 %v7237, %v7274
    %v7285 = vmul.f32 %v7238, %v7278
    %v7286 = vmul.f32 %v7239, %v7282
    %v7287 = vmul.f32 %v7240, %v7270
    %v7288 = vmul.f32 %v7241, %v7274
    %v7289 = vmul.f32 %v7242, %v7278
    %v7290 = vmul.f32 %v7243, %v7282
    %v7291 = vadd.f32 %v7283, %v7284
    %v7292 = vadd.f32 %v7291, %v7285
    %v7293 = vadd.f32 %v7292, %v7286
    %7294 = vadd.xlane.f32.xlu0 %v7293
    %v7295 = vpop.xlane.xlu0 %7294
    %v7296 = vadd.f32 %v7287, %v7288
    %v7297 = vadd.f32 %v7296, %v7289
    %v7298 = vadd.f32 %v7297, %v7290
    %7299 = vadd.xlane.f32.xlu0 %v7298
    %v7300 = vpop.xlane.xlu0 %7299
    %s7301 = sld [smem:[#allocation2]]
    %v7302 = vstv %s7301
    %v7303 = vadd.f32 %v7295, %v7302
    %v7304 = vadd.f32 %v7300, %v7302
    %v7305 = vsub.f32 0.0, %v7303
    %v7306 = vsub.f32 0.0, %v7304
    %v7307 = vmul.f32 %v7305, 1.442695
    %v7308 = vpow.pop %v7307
    %v7309 = vmul.f32 %v7306, 1.442695
    %v7310 = vpow.pop %v7309
    %v7311 = vadd.f32 %v7308, 1.0
    %v7312 = vadd.f32 %v7310, 1.0
    %v7313 = vrcp.pop %v7311
    %v7314 = vrcp.pop %v7312
    %v7315 = vmin.f32 %v7313, 1.0
    %v7316 = vmin.f32 %v7314, 1.0
    %vm7317 = vcmask 7168
    %7318 = vst.msk [vmem:[%s15] sm:$0xff] %vm7317, %v7315
    %7319 = vst.msk [vmem:[%s15 + $0x8] sm:$0xff] %vm7317, %v7316
    // Predicated region
    $region114: #{tpu_custom_call.1} parent=1 // pred_check
      _
    $region115: #{tpu_custom_call.1} parent=1 // pred_check_branch
      %7321 = sbr.rel (0) target = $region117
    $region116: #{tpu_custom_call.1} parent=1 // pred_region
      _
    $region117: #{tpu_custom_call.1} parent=1 // pred_fallthru
      _
    // Predicated region
    $region118: #{tpu_custom_call.1} parent=1 // pred_check
      _
    $region119: #{tpu_custom_call.1} parent=1 // pred_check_branch
      %7323 = sbr.rel (0) target = $region121
    $region120: #{tpu_custom_call.1} parent=1 // pred_region
      _
    $region121: #{tpu_custom_call.1} parent=1 // pred_fallthru
      _
    %7324 = vsyncpa [#allocation4], 1
    %7325 = vsyncpa [#allocation6], 1
    %7326 = vsyncpa [#allocation9], 1
    %7327 = vsyncpa [#allocation12], 1
    %7328 = vsyncpa [#allocation15], 1
    %7329 = vsyncpa [#allocation18], 1
    %7330 = vsyncpa [#allocation21], 1

</llo_original>
